<compile_context>
chip_gen: v7x
topology: tpu7x:2x2x1
jax: 0.10.0
libtpu: 0.0.40
codegen_flags: <defaults>
</compile_context>

<pallas_src>
import functools

import jax
import jax.numpy as jnp
from jax.experimental import pallas as pl
from jax.experimental.pallas import tpu as pltpu


_VMEM_LIMIT_BYTES = 48 * 1024 * 1024      # < v7x physical 64 MiB, > scoped default
_VMEM_BLOCK_BUDGET = 20 * 1024 * 1024     # target for per-step block footprint


# ----------------------------------------------------------------------------
# Deterministic filter generation (JAX port of generate_random_filters)
# ----------------------------------------------------------------------------
def generate_random_filters(key, size, sparcity=0.5):
    """Normalized random binary filters, output in [-0.5, 0.5]."""
    out_channels, in_channels, kernel_size, _ = size
    filters = jax.random.bernoulli(key, p=sparcity, shape=size).astype(jnp.float32)
    c = kernel_size // 2
    filters = filters.at[:, :, c, c].set(0.0)
    filter_sum = filters.reshape(out_channels, in_channels, -1).sum(axis=2) + 1e-06
    filters = filters / filter_sum[:, :, None, None]
    filters = filters.at[:, :, c, c].set(-1.0)
    filters = filters * 0.5
    return filters


# ----------------------------------------------------------------------------
# Pallas kernel: one row-band of one image per grid step.
#   xb_ref: (1, 1, C, Lb)      band of x, rows flattened into lanes
#   w_ref : (KH*KW, OC, C)     per-tap weight matrices (resident in VMEM)
#   o_ref : (1, 1, OC, Mb)     flattened output band (lane-dense last dim)
# where Lb = (TR + KH - 1) * W and Mb = TR * W - (KW - 1).
# ----------------------------------------------------------------------------
def _rfc_band_kernel(xb_ref, w_ref, o_ref, *, KH, KW, W, Mb):
    x_band = xb_ref[0, 0]                                    # (C, Lb) in VMEM
    oc = o_ref.shape[2]
    acc = jnp.zeros((oc, Mb), dtype=jnp.float32)
    for ki in range(KH):                                     # static tap loop
        for kj in range(KW):
            off = ki * W + kj                                # static lane shift
            xs = jax.lax.slice_in_dim(x_band, off, off + Mb, axis=1)   # (C, Mb)
            wt = w_ref[ki * KW + kj]                         # (OC, C)
            acc = acc + jnp.dot(
                wt, xs,
                preferred_element_type=jnp.float32,
                precision=jax.lax.Precision.HIGHEST)
    o_ref[0, 0] = acc.astype(o_ref.dtype)


def _pick_band_rows(C, OC, W, OH):
    """Output rows per band, sized so double-buffered blocks + temps fit VMEM."""
    # ~ 4 B * W * (2*C*(TR+KH-1) + (2+1)*OC*TR + C*TR)  ->  ~4*W*3*(C+OC) per row
    bytes_per_row = 4 * W * 3 * (C + OC)
    tr = max(1, _VMEM_BLOCK_BUDGET // max(1, bytes_per_row))
    tr = min(tr, OH)
    if tr < OH and tr > 8:
        tr = (tr // 8) * 8
    return int(tr)


def random_filter_convolution(x, weight, *, band_rows=None):
    """Forward pass of RandomFilterConvolution (stride=1, padding=0, no bias).

    x:      (N, C, H, W)    float32, NCHW
    weight: (OC, IC, KH, KW) float32, OIHW
    returns (N, OC, OH, OW) float32
    """
    N, C, H, W = x.shape
    OC, IC, KH, KW = weight.shape
    assert C == IC
    OH, OW = H - KH + 1, W - KW + 1
    assert OH >= 1 and OW >= 1

    TR = _pick_band_rows(C, OC, W, OH) if band_rows is None else min(int(band_rows), OH)
    TR = max(1, TR)
    nb = pl.cdiv(OH, TR)                      # number of row bands
    TRH = TR + KH - 1                         # input rows per band (with halo)
    Lb = TRH * W                              # flattened band length
    Mb = TR * W - (KW - 1)                    # flattened output band length

    # Banded input (N, nb, C, Lb).  Single band => pure (free) reshape.
    if nb == 1:
        xb = x.reshape(N, 1, C, H * W)
    else:
        H_pad = (nb - 1) * TR + TRH
        xp = jnp.pad(x, ((0, 0), (0, 0), (0, H_pad - H), (0, 0)))
        xb = jnp.stack([xp[:, :, b * TR:b * TR + TRH, :] for b in range(nb)], axis=1)
        xb = xb.reshape(N, nb, C, Lb)

    # Per-tap weights: (KH*KW, OC, C), tap index t = ki*KW + kj.
    w_taps = jnp.transpose(weight, (2, 3, 0, 1)).reshape(KH * KW, OC, C)

    kernel = functools.partial(_rfc_band_kernel, KH=KH, KW=KW, W=W, Mb=Mb)
    out_flat = pl.pallas_call(
        kernel,
        out_shape=jax.ShapeDtypeStruct((N, nb, OC, Mb), jnp.float32),
        grid=(N, nb),
        in_specs=[
            pl.BlockSpec((1, 1, C, Lb), lambda n, b: (n, b, 0, 0)),
            pl.BlockSpec((KH * KW, OC, C), lambda n, b: (0, 0, 0)),  # resident
        ],
        out_specs=pl.BlockSpec((1, 1, OC, Mb), lambda n, b: (n, b, 0, 0)),
        compiler_params=pltpu.CompilerParams(
            dimension_semantics=("parallel", "parallel"),
            vmem_limit_bytes=_VMEM_LIMIT_BYTES),
        cost_estimate=pl.CostEstimate(
            flops=2 * N * OC * C * KH * KW * OH * OW,
            transcendentals=0,
            bytes_accessed=4 * (N * nb * C * Lb + KH * KW * OC * C
                                + N * nb * OC * Mb)),
    )(xb, w_taps)

    # (N, nb, OC, Mb) -> NCHW.  Junk lanes (ow >= OW) and padded rows sliced off.
    pad_tail = TR * W - Mb                    # == KW - 1
    out = jnp.pad(out_flat, ((0, 0), (0, 0), (0, 0), (0, pad_tail)))
    out = out.reshape(N, nb, OC, TR, W)[:, :, :, :, :OW]
    out = out.transpose(0, 2, 1, 3, 4).reshape(N, OC, nb * TR, OW)
    return out[:, :, :OH, :]


# ----------------------------------------------------------------------------
# Module-like wrapper
# ----------------------------------------------------------------------------
class RandomFilterConvolution:
    def __init__(self, in_channels, out_channels, kernel_size,
                 stride=1, padding=0, sparcity=0.5, key=None):
        # NOTE: like the PyTorch module, `stride` is accepted but not used
        # (the original passes only padding to nn.Conv2d).
        del stride
        self.padding = int(padding)
        if key is None:
            key = jax.random.PRNGKey(0)
        self.weight = generate_random_filters(
            key, (out_channels, in_channels, kernel_size, kernel_size), sparcity)
        self._forward = jax.jit(random_filter_convolution,
                                static_argnames=("band_rows",))

    def __call__(self, x):
        if self.padding:
            p = self.padding
            x = jnp.pad(x, ((0, 0), (0, 0), (p, p), (p, p)))
        return self._forward(x, self.weight)


if __name__ == "__main__":
    key = jax.random.PRNGKey(0)
    kx, kw = jax.random.split(key)

    N, C, H, W = 2, 4, 16, 16
    OC, KS = 8, 3

    x = jax.random.uniform(kx, (N, C, H, W), dtype=jnp.float32)

    mod = RandomFilterConvolution(in_channels=C, out_channels=OC,
                                  kernel_size=KS, key=kw)
    y = mod(x)
    y = jax.block_until_ready(y)

    # Reference: plain XLA convolution (NCHW / OIHW), valid padding, exact f32.
    ref = jax.lax.conv_general_dilated(
        x, mod.weight, window_strides=(1, 1), padding="VALID",
        dimension_numbers=("NCHW", "OIHW", "NCHW"),
        precision=jax.lax.Precision.HIGHEST)

    assert y.shape == (N, OC, H - KS + 1, W - KS + 1)
    assert jnp.allclose(y, ref, atol=1e-5, rtol=1e-5)

    # Also exercise the multi-band (halo) path with a small forced band height.
    y2 = random_filter_convolution(x, mod.weight, band_rows=5)
    y2 = jax.block_until_ready(y2)
    assert jnp.allclose(y2, ref, atol=1e-5, rtol=1e-5)

    print("KERNEL_OK")
</pallas_src>

<mosaic_0001>
module attributes {stable_mosaic.version = 11 : i64} {
  func.func @_rfc_band_kernel(%arg0: i32, %arg1: i32, %arg2: memref<1x1x4x256xf32, #tpu.memory_space<vmem>>, %arg3: memref<9x8x4xf32, #tpu.memory_space<vmem>>, %arg4: memref<1x1x8x222xf32, #tpu.memory_space<vmem>>) attributes {dimension_semantics = [#tpu.dimension_semantics<parallel>, #tpu.dimension_semantics<parallel>], iteration_bounds = array<i64: 2, 1>, scalar_prefetch = 0 : i64, scratch_operands = 0 : i64, tpu.core_type = #tpu.core_type<tc>, window_params = [{transform_indices = @transform_0, window_bounds = array<i64: 1, 1, 4, 256>}, {pipeline_mode = #tpu.pipeline_mode<synchronous>, transform_indices = @transform_1, window_bounds = array<i64: 9, 8, 4>}, {transform_indices = @transform_2, window_bounds = array<i64: 1, 1, 8, 222>}]} {
    %c0 = arith.constant 0 : index
    %c0_0 = arith.constant 0 : index
    %c0_1 = arith.constant 0 : index
    %c0_2 = arith.constant 0 : index
    %0 = vector.load %arg2[%c0, %c0_0, %c0_1, %c0_2] : memref<1x1x4x256xf32, #tpu.memory_space<vmem>>, vector<1x1x4x256xf32>
    %1 = vector.shape_cast %0 : vector<1x1x4x256xf32> to vector<4x256xf32>
    %cst = arith.constant 0.000000e+00 : f32
    %2 = vector.broadcast %cst : f32 to vector<8x222xf32>
    %3 = vector.extract_strided_slice %1 {offsets = [0, 0], sizes = [4, 222], strides = [1, 1]} : vector<4x256xf32> to vector<4x222xf32>
    %c0_3 = arith.constant 0 : index
    %c0_4 = arith.constant 0 : index
    %c0_5 = arith.constant 0 : index
    %4 = vector.load %arg3[%c0_3, %c0_4, %c0_5] : memref<9x8x4xf32, #tpu.memory_space<vmem>>, vector<1x8x4xf32>
    %5 = vector.shape_cast %4 : vector<1x8x4xf32> to vector<8x4xf32>
    %cst_6 = arith.constant dense<0.000000e+00> : vector<8x222xf32>
    %6 = tpu.matmul %5, %3, %cst_6 {dimension_numbers = #tpu.dot_dimension_numbers<[1], [0], [0], [1], [0, 0, 1, 1], [], []>, precision = #tpu.contract_precision<fp32>} : vector<8x4xf32>, vector<4x222xf32>, vector<8x222xf32> -> vector<8x222xf32>
    %7 = arith.addf %2, %6 : vector<8x222xf32>
    %8 = vector.extract_strided_slice %1 {offsets = [0, 1], sizes = [4, 222], strides = [1, 1]} : vector<4x256xf32> to vector<4x222xf32>
    %c1 = arith.constant 1 : index
    %c0_7 = arith.constant 0 : index
    %c0_8 = arith.constant 0 : index
    %9 = vector.load %arg3[%c1, %c0_7, %c0_8] : memref<9x8x4xf32, #tpu.memory_space<vmem>>, vector<1x8x4xf32>
    %10 = vector.shape_cast %9 : vector<1x8x4xf32> to vector<8x4xf32>
    %cst_9 = arith.constant dense<0.000000e+00> : vector<8x222xf32>
    %11 = tpu.matmul %10, %8, %cst_9 {dimension_numbers = #tpu.dot_dimension_numbers<[1], [0], [0], [1], [0, 0, 1, 1], [], []>, precision = #tpu.contract_precision<fp32>} : vector<8x4xf32>, vector<4x222xf32>, vector<8x222xf32> -> vector<8x222xf32>
    %12 = arith.addf %7, %11 : vector<8x222xf32>
    %13 = vector.extract_strided_slice %1 {offsets = [0, 2], sizes = [4, 222], strides = [1, 1]} : vector<4x256xf32> to vector<4x222xf32>
    %c2 = arith.constant 2 : index
    %c0_10 = arith.constant 0 : index
    %c0_11 = arith.constant 0 : index
    %14 = vector.load %arg3[%c2, %c0_10, %c0_11] : memref<9x8x4xf32, #tpu.memory_space<vmem>>, vector<1x8x4xf32>
    %15 = vector.shape_cast %14 : vector<1x8x4xf32> to vector<8x4xf32>
    %cst_12 = arith.constant dense<0.000000e+00> : vector<8x222xf32>
    %16 = tpu.matmul %15, %13, %cst_12 {dimension_numbers = #tpu.dot_dimension_numbers<[1], [0], [0], [1], [0, 0, 1, 1], [], []>, precision = #tpu.contract_precision<fp32>} : vector<8x4xf32>, vector<4x222xf32>, vector<8x222xf32> -> vector<8x222xf32>
    %17 = arith.addf %12, %16 : vector<8x222xf32>
    %18 = vector.extract_strided_slice %1 {offsets = [0, 16], sizes = [4, 222], strides = [1, 1]} : vector<4x256xf32> to vector<4x222xf32>
    %c3 = arith.constant 3 : index
    %c0_13 = arith.constant 0 : index
    %c0_14 = arith.constant 0 : index
    %19 = vector.load %arg3[%c3, %c0_13, %c0_14] : memref<9x8x4xf32, #tpu.memory_space<vmem>>, vector<1x8x4xf32>
    %20 = vector.shape_cast %19 : vector<1x8x4xf32> to vector<8x4xf32>
    %cst_15 = arith.constant dense<0.000000e+00> : vector<8x222xf32>
    %21 = tpu.matmul %20, %18, %cst_15 {dimension_numbers = #tpu.dot_dimension_numbers<[1], [0], [0], [1], [0, 0, 1, 1], [], []>, precision = #tpu.contract_precision<fp32>} : vector<8x4xf32>, vector<4x222xf32>, vector<8x222xf32> -> vector<8x222xf32>
    %22 = arith.addf %17, %21 : vector<8x222xf32>
    %23 = vector.extract_strided_slice %1 {offsets = [0, 17], sizes = [4, 222], strides = [1, 1]} : vector<4x256xf32> to vector<4x222xf32>
    %c4 = arith.constant 4 : index
    %c0_16 = arith.constant 0 : index
    %c0_17 = arith.constant 0 : index
    %24 = vector.load %arg3[%c4, %c0_16, %c0_17] : memref<9x8x4xf32, #tpu.memory_space<vmem>>, vector<1x8x4xf32>
    %25 = vector.shape_cast %24 : vector<1x8x4xf32> to vector<8x4xf32>
    %cst_18 = arith.constant dense<0.000000e+00> : vector<8x222xf32>
    %26 = tpu.matmul %25, %23, %cst_18 {dimension_numbers = #tpu.dot_dimension_numbers<[1], [0], [0], [1], [0, 0, 1, 1], [], []>, precision = #tpu.contract_precision<fp32>} : vector<8x4xf32>, vector<4x222xf32>, vector<8x222xf32> -> vector<8x222xf32>
    %27 = arith.addf %22, %26 : vector<8x222xf32>
    %28 = vector.extract_strided_slice %1 {offsets = [0, 18], sizes = [4, 222], strides = [1, 1]} : vector<4x256xf32> to vector<4x222xf32>
    %c5 = arith.constant 5 : index
    %c0_19 = arith.constant 0 : index
    %c0_20 = arith.constant 0 : index
    %29 = vector.load %arg3[%c5, %c0_19, %c0_20] : memref<9x8x4xf32, #tpu.memory_space<vmem>>, vector<1x8x4xf32>
    %30 = vector.shape_cast %29 : vector<1x8x4xf32> to vector<8x4xf32>
    %cst_21 = arith.constant dense<0.000000e+00> : vector<8x222xf32>
    %31 = tpu.matmul %30, %28, %cst_21 {dimension_numbers = #tpu.dot_dimension_numbers<[1], [0], [0], [1], [0, 0, 1, 1], [], []>, precision = #tpu.contract_precision<fp32>} : vector<8x4xf32>, vector<4x222xf32>, vector<8x222xf32> -> vector<8x222xf32>
    %32 = arith.addf %27, %31 : vector<8x222xf32>
    %33 = vector.extract_strided_slice %1 {offsets = [0, 32], sizes = [4, 222], strides = [1, 1]} : vector<4x256xf32> to vector<4x222xf32>
    %c6 = arith.constant 6 : index
    %c0_22 = arith.constant 0 : index
    %c0_23 = arith.constant 0 : index
    %34 = vector.load %arg3[%c6, %c0_22, %c0_23] : memref<9x8x4xf32, #tpu.memory_space<vmem>>, vector<1x8x4xf32>
    %35 = vector.shape_cast %34 : vector<1x8x4xf32> to vector<8x4xf32>
    %cst_24 = arith.constant dense<0.000000e+00> : vector<8x222xf32>
    %36 = tpu.matmul %35, %33, %cst_24 {dimension_numbers = #tpu.dot_dimension_numbers<[1], [0], [0], [1], [0, 0, 1, 1], [], []>, precision = #tpu.contract_precision<fp32>} : vector<8x4xf32>, vector<4x222xf32>, vector<8x222xf32> -> vector<8x222xf32>
    %37 = arith.addf %32, %36 : vector<8x222xf32>
    %38 = vector.extract_strided_slice %1 {offsets = [0, 33], sizes = [4, 222], strides = [1, 1]} : vector<4x256xf32> to vector<4x222xf32>
    %c7 = arith.constant 7 : index
    %c0_25 = arith.constant 0 : index
    %c0_26 = arith.constant 0 : index
    %39 = vector.load %arg3[%c7, %c0_25, %c0_26] : memref<9x8x4xf32, #tpu.memory_space<vmem>>, vector<1x8x4xf32>
    %40 = vector.shape_cast %39 : vector<1x8x4xf32> to vector<8x4xf32>
    %cst_27 = arith.constant dense<0.000000e+00> : vector<8x222xf32>
    %41 = tpu.matmul %40, %38, %cst_27 {dimension_numbers = #tpu.dot_dimension_numbers<[1], [0], [0], [1], [0, 0, 1, 1], [], []>, precision = #tpu.contract_precision<fp32>} : vector<8x4xf32>, vector<4x222xf32>, vector<8x222xf32> -> vector<8x222xf32>
    %42 = arith.addf %37, %41 : vector<8x222xf32>
    %43 = vector.extract_strided_slice %1 {offsets = [0, 34], sizes = [4, 222], strides = [1, 1]} : vector<4x256xf32> to vector<4x222xf32>
    %c8 = arith.constant 8 : index
    %c0_28 = arith.constant 0 : index
    %c0_29 = arith.constant 0 : index
    %44 = vector.load %arg3[%c8, %c0_28, %c0_29] : memref<9x8x4xf32, #tpu.memory_space<vmem>>, vector<1x8x4xf32>
    %45 = vector.shape_cast %44 : vector<1x8x4xf32> to vector<8x4xf32>
    %cst_30 = arith.constant dense<0.000000e+00> : vector<8x222xf32>
    %46 = tpu.matmul %45, %43, %cst_30 {dimension_numbers = #tpu.dot_dimension_numbers<[1], [0], [0], [1], [0, 0, 1, 1], [], []>, precision = #tpu.contract_precision<fp32>} : vector<8x4xf32>, vector<4x222xf32>, vector<8x222xf32> -> vector<8x222xf32>
    %47 = arith.addf %42, %46 : vector<8x222xf32>
    %c0_31 = arith.constant 0 : index
    %c0_32 = arith.constant 0 : index
    %c0_33 = arith.constant 0 : index
    %c0_34 = arith.constant 0 : index
    %48 = vector.load %arg4[%c0_31, %c0_32, %c0_33, %c0_34] : memref<1x1x8x222xf32, #tpu.memory_space<vmem>>, vector<1x1x8x222xf32>
    %49 = vector.shape_cast %48 : vector<1x1x8x222xf32> to vector<8x222xf32>
    %50 = vector.shape_cast %47 : vector<8x222xf32> to vector<1x1x8x222xf32>
    tpu.vector_store %arg4[%c0_31, %c0_32, %c0_33, %c0_34], %50 {strides = array<i32>} : memref<1x1x8x222xf32, #tpu.memory_space<vmem>>, vector<1x1x8x222xf32>,
    return
  }
  func.func @transform_0(%arg0: i32, %arg1: i32) -> (i32, i32, i32, i32) {
    %c0_i32 = arith.constant 0 : i32
    %c0_i32_0 = arith.constant 0 : i32
    %c0_i32_1 = arith.constant 0 : i32
    return %arg0, %arg1, %c0_i32, %c0_i32_0 : i32, i32, i32, i32
  }
  func.func @transform_1(%arg0: i32, %arg1: i32) -> (i32, i32, i32) {
    %c0_i32 = arith.constant 0 : i32
    %c0_i32_0 = arith.constant 0 : i32
    %c0_i32_1 = arith.constant 0 : i32
    %c0_i32_2 = arith.constant 0 : i32
    return %c0_i32, %c0_i32_0, %c0_i32_1 : i32, i32, i32
  }
  func.func @transform_2(%arg0: i32, %arg1: i32) -> (i32, i32, i32, i32) {
    %c0_i32 = arith.constant 0 : i32
    %c0_i32_0 = arith.constant 0 : i32
    %c0_i32_1 = arith.constant 0 : i32
    return %arg0, %arg1, %c0_i32, %c0_i32_0 : i32, i32, i32, i32
  }
}

</mosaic_0001>

<llo_original>
// kernel: random_filter_convolution.1
$region0: #{random_filter_convolution.1}
  #allocation0 [shape = 'u32[]', space=smem, size = 0x4, offset = 0x4, fixed_abs, tag = 'smem constant byte address 0x4 - core index']
  #allocation1 [shape = 'u32[144,128]{1,0:T(1,128)}', space=vmem, size = 0x12000, scoped, tag = 'internal scratch']
  %s0 = inlined_call_operand.vmem [shape: f32[2,1,4,256], index: 0, kind: input, shape index: {}]
  %s1 = inlined_call_operand.vmem [shape: f32[9,8,4], index: 1, kind: input, shape index: {}]
  %s2 = inlined_call_operand.vmem [shape: f32[2,1,8,222], index: 2, kind: output, shape index: {}]
  %s3 = sld [smem:[#allocation0]]
  $region41: #{random_filter_convolution.1} parent=0
    _
  %s5 = ssub.s32 1, %s3
  %s6 = scalar_select 0, %s5, %s3
  loop: start=0, step=1, limit=4
  $region2: #{random_filter_convolution.1} parent=0 // loop_pre_header
    _
  $region3: #{random_filter_convolution.1} parent=0 // loop_header
    %s8 = sphi 0, %s12
    %p9 = scmp.ge.s32.totalorder %s8, 4
    %s15 = sphi 0, %s27
    %s16 = sphi 0, %s23
    %s17 = sphi 0, %s15
    %s18 = sphi 0, %s16
    %s19 = sphi 0, %s17
    %s20 = sphi 0, %s18
    %s32 = sphi 0, %s34
    %s35 = sphi 0, %s32
    %s36 = sphi 0, %s35
    %s52 = sphi 0, %s36
    %s56 = sphi 0, %s56
    %s58 = sphi 0, %s56
    %s59 = sphi 0, %s58
    %s73 = sphi 0, %s59
    %s81 = sphi 0, %s83
    %s84 = sphi 0, %s81
    %s85 = sphi 0, %s84
    %s101 = sphi 0, %s85
  $region4: #{random_filter_convolution.1} parent=0 // loop_header_branch
    %11 = sbr.rel (%p9) target = $region8
  $region5: #{random_filter_convolution.1} parent=0 // loop_body
    %s13 = ssub.s32 %s8, 1
    %s14 = ssub.s32 %s8, 2
    %s21 = sadd.s32 1, %s16
    %p22 = scmp.ge.s32.totalorder %s21, 1
    %s23 = scalar_select %p22, 0, %s21
    %s24 = sadd.s32 1, %s15
    %s25 = scalar_select %p22, %s24, %s15
    %p26 = scmp.ge.s32.totalorder %s25, 2
    %s27 = scalar_select %p26, 0, %s25
    %s28 = ssub.s32 %s15, %s27
    %s29 = ssub.s32 %s16, %s23
    %s30 = sor.u32 %s28, %s29
    %p31 = scmp.eq.s32.totalorder %s30, 0
    %s33 = sadd.s32 %s32, 1
    %s34 = scalar_select %p31, %s32, %s33
    %p37 = pneg %p31
    %p38 = scmp.eq.s32.totalorder %s8, 1
    %p39 = por %p37, %p38
    %p40 = scmp.ne.s32.totalorder %s32, %s35
    %p41 = scmp.eq.s32.totalorder %s8, 0
    %p42 = por %p40, %p41
    %p43 = scmp.ne.s32.totalorder %s32, %s35
    %p44 = scmp.eq.s32.totalorder %s13, 1
    %p45 = por %p43, %p44
    %p46 = scmp.ne.s32.totalorder %s35, %s36
    %p47 = scmp.eq.s32.totalorder %s13, 0
    %p48 = por %p46, %p47
    %p49 = scmp.ne.s32.totalorder %s35, %s36
    %p50 = scmp.eq.s32.totalorder %s14, 1
    %p51 = por %p49, %p50
    %p53 = scmp.ne.s32.totalorder %s36, %s52
    %p54 = scmp.eq.s32.totalorder %s14, 0
    %p55 = por %p53, %p54
    %s57 = sadd.s32 %s56, 1
    %p60 = scmp.eq.s32.totalorder %s8, 1
    %p61 = scmp.ne.s32.totalorder %s56, %s58
    %p62 = scmp.eq.s32.totalorder %s8, 0
    %p63 = por %p61, %p62
    %p64 = scmp.ne.s32.totalorder %s56, %s58
    %p65 = scmp.eq.s32.totalorder %s13, 1
    %p66 = por %p64, %p65
    %p67 = scmp.ne.s32.totalorder %s58, %s59
    %p68 = scmp.eq.s32.totalorder %s13, 0
    %p69 = por %p67, %p68
    %p70 = scmp.ne.s32.totalorder %s58, %s59
    %p71 = scmp.eq.s32.totalorder %s14, 1
    %p72 = por %p70, %p71
    %p74 = scmp.ne.s32.totalorder %s59, %s73
    %p75 = scmp.eq.s32.totalorder %s14, 0
    %p76 = por %p74, %p75
    %s77 = ssub.s32 %s15, %s27
    %s78 = ssub.s32 %s16, %s23
    %s79 = sor.u32 %s77, %s78
    %p80 = scmp.eq.s32.totalorder %s79, 0
    %s82 = sadd.s32 %s81, 1
    %s83 = scalar_select %p80, %s81, %s82
    %p86 = pneg %p80
    %p87 = scmp.eq.s32.totalorder %s8, 1
    %p88 = por %p86, %p87
    %p89 = scmp.ne.s32.totalorder %s81, %s84
    %p90 = scmp.eq.s32.totalorder %s8, 0
    %p91 = por %p89, %p90
    %p92 = scmp.ne.s32.totalorder %s81, %s84
    %p93 = scmp.eq.s32.totalorder %s13, 1
    %p94 = por %p92, %p93
    %p95 = scmp.ne.s32.totalorder %s84, %s85
    %p96 = scmp.eq.s32.totalorder %s13, 0
    %p97 = por %p95, %p96
    %p98 = scmp.ne.s32.totalorder %s84, %s85
    %p99 = scmp.eq.s32.totalorder %s14, 1
    %p100 = por %p98, %p99
    %p102 = scmp.ne.s32.totalorder %s85, %s101
    %p103 = scmp.eq.s32.totalorder %s14, 0
    %p104 = por %p102, %p103
    %p105 = scmp.le.s32.totalorder 1, %s8
    %p106 = scmp.lt.s32.totalorder %s8, 3
    %p107 = pnand %p105, %p106
    %p108 = pneg %p107
    // Predicated region
    $region9: #{random_filter_convolution.1} parent=5 // pred_check
      _
    $region10: #{random_filter_convolution.1} parent=5 // pred_check_branch
      %110 = sbr.rel (%p107) target = $region12
    $region11: #{random_filter_convolution.1} parent=5 // pred_region
      %s111 = ssub.s32 %s8, 1
      // Predicated region
      $region13: #{random_filter_convolution.1} parent=11 // pred_check
        %p112 = pneg %p69
      $region14: #{random_filter_convolution.1} parent=11 // pred_check_branch
        %114 = sbr.rel (%p112) target = $region16
      $region15: #{random_filter_convolution.1} parent=11 // pred_region
        _
      $region16: #{random_filter_convolution.1} parent=11 // pred_fallthru
        _
    $region12: #{random_filter_convolution.1} parent=5 // pred_fallthru
      _
    %p115 = scmp.lt.s32.totalorder %s8, 2
    // Predicated region
    $region17: #{random_filter_convolution.1} parent=5 // pred_check
      %p116 = pneg %p115
    $region18: #{random_filter_convolution.1} parent=5 // pred_check_branch
      %118 = sbr.rel (%p116) target = $region20
    $region19: #{random_filter_convolution.1} parent=5 // pred_region
      // Predicated region
      $region21: #{random_filter_convolution.1} parent=19 // pred_check
        %p119 = pneg %p42
      $region22: #{random_filter_convolution.1} parent=19 // pred_check_branch
        %121 = sbr.rel (%p119) target = $region24
      $region23: #{random_filter_convolution.1} parent=19 // pred_region
        %p122 = scmp.lt.s32.totalorder %s15, 1
        %s123 = scalar_select %p122, %s15, 1
        %p124 = scmp.lt.s32.totalorder %s16, 0
        %s125 = scalar_select %p124, %s16, 0
        %s126 = smul.addr %s125, 2
        %s127 = smul.addr %s123, 2
        %s128 = sadd.s32 %s126, %s127
        %s129 = smul.addr %s128, 4
        %s130 = scalar_lea.vmem %s0, %s129
      $region24: #{random_filter_convolution.1} parent=19 // pred_fallthru
        _
    $region20: #{random_filter_convolution.1} parent=5 // pred_fallthru
      _
    %p131 = scmp.le.s32.totalorder 1, %s8
    %p132 = scmp.lt.s32.totalorder %s8, 3
    %p133 = pnand %p131, %p132
    %p134 = pneg %p133
    // Predicated region
    $region25: #{random_filter_convolution.1} parent=5 // pred_check
      _
    $region26: #{random_filter_convolution.1} parent=5 // pred_check_branch
      %136 = sbr.rel (%p133) target = $region28
    $region27: #{random_filter_convolution.1} parent=5 // pred_region
      %s137 = ssub.s32 %s8, 1
      %p138 = scmp.lt.s32.totalorder %s17, 1
      %s139 = scalar_select %p138, %s17, 1
      %p140 = scmp.lt.s32.totalorder %s18, 0
      %s141 = scalar_select %p140, %s18, 0
      %s142 = smul.addr %s141, 2
      %s143 = smul.addr %s139, 2
      %s144 = sadd.s32 %s142, %s143
      %s145 = smul.addr %s144, 4
      %s146 = scalar_lea.vmem %s0, %s145
      %p147 = pneg %p48
      %p148 = pneg %p45
      %p149 = pneg %p69
      %p150 = pneg %p66
      %p151 = pneg %p97
      %p152 = pneg %p94
      %p153 = scmp.lt.s32.totalorder %s17, 1
      %s154 = scalar_select %p153, %s17, 1
      %p155 = scmp.lt.s32.totalorder %s18, 0
      %s156 = scalar_select %p155, %s18, 0
      %s157 = smul.addr %s156, 2
      %s158 = smul.addr %s154, 2
      %s159 = sadd.s32 %s157, %s158
      %s160 = smul.addr %s159, 8
      %s161 = scalar_lea.vmem %s2, %s160
      %p162 = scmp.lt.s32.totalorder %s17, 1
      %s163 = scalar_select %p162, %s17, 1
      %p164 = scmp.lt.s32.totalorder %s18, 0
      %s165 = scalar_select %p164, %s18, 0
      %s166 = smul.addr %s165, 2
      %s167 = smul.addr %s163, 2
      %s168 = sadd.s32 %s166, %s167
      %s169 = smul.addr %s168, 4
      %s170 = scalar_lea.vmem %s0, %s169
      %p171 = scmp.lt.s32.totalorder %s17, 1
      %s172 = scalar_select %p171, %s17, 1
      %p173 = scmp.lt.s32.totalorder %s18, 0
      %s174 = scalar_select %p173, %s18, 0
      %s175 = smul.addr %s174, 2
      %s176 = smul.addr %s172, 2
      %s177 = sadd.s32 %s175, %s176
      %s178 = smul.addr %s177, 8
      %s179 = scalar_lea.vmem %s2, %s178
      %v180 = vld [vmem:[%s170] sm:$0xff]
      %v181 = vld [vmem:[%s1] sm:$0xff]
      %s182 = scalar_lea.vmem %s1, 8
      %v183 = vld [vmem:[%s182] sm:$0xff]
      %v185 = vcombine.high %v180, %v180
      %186 = vrot.lane.b32.xlu0 %v180, 127
      %v187 = vpop.permute.xlu0 %186
      %188 = vrot.lane.b32.xlu0 %v185, 127
      %v189 = vpop.permute.xlu0 %188
      %vm190 = vcmask 1039360
      %v191 = vsel %vm190, %v187, %v189
      %vm192 = vcmask 31744
      %v194 = vsel %vm192, %v183, 0
      %vm196 = vcmask 1043456
      %v197 = vsel %vm196, %v191, 0
      %v199 = vsel %vm196, %v189, 0
      %v201 = vand.u32 %v199, 4294901760
      %202 = vmatprep.subr.mxu0 %v201
      %v203 = vand.u32 %v197, 4294901760
      %204 = vmatpush1.msra.mxu0 %v203
      %205 = vmatprep.subr.mxu0 0.0
      %206 = vmatpush1.msra.mxu0 0.0
      %207 = vmatprep.subr.mxu0 0.0
      %208 = vmatpush1.msra.mxu0 0.0
      %209 = vmatprep.subr.mxu0 0.0
      %210 = vmatpush1.msra.mxu0 0.0
      %211 = vmatprep.subr.mxu0 0.0
      %212 = vmatpush1.msra.mxu0 0.0
      %213 = vmatprep.subr.mxu0 0.0
      %214 = vmatpush1.msra.mxu0 0.0
      %215 = vmatprep.subr.mxu0 0.0
      %216 = vmatpush1.msra.mxu0 0.0
      %217 = vmatprep.subr.mxu0 0.0
      %218 = vmatpush1.msra.mxu0 0.0
      %219 = vmatprep.subr.mxu0 0.0
      %220 = vmatpush1.msra.mxu0 0.0
      %221 = vmatprep.subr.mxu0 0.0
      %222 = vmatpush1.msra.mxu0 0.0
      %223 = vmatprep.subr.mxu0 0.0
      %224 = vmatpush1.msra.mxu0 0.0
      %225 = vmatprep.subr.mxu0 0.0
      %226 = vmatpush1.msra.mxu0 0.0
      %227 = vmatprep.subr.mxu0 0.0
      %228 = vmatpush1.msra.mxu0 0.0
      %229 = vmatprep.subr.mxu0 0.0
      %230 = vmatpush1.msra.mxu0 0.0
      %231 = vmatprep.subr.mxu0 0.0
      %232 = vmatpush1.msra.mxu0 0.0
      %233 = vmatprep.subr.mxu0 0.0
      %234 = vmatpush1.msra.mxu0 0.0
      %235 = vmatprep.subr.mxu0 0.0
      %236 = vmatpush1.msra.mxu0 0.0
      %237 = vmatprep.subr.mxu0 0.0
      %238 = vmatpush1.msra.mxu0 0.0
      %239 = vmatprep.subr.mxu0 0.0
      %240 = vmatpush1.msra.mxu0 0.0
      %241 = vmatprep.subr.mxu0 0.0
      %242 = vmatpush1.msra.mxu0 0.0
      %243 = vmatprep.subr.mxu0 0.0
      %244 = vmatpush1.msra.mxu0 0.0
      %245 = vmatprep.subr.mxu0 0.0
      %246 = vmatpush1.msra.mxu0 0.0
      %247 = vmatprep.subr.mxu0 0.0
      %248 = vmatpush1.msra.mxu0 0.0
      %249 = vmatprep.subr.mxu0 0.0
      %250 = vmatpush1.msra.mxu0 0.0
      %251 = vmatprep.subr.mxu0 0.0
      %252 = vmatpush1.msra.mxu0 0.0
      %253 = vmatprep.subr.mxu0 0.0
      %254 = vmatpush1.msra.mxu0 0.0
      %255 = vmatprep.subr.mxu0 0.0
      %256 = vmatpush1.msra.mxu0 0.0
      %257 = vmatprep.subr.mxu0 0.0
      %258 = vmatpush1.msra.mxu0 0.0
      %259 = vmatprep.subr.mxu0 0.0
      %260 = vmatpush1.msra.mxu0 0.0
      %261 = vmatprep.subr.mxu0 0.0
      %262 = vmatpush1.msra.mxu0 0.0
      %263 = vmatprep.subr.mxu0 0.0
      %264 = vmatpush1.msra.mxu0 0.0
      %265 = vmatprep.subr.mxu0 0.0
      %266 = vmatpush1.msra.mxu0 0.0
      %267 = vmatprep.mubr.f32.mxu0 0.0
      %v268 = vand.u32 %v194, 4294901760
      %v269 = vsub.f32 %v194, %v268
      %v270 = vand.u32 %v269, 4294901760
      %v271 = vsub.f32 %v269, %v270
      %v272 = vand.u32 %v271, 4294901760
      %273 = vmatmul.mubr.f32.gmra.mrb[0].mxu0 %v272
      %v274 = vpop.f32.mrb[0].mxu0
      %v275 = vadd.f32 0.0, %v274
      %v276 = vpop.f32.mrb[0].mxu0
      %v277 = vadd.f32 0.0, %v276
      %278 = vdwg.mxu0
      %v279 = vand.u32 %v199, 4294901760
      %v280 = vsub.f32 %v199, %v279
      %v281 = vand.u32 %v280, 4294901760
      %v282 = vsub.f32 %v280, %v281
      %v283 = vand.u32 %v282, 4294901760
      %284 = vmatprep.subr.mxu0 %v283
      %v285 = vand.u32 %v197, 4294901760
      %v286 = vsub.f32 %v197, %v285
      %v287 = vand.u32 %v286, 4294901760
      %v288 = vsub.f32 %v286, %v287
      %v289 = vand.u32 %v288, 4294901760
      %290 = vmatpush1.msra.mxu0 %v289
      %291 = vmatprep.subr.mxu0 0.0
      %292 = vmatpush1.msra.mxu0 0.0
      %293 = vmatprep.subr.mxu0 0.0
      %294 = vmatpush1.msra.mxu0 0.0
      %295 = vmatprep.subr.mxu0 0.0
      %296 = vmatpush1.msra.mxu0 0.0
      %297 = vmatprep.subr.mxu0 0.0
      %298 = vmatpush1.msra.mxu0 0.0
      %299 = vmatprep.subr.mxu0 0.0
      %300 = vmatpush1.msra.mxu0 0.0
      %301 = vmatprep.subr.mxu0 0.0
      %302 = vmatpush1.msra.mxu0 0.0
      %303 = vmatprep.subr.mxu0 0.0
      %304 = vmatpush1.msra.mxu0 0.0
      %305 = vmatprep.subr.mxu0 0.0
      %306 = vmatpush1.msra.mxu0 0.0
      %307 = vmatprep.subr.mxu0 0.0
      %308 = vmatpush1.msra.mxu0 0.0
      %309 = vmatprep.subr.mxu0 0.0
      %310 = vmatpush1.msra.mxu0 0.0
      %311 = vmatprep.subr.mxu0 0.0
      %312 = vmatpush1.msra.mxu0 0.0
      %313 = vmatprep.subr.mxu0 0.0
      %314 = vmatpush1.msra.mxu0 0.0
      %315 = vmatprep.subr.mxu0 0.0
      %316 = vmatpush1.msra.mxu0 0.0
      %317 = vmatprep.subr.mxu0 0.0
      %318 = vmatpush1.msra.mxu0 0.0
      %319 = vmatprep.subr.mxu0 0.0
      %320 = vmatpush1.msra.mxu0 0.0
      %321 = vmatprep.subr.mxu0 0.0
      %322 = vmatpush1.msra.mxu0 0.0
      %323 = vmatprep.subr.mxu0 0.0
      %324 = vmatpush1.msra.mxu0 0.0
      %325 = vmatprep.subr.mxu0 0.0
      %326 = vmatpush1.msra.mxu0 0.0
      %327 = vmatprep.subr.mxu0 0.0
      %328 = vmatpush1.msra.mxu0 0.0
      %329 = vmatprep.subr.mxu0 0.0
      %330 = vmatpush1.msra.mxu0 0.0
      %331 = vmatprep.subr.mxu0 0.0
      %332 = vmatpush1.msra.mxu0 0.0
      %333 = vmatprep.subr.mxu0 0.0
      %334 = vmatpush1.msra.mxu0 0.0
      %335 = vmatprep.subr.mxu0 0.0
      %336 = vmatpush1.msra.mxu0 0.0
      %337 = vmatprep.subr.mxu0 0.0
      %338 = vmatpush1.msra.mxu0 0.0
      %339 = vmatprep.subr.mxu0 0.0
      %340 = vmatpush1.msra.mxu0 0.0
      %341 = vmatprep.subr.mxu0 0.0
      %342 = vmatpush1.msra.mxu0 0.0
      %343 = vmatprep.subr.mxu0 0.0
      %344 = vmatpush1.msra.mxu0 0.0
      %345 = vmatprep.subr.mxu0 0.0
      %346 = vmatpush1.msra.mxu0 0.0
      %347 = vmatprep.subr.mxu0 0.0
      %348 = vmatpush1.msra.mxu0 0.0
      %349 = vmatprep.subr.mxu0 0.0
      %350 = vmatpush1.msra.mxu0 0.0
      %351 = vmatprep.subr.mxu0 0.0
      %352 = vmatpush1.msra.mxu0 0.0
      %353 = vmatprep.mubr.f32.mxu0 0.0
      %v354 = vand.u32 %v194, 4294901760
      %355 = vmatmul.mubr.f32.gmra.mrb[0].mxu0 %v354
      %v356 = vpop.f32.mrb[0].mxu0
      %v357 = vadd.f32 %v275, %v356
      %v358 = vpop.f32.mrb[0].mxu0
      %v359 = vadd.f32 %v277, %v358
      %360 = vdwg.mxu0
      %v361 = vand.u32 %v199, 4294901760
      %v362 = vsub.f32 %v199, %v361
      %363 = vmatprep.subr.mxu0 %v362
      %v364 = vand.u32 %v197, 4294901760
      %v365 = vsub.f32 %v197, %v364
      %366 = vmatpush1.msra.mxu0 %v365
      %367 = vmatprep.subr.mxu0 0.0
      %368 = vmatpush1.msra.mxu0 0.0
      %369 = vmatprep.subr.mxu0 0.0
      %370 = vmatpush1.msra.mxu0 0.0
      %371 = vmatprep.subr.mxu0 0.0
      %372 = vmatpush1.msra.mxu0 0.0
      %373 = vmatprep.subr.mxu0 0.0
      %374 = vmatpush1.msra.mxu0 0.0
      %375 = vmatprep.subr.mxu0 0.0
      %376 = vmatpush1.msra.mxu0 0.0
      %377 = vmatprep.subr.mxu0 0.0
      %378 = vmatpush1.msra.mxu0 0.0
      %379 = vmatprep.subr.mxu0 0.0
      %380 = vmatpush1.msra.mxu0 0.0
      %381 = vmatprep.subr.mxu0 0.0
      %382 = vmatpush1.msra.mxu0 0.0
      %383 = vmatprep.subr.mxu0 0.0
      %384 = vmatpush1.msra.mxu0 0.0
      %385 = vmatprep.subr.mxu0 0.0
      %386 = vmatpush1.msra.mxu0 0.0
      %387 = vmatprep.subr.mxu0 0.0
      %388 = vmatpush1.msra.mxu0 0.0
      %389 = vmatprep.subr.mxu0 0.0
      %390 = vmatpush1.msra.mxu0 0.0
      %391 = vmatprep.subr.mxu0 0.0
      %392 = vmatpush1.msra.mxu0 0.0
      %393 = vmatprep.subr.mxu0 0.0
      %394 = vmatpush1.msra.mxu0 0.0
      %395 = vmatprep.subr.mxu0 0.0
      %396 = vmatpush1.msra.mxu0 0.0
      %397 = vmatprep.subr.mxu0 0.0
      %398 = vmatpush1.msra.mxu0 0.0
      %399 = vmatprep.subr.mxu0 0.0
      %400 = vmatpush1.msra.mxu0 0.0
      %401 = vmatprep.subr.mxu0 0.0
      %402 = vmatpush1.msra.mxu0 0.0
      %403 = vmatprep.subr.mxu0 0.0
      %404 = vmatpush1.msra.mxu0 0.0
      %405 = vmatprep.subr.mxu0 0.0
      %406 = vmatpush1.msra.mxu0 0.0
      %407 = vmatprep.subr.mxu0 0.0
      %408 = vmatpush1.msra.mxu0 0.0
      %409 = vmatprep.subr.mxu0 0.0
      %410 = vmatpush1.msra.mxu0 0.0
      %411 = vmatprep.subr.mxu0 0.0
      %412 = vmatpush1.msra.mxu0 0.0
      %413 = vmatprep.subr.mxu0 0.0
      %414 = vmatpush1.msra.mxu0 0.0
      %415 = vmatprep.subr.mxu0 0.0
      %416 = vmatpush1.msra.mxu0 0.0
      %417 = vmatprep.subr.mxu0 0.0
      %418 = vmatpush1.msra.mxu0 0.0
      %419 = vmatprep.subr.mxu0 0.0
      %420 = vmatpush1.msra.mxu0 0.0
      %421 = vmatprep.subr.mxu0 0.0
      %422 = vmatpush1.msra.mxu0 0.0
      %423 = vmatprep.subr.mxu0 0.0
      %424 = vmatpush1.msra.mxu0 0.0
      %425 = vmatprep.subr.mxu0 0.0
      %426 = vmatpush1.msra.mxu0 0.0
      %427 = vmatprep.subr.mxu0 0.0
      %428 = vmatpush1.msra.mxu0 0.0
      %429 = vmatprep.mubr.f32.mxu0 0.0
      %v430 = vand.u32 %v194, 4294901760
      %v431 = vsub.f32 %v194, %v430
      %432 = vmatmul.mubr.f32.gmra.mrb[0].mxu0 %v431
      %v433 = vpop.f32.mrb[0].mxu0
      %v434 = vadd.f32 %v357, %v433
      %v435 = vpop.f32.mrb[0].mxu0
      %v436 = vadd.f32 %v359, %v435
      %437 = vdwg.mxu0
      %v438 = vand.u32 %v199, 4294901760
      %439 = vmatprep.subr.mxu0 %v438
      %v440 = vand.u32 %v197, 4294901760
      %441 = vmatpush1.msra.mxu0 %v440
      %442 = vmatprep.subr.mxu0 0.0
      %443 = vmatpush1.msra.mxu0 0.0
      %444 = vmatprep.subr.mxu0 0.0
      %445 = vmatpush1.msra.mxu0 0.0
      %446 = vmatprep.subr.mxu0 0.0
      %447 = vmatpush1.msra.mxu0 0.0
      %448 = vmatprep.subr.mxu0 0.0
      %449 = vmatpush1.msra.mxu0 0.0
      %450 = vmatprep.subr.mxu0 0.0
      %451 = vmatpush1.msra.mxu0 0.0
      %452 = vmatprep.subr.mxu0 0.0
      %453 = vmatpush1.msra.mxu0 0.0
      %454 = vmatprep.subr.mxu0 0.0
      %455 = vmatpush1.msra.mxu0 0.0
      %456 = vmatprep.subr.mxu0 0.0
      %457 = vmatpush1.msra.mxu0 0.0
      %458 = vmatprep.subr.mxu0 0.0
      %459 = vmatpush1.msra.mxu0 0.0
      %460 = vmatprep.subr.mxu0 0.0
      %461 = vmatpush1.msra.mxu0 0.0
      %462 = vmatprep.subr.mxu0 0.0
      %463 = vmatpush1.msra.mxu0 0.0
      %464 = vmatprep.subr.mxu0 0.0
      %465 = vmatpush1.msra.mxu0 0.0
      %466 = vmatprep.subr.mxu0 0.0
      %467 = vmatpush1.msra.mxu0 0.0
      %468 = vmatprep.subr.mxu0 0.0
      %469 = vmatpush1.msra.mxu0 0.0
      %470 = vmatprep.subr.mxu0 0.0
      %471 = vmatpush1.msra.mxu0 0.0
      %472 = vmatprep.subr.mxu0 0.0
      %473 = vmatpush1.msra.mxu0 0.0
      %474 = vmatprep.subr.mxu0 0.0
      %475 = vmatpush1.msra.mxu0 0.0
      %476 = vmatprep.subr.mxu0 0.0
      %477 = vmatpush1.msra.mxu0 0.0
      %478 = vmatprep.subr.mxu0 0.0
      %479 = vmatpush1.msra.mxu0 0.0
      %480 = vmatprep.subr.mxu0 0.0
      %481 = vmatpush1.msra.mxu0 0.0
      %482 = vmatprep.subr.mxu0 0.0
      %483 = vmatpush1.msra.mxu0 0.0
      %484 = vmatprep.subr.mxu0 0.0
      %485 = vmatpush1.msra.mxu0 0.0
      %486 = vmatprep.subr.mxu0 0.0
      %487 = vmatpush1.msra.mxu0 0.0
      %488 = vmatprep.subr.mxu0 0.0
      %489 = vmatpush1.msra.mxu0 0.0
      %490 = vmatprep.subr.mxu0 0.0
      %491 = vmatpush1.msra.mxu0 0.0
      %492 = vmatprep.subr.mxu0 0.0
      %493 = vmatpush1.msra.mxu0 0.0
      %494 = vmatprep.subr.mxu0 0.0
      %495 = vmatpush1.msra.mxu0 0.0
      %496 = vmatprep.subr.mxu0 0.0
      %497 = vmatpush1.msra.mxu0 0.0
      %498 = vmatprep.subr.mxu0 0.0
      %499 = vmatpush1.msra.mxu0 0.0
      %500 = vmatprep.subr.mxu0 0.0
      %501 = vmatpush1.msra.mxu0 0.0
      %502 = vmatprep.subr.mxu0 0.0
      %503 = vmatpush1.msra.mxu0 0.0
      %504 = vmatprep.mubr.f32.mxu0 0.0
      %v505 = vand.u32 %v194, 4294901760
      %v506 = vsub.f32 %v194, %v505
      %v507 = vand.u32 %v506, 4294901760
      %508 = vmatmul.mubr.f32.gmra.mrb[0].mxu0 %v507
      %v509 = vpop.f32.mrb[0].mxu0
      %v510 = vadd.f32 %v434, %v509
      %v511 = vpop.f32.mrb[0].mxu0
      %v512 = vadd.f32 %v436, %v511
      %513 = vdwg.mxu0
      %v514 = vand.u32 %v199, 4294901760
      %v515 = vsub.f32 %v199, %v514
      %v516 = vand.u32 %v515, 4294901760
      %517 = vmatprep.subr.mxu0 %v516
      %v518 = vand.u32 %v197, 4294901760
      %v519 = vsub.f32 %v197, %v518
      %v520 = vand.u32 %v519, 4294901760
      %521 = vmatpush1.msra.mxu0 %v520
      %522 = vmatprep.subr.mxu0 0.0
      %523 = vmatpush1.msra.mxu0 0.0
      %524 = vmatprep.subr.mxu0 0.0
      %525 = vmatpush1.msra.mxu0 0.0
      %526 = vmatprep.subr.mxu0 0.0
      %527 = vmatpush1.msra.mxu0 0.0
      %528 = vmatprep.subr.mxu0 0.0
      %529 = vmatpush1.msra.mxu0 0.0
      %530 = vmatprep.subr.mxu0 0.0
      %531 = vmatpush1.msra.mxu0 0.0
      %532 = vmatprep.subr.mxu0 0.0
      %533 = vmatpush1.msra.mxu0 0.0
      %534 = vmatprep.subr.mxu0 0.0
      %535 = vmatpush1.msra.mxu0 0.0
      %536 = vmatprep.subr.mxu0 0.0
      %537 = vmatpush1.msra.mxu0 0.0
      %538 = vmatprep.subr.mxu0 0.0
      %539 = vmatpush1.msra.mxu0 0.0
      %540 = vmatprep.subr.mxu0 0.0
      %541 = vmatpush1.msra.mxu0 0.0
      %542 = vmatprep.subr.mxu0 0.0
      %543 = vmatpush1.msra.mxu0 0.0
      %544 = vmatprep.subr.mxu0 0.0
      %545 = vmatpush1.msra.mxu0 0.0
      %546 = vmatprep.subr.mxu0 0.0
      %547 = vmatpush1.msra.mxu0 0.0
      %548 = vmatprep.subr.mxu0 0.0
      %549 = vmatpush1.msra.mxu0 0.0
      %550 = vmatprep.subr.mxu0 0.0
      %551 = vmatpush1.msra.mxu0 0.0
      %552 = vmatprep.subr.mxu0 0.0
      %553 = vmatpush1.msra.mxu0 0.0
      %554 = vmatprep.subr.mxu0 0.0
      %555 = vmatpush1.msra.mxu0 0.0
      %556 = vmatprep.subr.mxu0 0.0
      %557 = vmatpush1.msra.mxu0 0.0
      %558 = vmatprep.subr.mxu0 0.0
      %559 = vmatpush1.msra.mxu0 0.0
      %560 = vmatprep.subr.mxu0 0.0
      %561 = vmatpush1.msra.mxu0 0.0
      %562 = vmatprep.subr.mxu0 0.0
      %563 = vmatpush1.msra.mxu0 0.0
      %564 = vmatprep.subr.mxu0 0.0
      %565 = vmatpush1.msra.mxu0 0.0
      %566 = vmatprep.subr.mxu0 0.0
      %567 = vmatpush1.msra.mxu0 0.0
      %568 = vmatprep.subr.mxu0 0.0
      %569 = vmatpush1.msra.mxu0 0.0
      %570 = vmatprep.subr.mxu0 0.0
      %571 = vmatpush1.msra.mxu0 0.0
      %572 = vmatprep.subr.mxu0 0.0
      %573 = vmatpush1.msra.mxu0 0.0
      %574 = vmatprep.subr.mxu0 0.0
      %575 = vmatpush1.msra.mxu0 0.0
      %576 = vmatprep.subr.mxu0 0.0
      %577 = vmatpush1.msra.mxu0 0.0
      %578 = vmatprep.subr.mxu0 0.0
      %579 = vmatpush1.msra.mxu0 0.0
      %580 = vmatprep.subr.mxu0 0.0
      %581 = vmatpush1.msra.mxu0 0.0
      %582 = vmatprep.subr.mxu0 0.0
      %583 = vmatpush1.msra.mxu0 0.0
      %584 = vmatprep.mubr.f32.mxu0 0.0
      %v585 = vand.u32 %v194, 4294901760
      %586 = vmatmul.mubr.f32.gmra.mrb[0].mxu0 %v585
      %v587 = vpop.f32.mrb[0].mxu0
      %v588 = vadd.f32 %v510, %v587
      %v589 = vpop.f32.mrb[0].mxu0
      %v590 = vadd.f32 %v512, %v589
      %591 = vdwg.mxu0
      %v592 = vand.u32 %v199, 4294901760
      %593 = vmatprep.subr.mxu0 %v592
      %v594 = vand.u32 %v197, 4294901760
      %595 = vmatpush1.msra.mxu0 %v594
      %596 = vmatprep.subr.mxu0 0.0
      %597 = vmatpush1.msra.mxu0 0.0
      %598 = vmatprep.subr.mxu0 0.0
      %599 = vmatpush1.msra.mxu0 0.0
      %600 = vmatprep.subr.mxu0 0.0
      %601 = vmatpush1.msra.mxu0 0.0
      %602 = vmatprep.subr.mxu0 0.0
      %603 = vmatpush1.msra.mxu0 0.0
      %604 = vmatprep.subr.mxu0 0.0
      %605 = vmatpush1.msra.mxu0 0.0
      %606 = vmatprep.subr.mxu0 0.0
      %607 = vmatpush1.msra.mxu0 0.0
      %608 = vmatprep.subr.mxu0 0.0
      %609 = vmatpush1.msra.mxu0 0.0
      %610 = vmatprep.subr.mxu0 0.0
      %611 = vmatpush1.msra.mxu0 0.0
      %612 = vmatprep.subr.mxu0 0.0
      %613 = vmatpush1.msra.mxu0 0.0
      %614 = vmatprep.subr.mxu0 0.0
      %615 = vmatpush1.msra.mxu0 0.0
      %616 = vmatprep.subr.mxu0 0.0
      %617 = vmatpush1.msra.mxu0 0.0
      %618 = vmatprep.subr.mxu0 0.0
      %619 = vmatpush1.msra.mxu0 0.0
      %620 = vmatprep.subr.mxu0 0.0
      %621 = vmatpush1.msra.mxu0 0.0
      %622 = vmatprep.subr.mxu0 0.0
      %623 = vmatpush1.msra.mxu0 0.0
      %624 = vmatprep.subr.mxu0 0.0
      %625 = vmatpush1.msra.mxu0 0.0
      %626 = vmatprep.subr.mxu0 0.0
      %627 = vmatpush1.msra.mxu0 0.0
      %628 = vmatprep.subr.mxu0 0.0
      %629 = vmatpush1.msra.mxu0 0.0
      %630 = vmatprep.subr.mxu0 0.0
      %631 = vmatpush1.msra.mxu0 0.0
      %632 = vmatprep.subr.mxu0 0.0
      %633 = vmatpush1.msra.mxu0 0.0
      %634 = vmatprep.subr.mxu0 0.0
      %635 = vmatpush1.msra.mxu0 0.0
      %636 = vmatprep.subr.mxu0 0.0
      %637 = vmatpush1.msra.mxu0 0.0
      %638 = vmatprep.subr.mxu0 0.0
      %639 = vmatpush1.msra.mxu0 0.0
      %640 = vmatprep.subr.mxu0 0.0
      %641 = vmatpush1.msra.mxu0 0.0
      %642 = vmatprep.subr.mxu0 0.0
      %643 = vmatpush1.msra.mxu0 0.0
      %644 = vmatprep.subr.mxu0 0.0
      %645 = vmatpush1.msra.mxu0 0.0
      %646 = vmatprep.subr.mxu0 0.0
      %647 = vmatpush1.msra.mxu0 0.0
      %648 = vmatprep.subr.mxu0 0.0
      %649 = vmatpush1.msra.mxu0 0.0
      %650 = vmatprep.subr.mxu0 0.0
      %651 = vmatpush1.msra.mxu0 0.0
      %652 = vmatprep.subr.mxu0 0.0
      %653 = vmatpush1.msra.mxu0 0.0
      %654 = vmatprep.subr.mxu0 0.0
      %655 = vmatpush1.msra.mxu0 0.0
      %656 = vmatprep.subr.mxu0 0.0
      %657 = vmatpush1.msra.mxu0 0.0
      %658 = vmatprep.mubr.f32.mxu0 0.0
      %v659 = vand.u32 %v194, 4294901760
      %660 = vmatmul.mubr.f32.gmra.mrb[0].mxu0 %v659
      %v661 = vpop.f32.mrb[0].mxu0
      %v662 = vadd.f32 %v588, %v661
      %v663 = vpop.f32.mrb[0].mxu0
      %v664 = vadd.f32 %v590, %v663
      %665 = vdwg.mxu0
      %v667 = vsel %vm192, %v181, 0
      %v669 = vsel %vm196, %v180, 0
      %v671 = vsel %vm196, %v185, 0
      %v673 = vand.u32 %v671, 4294901760
      %674 = vmatprep.subr.mxu0 %v673
      %v675 = vand.u32 %v669, 4294901760
      %676 = vmatpush1.msra.mxu0 %v675
      %677 = vmatprep.subr.mxu0 0.0
      %678 = vmatpush1.msra.mxu0 0.0
      %679 = vmatprep.subr.mxu0 0.0
      %680 = vmatpush1.msra.mxu0 0.0
      %681 = vmatprep.subr.mxu0 0.0
      %682 = vmatpush1.msra.mxu0 0.0
      %683 = vmatprep.subr.mxu0 0.0
      %684 = vmatpush1.msra.mxu0 0.0
      %685 = vmatprep.subr.mxu0 0.0
      %686 = vmatpush1.msra.mxu0 0.0
      %687 = vmatprep.subr.mxu0 0.0
      %688 = vmatpush1.msra.mxu0 0.0
      %689 = vmatprep.subr.mxu0 0.0
      %690 = vmatpush1.msra.mxu0 0.0
      %691 = vmatprep.subr.mxu0 0.0
      %692 = vmatpush1.msra.mxu0 0.0
      %693 = vmatprep.subr.mxu0 0.0
      %694 = vmatpush1.msra.mxu0 0.0
      %695 = vmatprep.subr.mxu0 0.0
      %696 = vmatpush1.msra.mxu0 0.0
      %697 = vmatprep.subr.mxu0 0.0
      %698 = vmatpush1.msra.mxu0 0.0
      %699 = vmatprep.subr.mxu0 0.0
      %700 = vmatpush1.msra.mxu0 0.0
      %701 = vmatprep.subr.mxu0 0.0
      %702 = vmatpush1.msra.mxu0 0.0
      %703 = vmatprep.subr.mxu0 0.0
      %704 = vmatpush1.msra.mxu0 0.0
      %705 = vmatprep.subr.mxu0 0.0
      %706 = vmatpush1.msra.mxu0 0.0
      %707 = vmatprep.subr.mxu0 0.0
      %708 = vmatpush1.msra.mxu0 0.0
      %709 = vmatprep.subr.mxu0 0.0
      %710 = vmatpush1.msra.mxu0 0.0
      %711 = vmatprep.subr.mxu0 0.0
      %712 = vmatpush1.msra.mxu0 0.0
      %713 = vmatprep.subr.mxu0 0.0
      %714 = vmatpush1.msra.mxu0 0.0
      %715 = vmatprep.subr.mxu0 0.0
      %716 = vmatpush1.msra.mxu0 0.0
      %717 = vmatprep.subr.mxu0 0.0
      %718 = vmatpush1.msra.mxu0 0.0
      %719 = vmatprep.subr.mxu0 0.0
      %720 = vmatpush1.msra.mxu0 0.0
      %721 = vmatprep.subr.mxu0 0.0
      %722 = vmatpush1.msra.mxu0 0.0
      %723 = vmatprep.subr.mxu0 0.0
      %724 = vmatpush1.msra.mxu0 0.0
      %725 = vmatprep.subr.mxu0 0.0
      %726 = vmatpush1.msra.mxu0 0.0
      %727 = vmatprep.subr.mxu0 0.0
      %728 = vmatpush1.msra.mxu0 0.0
      %729 = vmatprep.subr.mxu0 0.0
      %730 = vmatpush1.msra.mxu0 0.0
      %731 = vmatprep.subr.mxu0 0.0
      %732 = vmatpush1.msra.mxu0 0.0
      %733 = vmatprep.subr.mxu0 0.0
      %734 = vmatpush1.msra.mxu0 0.0
      %735 = vmatprep.subr.mxu0 0.0
      %736 = vmatpush1.msra.mxu0 0.0
      %737 = vmatprep.subr.mxu0 0.0
      %738 = vmatpush1.msra.mxu0 0.0
      %739 = vmatprep.mubr.f32.mxu0 0.0
      %v740 = vand.u32 %v667, 4294901760
      %v741 = vsub.f32 %v667, %v740
      %v742 = vand.u32 %v741, 4294901760
      %v743 = vsub.f32 %v741, %v742
      %v744 = vand.u32 %v743, 4294901760
      %745 = vmatmul.mubr.f32.gmra.mrb[0].mxu0 %v744
      %v746 = vpop.f32.mrb[0].mxu0
      %v747 = vadd.f32 %v662, %v746
      %v748 = vpop.f32.mrb[0].mxu0
      %v749 = vadd.f32 %v664, %v748
      %750 = vdwg.mxu0
      %v751 = vand.u32 %v671, 4294901760
      %v752 = vsub.f32 %v671, %v751
      %v753 = vand.u32 %v752, 4294901760
      %v754 = vsub.f32 %v752, %v753
      %v755 = vand.u32 %v754, 4294901760
      %756 = vmatprep.subr.mxu0 %v755
      %v757 = vand.u32 %v669, 4294901760
      %v758 = vsub.f32 %v669, %v757
      %v759 = vand.u32 %v758, 4294901760
      %v760 = vsub.f32 %v758, %v759
      %v761 = vand.u32 %v760, 4294901760
      %762 = vmatpush1.msra.mxu0 %v761
      %763 = vmatprep.subr.mxu0 0.0
      %764 = vmatpush1.msra.mxu0 0.0
      %765 = vmatprep.subr.mxu0 0.0
      %766 = vmatpush1.msra.mxu0 0.0
      %767 = vmatprep.subr.mxu0 0.0
      %768 = vmatpush1.msra.mxu0 0.0
      %769 = vmatprep.subr.mxu0 0.0
      %770 = vmatpush1.msra.mxu0 0.0
      %771 = vmatprep.subr.mxu0 0.0
      %772 = vmatpush1.msra.mxu0 0.0
      %773 = vmatprep.subr.mxu0 0.0
      %774 = vmatpush1.msra.mxu0 0.0
      %775 = vmatprep.subr.mxu0 0.0
      %776 = vmatpush1.msra.mxu0 0.0
      %777 = vmatprep.subr.mxu0 0.0
      %778 = vmatpush1.msra.mxu0 0.0
      %779 = vmatprep.subr.mxu0 0.0
      %780 = vmatpush1.msra.mxu0 0.0
      %781 = vmatprep.subr.mxu0 0.0
      %782 = vmatpush1.msra.mxu0 0.0
      %783 = vmatprep.subr.mxu0 0.0
      %784 = vmatpush1.msra.mxu0 0.0
      %785 = vmatprep.subr.mxu0 0.0
      %786 = vmatpush1.msra.mxu0 0.0
      %787 = vmatprep.subr.mxu0 0.0
      %788 = vmatpush1.msra.mxu0 0.0
      %789 = vmatprep.subr.mxu0 0.0
      %790 = vmatpush1.msra.mxu0 0.0
      %791 = vmatprep.subr.mxu0 0.0
      %792 = vmatpush1.msra.mxu0 0.0
      %793 = vmatprep.subr.mxu0 0.0
      %794 = vmatpush1.msra.mxu0 0.0
      %795 = vmatprep.subr.mxu0 0.0
      %796 = vmatpush1.msra.mxu0 0.0
      %797 = vmatprep.subr.mxu0 0.0
      %798 = vmatpush1.msra.mxu0 0.0
      %799 = vmatprep.subr.mxu0 0.0
      %800 = vmatpush1.msra.mxu0 0.0
      %801 = vmatprep.subr.mxu0 0.0
      %802 = vmatpush1.msra.mxu0 0.0
      %803 = vmatprep.subr.mxu0 0.0
      %804 = vmatpush1.msra.mxu0 0.0
      %805 = vmatprep.subr.mxu0 0.0
      %806 = vmatpush1.msra.mxu0 0.0
      %807 = vmatprep.subr.mxu0 0.0
      %808 = vmatpush1.msra.mxu0 0.0
      %809 = vmatprep.subr.mxu0 0.0
      %810 = vmatpush1.msra.mxu0 0.0
      %811 = vmatprep.subr.mxu0 0.0
      %812 = vmatpush1.msra.mxu0 0.0
      %813 = vmatprep.subr.mxu0 0.0
      %814 = vmatpush1.msra.mxu0 0.0
      %815 = vmatprep.subr.mxu0 0.0
      %816 = vmatpush1.msra.mxu0 0.0
      %817 = vmatprep.subr.mxu0 0.0
      %818 = vmatpush1.msra.mxu0 0.0
      %819 = vmatprep.subr.mxu0 0.0
      %820 = vmatpush1.msra.mxu0 0.0
      %821 = vmatprep.subr.mxu0 0.0
      %822 = vmatpush1.msra.mxu0 0.0
      %823 = vmatprep.subr.mxu0 0.0
      %824 = vmatpush1.msra.mxu0 0.0
      %825 = vmatprep.mubr.f32.mxu0 0.0
      %v826 = vand.u32 %v667, 4294901760
      %827 = vmatmul.mubr.f32.gmra.mrb[0].mxu0 %v826
      %v828 = vpop.f32.mrb[0].mxu0
      %v829 = vadd.f32 %v747, %v828
      %v830 = vpop.f32.mrb[0].mxu0
      %v831 = vadd.f32 %v749, %v830
      %832 = vdwg.mxu0
      %v833 = vand.u32 %v671, 4294901760
      %v834 = vsub.f32 %v671, %v833
      %835 = vmatprep.subr.mxu0 %v834
      %v836 = vand.u32 %v669, 4294901760
      %v837 = vsub.f32 %v669, %v836
      %838 = vmatpush1.msra.mxu0 %v837
      %839 = vmatprep.subr.mxu0 0.0
      %840 = vmatpush1.msra.mxu0 0.0
      %841 = vmatprep.subr.mxu0 0.0
      %842 = vmatpush1.msra.mxu0 0.0
      %843 = vmatprep.subr.mxu0 0.0
      %844 = vmatpush1.msra.mxu0 0.0
      %845 = vmatprep.subr.mxu0 0.0
      %846 = vmatpush1.msra.mxu0 0.0
      %847 = vmatprep.subr.mxu0 0.0
      %848 = vmatpush1.msra.mxu0 0.0
      %849 = vmatprep.subr.mxu0 0.0
      %850 = vmatpush1.msra.mxu0 0.0
      %851 = vmatprep.subr.mxu0 0.0
      %852 = vmatpush1.msra.mxu0 0.0
      %853 = vmatprep.subr.mxu0 0.0
      %854 = vmatpush1.msra.mxu0 0.0
      %855 = vmatprep.subr.mxu0 0.0
      %856 = vmatpush1.msra.mxu0 0.0
      %857 = vmatprep.subr.mxu0 0.0
      %858 = vmatpush1.msra.mxu0 0.0
      %859 = vmatprep.subr.mxu0 0.0
      %860 = vmatpush1.msra.mxu0 0.0
      %861 = vmatprep.subr.mxu0 0.0
      %862 = vmatpush1.msra.mxu0 0.0
      %863 = vmatprep.subr.mxu0 0.0
      %864 = vmatpush1.msra.mxu0 0.0
      %865 = vmatprep.subr.mxu0 0.0
      %866 = vmatpush1.msra.mxu0 0.0
      %867 = vmatprep.subr.mxu0 0.0
      %868 = vmatpush1.msra.mxu0 0.0
      %869 = vmatprep.subr.mxu0 0.0
      %870 = vmatpush1.msra.mxu0 0.0
      %871 = vmatprep.subr.mxu0 0.0
      %872 = vmatpush1.msra.mxu0 0.0
      %873 = vmatprep.subr.mxu0 0.0
      %874 = vmatpush1.msra.mxu0 0.0
      %875 = vmatprep.subr.mxu0 0.0
      %876 = vmatpush1.msra.mxu0 0.0
      %877 = vmatprep.subr.mxu0 0.0
      %878 = vmatpush1.msra.mxu0 0.0
      %879 = vmatprep.subr.mxu0 0.0
      %880 = vmatpush1.msra.mxu0 0.0
      %881 = vmatprep.subr.mxu0 0.0
      %882 = vmatpush1.msra.mxu0 0.0
      %883 = vmatprep.subr.mxu0 0.0
      %884 = vmatpush1.msra.mxu0 0.0
      %885 = vmatprep.subr.mxu0 0.0
      %886 = vmatpush1.msra.mxu0 0.0
      %887 = vmatprep.subr.mxu0 0.0
      %888 = vmatpush1.msra.mxu0 0.0
      %889 = vmatprep.subr.mxu0 0.0
      %890 = vmatpush1.msra.mxu0 0.0
      %891 = vmatprep.subr.mxu0 0.0
      %892 = vmatpush1.msra.mxu0 0.0
      %893 = vmatprep.subr.mxu0 0.0
      %894 = vmatpush1.msra.mxu0 0.0
      %895 = vmatprep.subr.mxu0 0.0
      %896 = vmatpush1.msra.mxu0 0.0
      %897 = vmatprep.subr.mxu0 0.0
      %898 = vmatpush1.msra.mxu0 0.0
      %899 = vmatprep.subr.mxu0 0.0
      %900 = vmatpush1.msra.mxu0 0.0
      %901 = vmatprep.mubr.f32.mxu0 0.0
      %v902 = vand.u32 %v667, 4294901760
      %v903 = vsub.f32 %v667, %v902
      %904 = vmatmul.mubr.f32.gmra.mrb[0].mxu0 %v903
      %v905 = vpop.f32.mrb[0].mxu0
      %v906 = vadd.f32 %v829, %v905
      %v907 = vpop.f32.mrb[0].mxu0
      %v908 = vadd.f32 %v831, %v907
      %909 = vdwg.mxu0
      %v910 = vand.u32 %v671, 4294901760
      %911 = vmatprep.subr.mxu0 %v910
      %v912 = vand.u32 %v669, 4294901760
      %913 = vmatpush1.msra.mxu0 %v912
      %914 = vmatprep.subr.mxu0 0.0
      %915 = vmatpush1.msra.mxu0 0.0
      %916 = vmatprep.subr.mxu0 0.0
      %917 = vmatpush1.msra.mxu0 0.0
      %918 = vmatprep.subr.mxu0 0.0
      %919 = vmatpush1.msra.mxu0 0.0
      %920 = vmatprep.subr.mxu0 0.0
      %921 = vmatpush1.msra.mxu0 0.0
      %922 = vmatprep.subr.mxu0 0.0
      %923 = vmatpush1.msra.mxu0 0.0
      %924 = vmatprep.subr.mxu0 0.0
      %925 = vmatpush1.msra.mxu0 0.0
      %926 = vmatprep.subr.mxu0 0.0
      %927 = vmatpush1.msra.mxu0 0.0
      %928 = vmatprep.subr.mxu0 0.0
      %929 = vmatpush1.msra.mxu0 0.0
      %930 = vmatprep.subr.mxu0 0.0
      %931 = vmatpush1.msra.mxu0 0.0
      %932 = vmatprep.subr.mxu0 0.0
      %933 = vmatpush1.msra.mxu0 0.0
      %934 = vmatprep.subr.mxu0 0.0
      %935 = vmatpush1.msra.mxu0 0.0
      %936 = vmatprep.subr.mxu0 0.0
      %937 = vmatpush1.msra.mxu0 0.0
      %938 = vmatprep.subr.mxu0 0.0
      %939 = vmatpush1.msra.mxu0 0.0
      %940 = vmatprep.subr.mxu0 0.0
      %941 = vmatpush1.msra.mxu0 0.0
      %942 = vmatprep.subr.mxu0 0.0
      %943 = vmatpush1.msra.mxu0 0.0
      %944 = vmatprep.subr.mxu0 0.0
      %945 = vmatpush1.msra.mxu0 0.0
      %946 = vmatprep.subr.mxu0 0.0
      %947 = vmatpush1.msra.mxu0 0.0
      %948 = vmatprep.subr.mxu0 0.0
      %949 = vmatpush1.msra.mxu0 0.0
      %950 = vmatprep.subr.mxu0 0.0
      %951 = vmatpush1.msra.mxu0 0.0
      %952 = vmatprep.subr.mxu0 0.0
      %953 = vmatpush1.msra.mxu0 0.0
      %954 = vmatprep.subr.mxu0 0.0
      %955 = vmatpush1.msra.mxu0 0.0
      %956 = vmatprep.subr.mxu0 0.0
      %957 = vmatpush1.msra.mxu0 0.0
      %958 = vmatprep.subr.mxu0 0.0
      %959 = vmatpush1.msra.mxu0 0.0
      %960 = vmatprep.subr.mxu0 0.0
      %961 = vmatpush1.msra.mxu0 0.0
      %962 = vmatprep.subr.mxu0 0.0
      %963 = vmatpush1.msra.mxu0 0.0
      %964 = vmatprep.subr.mxu0 0.0
      %965 = vmatpush1.msra.mxu0 0.0
      %966 = vmatprep.subr.mxu0 0.0
      %967 = vmatpush1.msra.mxu0 0.0
      %968 = vmatprep.subr.mxu0 0.0
      %969 = vmatpush1.msra.mxu0 0.0
      %970 = vmatprep.subr.mxu0 0.0
      %971 = vmatpush1.msra.mxu0 0.0
      %972 = vmatprep.subr.mxu0 0.0
      %973 = vmatpush1.msra.mxu0 0.0
      %974 = vmatprep.subr.mxu0 0.0
      %975 = vmatpush1.msra.mxu0 0.0
      %976 = vmatprep.mubr.f32.mxu0 0.0
      %v977 = vand.u32 %v667, 4294901760
      %v978 = vsub.f32 %v667, %v977
      %v979 = vand.u32 %v978, 4294901760
      %980 = vmatmul.mubr.f32.gmra.mrb[0].mxu0 %v979
      %v981 = vpop.f32.mrb[0].mxu0
      %v982 = vadd.f32 %v906, %v981
      %v983 = vpop.f32.mrb[0].mxu0
      %v984 = vadd.f32 %v908, %v983
      %985 = vdwg.mxu0
      %v986 = vand.u32 %v671, 4294901760
      %v987 = vsub.f32 %v671, %v986
      %v988 = vand.u32 %v987, 4294901760
      %989 = vmatprep.subr.mxu0 %v988
      %v990 = vand.u32 %v669, 4294901760
      %v991 = vsub.f32 %v669, %v990
      %v992 = vand.u32 %v991, 4294901760
      %993 = vmatpush1.msra.mxu0 %v992
      %994 = vmatprep.subr.mxu0 0.0
      %995 = vmatpush1.msra.mxu0 0.0
      %996 = vmatprep.subr.mxu0 0.0
      %997 = vmatpush1.msra.mxu0 0.0
      %998 = vmatprep.subr.mxu0 0.0
      %999 = vmatpush1.msra.mxu0 0.0
      %1000 = vmatprep.subr.mxu0 0.0
      %1001 = vmatpush1.msra.mxu0 0.0
      %1002 = vmatprep.subr.mxu0 0.0
      %1003 = vmatpush1.msra.mxu0 0.0
      %1004 = vmatprep.subr.mxu0 0.0
      %1005 = vmatpush1.msra.mxu0 0.0
      %1006 = vmatprep.subr.mxu0 0.0
      %1007 = vmatpush1.msra.mxu0 0.0
      %1008 = vmatprep.subr.mxu0 0.0
      %1009 = vmatpush1.msra.mxu0 0.0
      %1010 = vmatprep.subr.mxu0 0.0
      %1011 = vmatpush1.msra.mxu0 0.0
      %1012 = vmatprep.subr.mxu0 0.0
      %1013 = vmatpush1.msra.mxu0 0.0
      %1014 = vmatprep.subr.mxu0 0.0
      %1015 = vmatpush1.msra.mxu0 0.0
      %1016 = vmatprep.subr.mxu0 0.0
      %1017 = vmatpush1.msra.mxu0 0.0
      %1018 = vmatprep.subr.mxu0 0.0
      %1019 = vmatpush1.msra.mxu0 0.0
      %1020 = vmatprep.subr.mxu0 0.0
      %1021 = vmatpush1.msra.mxu0 0.0
      %1022 = vmatprep.subr.mxu0 0.0
      %1023 = vmatpush1.msra.mxu0 0.0
      %1024 = vmatprep.subr.mxu0 0.0
      %1025 = vmatpush1.msra.mxu0 0.0
      %1026 = vmatprep.subr.mxu0 0.0
      %1027 = vmatpush1.msra.mxu0 0.0
      %1028 = vmatprep.subr.mxu0 0.0
      %1029 = vmatpush1.msra.mxu0 0.0
      %1030 = vmatprep.subr.mxu0 0.0
      %1031 = vmatpush1.msra.mxu0 0.0
      %1032 = vmatprep.subr.mxu0 0.0
      %1033 = vmatpush1.msra.mxu0 0.0
      %1034 = vmatprep.subr.mxu0 0.0
      %1035 = vmatpush1.msra.mxu0 0.0
      %1036 = vmatprep.subr.mxu0 0.0
      %1037 = vmatpush1.msra.mxu0 0.0
      %1038 = vmatprep.subr.mxu0 0.0
      %1039 = vmatpush1.msra.mxu0 0.0
      %1040 = vmatprep.subr.mxu0 0.0
      %1041 = vmatpush1.msra.mxu0 0.0
      %1042 = vmatprep.subr.mxu0 0.0
      %1043 = vmatpush1.msra.mxu0 0.0
      %1044 = vmatprep.subr.mxu0 0.0
      %1045 = vmatpush1.msra.mxu0 0.0
      %1046 = vmatprep.subr.mxu0 0.0
      %1047 = vmatpush1.msra.mxu0 0.0
      %1048 = vmatprep.subr.mxu0 0.0
      %1049 = vmatpush1.msra.mxu0 0.0
      %1050 = vmatprep.subr.mxu0 0.0
      %1051 = vmatpush1.msra.mxu0 0.0
      %1052 = vmatprep.subr.mxu0 0.0
      %1053 = vmatpush1.msra.mxu0 0.0
      %1054 = vmatprep.subr.mxu0 0.0
      %1055 = vmatpush1.msra.mxu0 0.0
      %1056 = vmatprep.mubr.f32.mxu0 0.0
      %v1057 = vand.u32 %v667, 4294901760
      %1058 = vmatmul.mubr.f32.gmra.mrb[0].mxu0 %v1057
      %v1059 = vpop.f32.mrb[0].mxu0
      %v1060 = vadd.f32 %v982, %v1059
      %v1061 = vpop.f32.mrb[0].mxu0
      %v1062 = vadd.f32 %v984, %v1061
      %1063 = vdwg.mxu0
      %v1064 = vand.u32 %v671, 4294901760
      %1065 = vmatprep.subr.mxu0 %v1064
      %v1066 = vand.u32 %v669, 4294901760
      %1067 = vmatpush1.msra.mxu0 %v1066
      %1068 = vmatprep.subr.mxu0 0.0
      %1069 = vmatpush1.msra.mxu0 0.0
      %1070 = vmatprep.subr.mxu0 0.0
      %1071 = vmatpush1.msra.mxu0 0.0
      %1072 = vmatprep.subr.mxu0 0.0
      %1073 = vmatpush1.msra.mxu0 0.0
      %1074 = vmatprep.subr.mxu0 0.0
      %1075 = vmatpush1.msra.mxu0 0.0
      %1076 = vmatprep.subr.mxu0 0.0
      %1077 = vmatpush1.msra.mxu0 0.0
      %1078 = vmatprep.subr.mxu0 0.0
      %1079 = vmatpush1.msra.mxu0 0.0
      %1080 = vmatprep.subr.mxu0 0.0
      %1081 = vmatpush1.msra.mxu0 0.0
      %1082 = vmatprep.subr.mxu0 0.0
      %1083 = vmatpush1.msra.mxu0 0.0
      %1084 = vmatprep.subr.mxu0 0.0
      %1085 = vmatpush1.msra.mxu0 0.0
      %1086 = vmatprep.subr.mxu0 0.0
      %1087 = vmatpush1.msra.mxu0 0.0
      %1088 = vmatprep.subr.mxu0 0.0
      %1089 = vmatpush1.msra.mxu0 0.0
      %1090 = vmatprep.subr.mxu0 0.0
      %1091 = vmatpush1.msra.mxu0 0.0
      %1092 = vmatprep.subr.mxu0 0.0
      %1093 = vmatpush1.msra.mxu0 0.0
      %1094 = vmatprep.subr.mxu0 0.0
      %1095 = vmatpush1.msra.mxu0 0.0
      %1096 = vmatprep.subr.mxu0 0.0
      %1097 = vmatpush1.msra.mxu0 0.0
      %1098 = vmatprep.subr.mxu0 0.0
      %1099 = vmatpush1.msra.mxu0 0.0
      %1100 = vmatprep.subr.mxu0 0.0
      %1101 = vmatpush1.msra.mxu0 0.0
      %1102 = vmatprep.subr.mxu0 0.0
      %1103 = vmatpush1.msra.mxu0 0.0
      %1104 = vmatprep.subr.mxu0 0.0
      %1105 = vmatpush1.msra.mxu0 0.0
      %1106 = vmatprep.subr.mxu0 0.0
      %1107 = vmatpush1.msra.mxu0 0.0
      %1108 = vmatprep.subr.mxu0 0.0
      %1109 = vmatpush1.msra.mxu0 0.0
      %1110 = vmatprep.subr.mxu0 0.0
      %1111 = vmatpush1.msra.mxu0 0.0
      %1112 = vmatprep.subr.mxu0 0.0
      %1113 = vmatpush1.msra.mxu0 0.0
      %1114 = vmatprep.subr.mxu0 0.0
      %1115 = vmatpush1.msra.mxu0 0.0
      %1116 = vmatprep.subr.mxu0 0.0
      %1117 = vmatpush1.msra.mxu0 0.0
      %1118 = vmatprep.subr.mxu0 0.0
      %1119 = vmatpush1.msra.mxu0 0.0
      %1120 = vmatprep.subr.mxu0 0.0
      %1121 = vmatpush1.msra.mxu0 0.0
      %1122 = vmatprep.subr.mxu0 0.0
      %1123 = vmatpush1.msra.mxu0 0.0
      %1124 = vmatprep.subr.mxu0 0.0
      %1125 = vmatpush1.msra.mxu0 0.0
      %1126 = vmatprep.subr.mxu0 0.0
      %1127 = vmatpush1.msra.mxu0 0.0
      %1128 = vmatprep.subr.mxu0 0.0
      %1129 = vmatpush1.msra.mxu0 0.0
      %1130 = vmatprep.mubr.f32.mxu0 0.0
      %v1131 = vand.u32 %v667, 4294901760
      %1132 = vmatmul.mubr.f32.gmra.mrb[0].mxu0 %v1131
      %v1133 = vpop.f32.mrb[0].mxu0
      %v1134 = vadd.f32 %v1060, %v1133
      %v1135 = vpop.f32.mrb[0].mxu0
      %v1136 = vadd.f32 %v1062, %v1135
      %1137 = vdwg.mxu0
      %s1138 = scalar_lea.vmem %s1, 16
      %v1139 = vld [vmem:[%s1138] sm:$0xff]
      %1140 = vrot.lane.b32.xlu0 %v180, 126
      %v1141 = vpop.permute.xlu0 %1140
      %1142 = vrot.lane.b32.xlu0 %v185, 126
      %v1143 = vpop.permute.xlu0 %1142
      %vm1144 = vcmask 1031168
      %v1145 = vsel %vm1144, %v1141, %v1143
      %v1147 = vsel %vm192, %v1139, 0
      %v1149 = vsel %vm196, %v1145, 0
      %v1151 = vsel %vm196, %v1143, 0
      %v1153 = vand.u32 %v1151, 4294901760
      %1154 = vmatprep.subr.mxu0 %v1153
      %v1155 = vand.u32 %v1149, 4294901760
      %1156 = vmatpush1.msra.mxu0 %v1155
      %1157 = vmatprep.subr.mxu0 0.0
      %1158 = vmatpush1.msra.mxu0 0.0
      %1159 = vmatprep.subr.mxu0 0.0
      %1160 = vmatpush1.msra.mxu0 0.0
      %1161 = vmatprep.subr.mxu0 0.0
      %1162 = vmatpush1.msra.mxu0 0.0
      %1163 = vmatprep.subr.mxu0 0.0
      %1164 = vmatpush1.msra.mxu0 0.0
      %1165 = vmatprep.subr.mxu0 0.0
      %1166 = vmatpush1.msra.mxu0 0.0
      %1167 = vmatprep.subr.mxu0 0.0
      %1168 = vmatpush1.msra.mxu0 0.0
      %1169 = vmatprep.subr.mxu0 0.0
      %1170 = vmatpush1.msra.mxu0 0.0
      %1171 = vmatprep.subr.mxu0 0.0
      %1172 = vmatpush1.msra.mxu0 0.0
      %1173 = vmatprep.subr.mxu0 0.0
      %1174 = vmatpush1.msra.mxu0 0.0
      %1175 = vmatprep.subr.mxu0 0.0
      %1176 = vmatpush1.msra.mxu0 0.0
      %1177 = vmatprep.subr.mxu0 0.0
      %1178 = vmatpush1.msra.mxu0 0.0
      %1179 = vmatprep.subr.mxu0 0.0
      %1180 = vmatpush1.msra.mxu0 0.0
      %1181 = vmatprep.subr.mxu0 0.0
      %1182 = vmatpush1.msra.mxu0 0.0
      %1183 = vmatprep.subr.mxu0 0.0
      %1184 = vmatpush1.msra.mxu0 0.0
      %1185 = vmatprep.subr.mxu0 0.0
      %1186 = vmatpush1.msra.mxu0 0.0
      %1187 = vmatprep.subr.mxu0 0.0
      %1188 = vmatpush1.msra.mxu0 0.0
      %1189 = vmatprep.subr.mxu0 0.0
      %1190 = vmatpush1.msra.mxu0 0.0
      %1191 = vmatprep.subr.mxu0 0.0
      %1192 = vmatpush1.msra.mxu0 0.0
      %1193 = vmatprep.subr.mxu0 0.0
      %1194 = vmatpush1.msra.mxu0 0.0
      %1195 = vmatprep.subr.mxu0 0.0
      %1196 = vmatpush1.msra.mxu0 0.0
      %1197 = vmatprep.subr.mxu0 0.0
      %1198 = vmatpush1.msra.mxu0 0.0
      %1199 = vmatprep.subr.mxu0 0.0
      %1200 = vmatpush1.msra.mxu0 0.0
      %1201 = vmatprep.subr.mxu0 0.0
      %1202 = vmatpush1.msra.mxu0 0.0
      %1203 = vmatprep.subr.mxu0 0.0
      %1204 = vmatpush1.msra.mxu0 0.0
      %1205 = vmatprep.subr.mxu0 0.0
      %1206 = vmatpush1.msra.mxu0 0.0
      %1207 = vmatprep.subr.mxu0 0.0
      %1208 = vmatpush1.msra.mxu0 0.0
      %1209 = vmatprep.subr.mxu0 0.0
      %1210 = vmatpush1.msra.mxu0 0.0
      %1211 = vmatprep.subr.mxu0 0.0
      %1212 = vmatpush1.msra.mxu0 0.0
      %1213 = vmatprep.subr.mxu0 0.0
      %1214 = vmatpush1.msra.mxu0 0.0
      %1215 = vmatprep.subr.mxu0 0.0
      %1216 = vmatpush1.msra.mxu0 0.0
      %1217 = vmatprep.subr.mxu0 0.0
      %1218 = vmatpush1.msra.mxu0 0.0
      %1219 = vmatprep.mubr.f32.mxu0 0.0
      %v1220 = vand.u32 %v1147, 4294901760
      %v1221 = vsub.f32 %v1147, %v1220
      %v1222 = vand.u32 %v1221, 4294901760
      %v1223 = vsub.f32 %v1221, %v1222
      %v1224 = vand.u32 %v1223, 4294901760
      %1225 = vmatmul.mubr.f32.gmra.mrb[0].mxu0 %v1224
      %v1226 = vpop.f32.mrb[0].mxu0
      %v1227 = vadd.f32 0.0, %v1226
      %v1228 = vpop.f32.mrb[0].mxu0
      %v1229 = vadd.f32 0.0, %v1228
      %1230 = vdwg.mxu0
      %v1231 = vand.u32 %v1151, 4294901760
      %v1232 = vsub.f32 %v1151, %v1231
      %v1233 = vand.u32 %v1232, 4294901760
      %v1234 = vsub.f32 %v1232, %v1233
      %v1235 = vand.u32 %v1234, 4294901760
      %1236 = vmatprep.subr.mxu0 %v1235
      %v1237 = vand.u32 %v1149, 4294901760
      %v1238 = vsub.f32 %v1149, %v1237
      %v1239 = vand.u32 %v1238, 4294901760
      %v1240 = vsub.f32 %v1238, %v1239
      %v1241 = vand.u32 %v1240, 4294901760
      %1242 = vmatpush1.msra.mxu0 %v1241
      %1243 = vmatprep.subr.mxu0 0.0
      %1244 = vmatpush1.msra.mxu0 0.0
      %1245 = vmatprep.subr.mxu0 0.0
      %1246 = vmatpush1.msra.mxu0 0.0
      %1247 = vmatprep.subr.mxu0 0.0
      %1248 = vmatpush1.msra.mxu0 0.0
      %1249 = vmatprep.subr.mxu0 0.0
      %1250 = vmatpush1.msra.mxu0 0.0
      %1251 = vmatprep.subr.mxu0 0.0
      %1252 = vmatpush1.msra.mxu0 0.0
      %1253 = vmatprep.subr.mxu0 0.0
      %1254 = vmatpush1.msra.mxu0 0.0
      %1255 = vmatprep.subr.mxu0 0.0
      %1256 = vmatpush1.msra.mxu0 0.0
      %1257 = vmatprep.subr.mxu0 0.0
      %1258 = vmatpush1.msra.mxu0 0.0
      %1259 = vmatprep.subr.mxu0 0.0
      %1260 = vmatpush1.msra.mxu0 0.0
      %1261 = vmatprep.subr.mxu0 0.0
      %1262 = vmatpush1.msra.mxu0 0.0
      %1263 = vmatprep.subr.mxu0 0.0
      %1264 = vmatpush1.msra.mxu0 0.0
      %1265 = vmatprep.subr.mxu0 0.0
      %1266 = vmatpush1.msra.mxu0 0.0
      %1267 = vmatprep.subr.mxu0 0.0
      %1268 = vmatpush1.msra.mxu0 0.0
      %1269 = vmatprep.subr.mxu0 0.0
      %1270 = vmatpush1.msra.mxu0 0.0
      %1271 = vmatprep.subr.mxu0 0.0
      %1272 = vmatpush1.msra.mxu0 0.0
      %1273 = vmatprep.subr.mxu0 0.0
      %1274 = vmatpush1.msra.mxu0 0.0
      %1275 = vmatprep.subr.mxu0 0.0
      %1276 = vmatpush1.msra.mxu0 0.0
      %1277 = vmatprep.subr.mxu0 0.0
      %1278 = vmatpush1.msra.mxu0 0.0
      %1279 = vmatprep.subr.mxu0 0.0
      %1280 = vmatpush1.msra.mxu0 0.0
      %1281 = vmatprep.subr.mxu0 0.0
      %1282 = vmatpush1.msra.mxu0 0.0
      %1283 = vmatprep.subr.mxu0 0.0
      %1284 = vmatpush1.msra.mxu0 0.0
      %1285 = vmatprep.subr.mxu0 0.0
      %1286 = vmatpush1.msra.mxu0 0.0
      %1287 = vmatprep.subr.mxu0 0.0
      %1288 = vmatpush1.msra.mxu0 0.0
      %1289 = vmatprep.subr.mxu0 0.0
      %1290 = vmatpush1.msra.mxu0 0.0
      %1291 = vmatprep.subr.mxu0 0.0
      %1292 = vmatpush1.msra.mxu0 0.0
      %1293 = vmatprep.subr.mxu0 0.0
      %1294 = vmatpush1.msra.mxu0 0.0
      %1295 = vmatprep.subr.mxu0 0.0
      %1296 = vmatpush1.msra.mxu0 0.0
      %1297 = vmatprep.subr.mxu0 0.0
      %1298 = vmatpush1.msra.mxu0 0.0
      %1299 = vmatprep.subr.mxu0 0.0
      %1300 = vmatpush1.msra.mxu0 0.0
      %1301 = vmatprep.subr.mxu0 0.0
      %1302 = vmatpush1.msra.mxu0 0.0
      %1303 = vmatprep.subr.mxu0 0.0
      %1304 = vmatpush1.msra.mxu0 0.0
      %1305 = vmatprep.mubr.f32.mxu0 0.0
      %v1306 = vand.u32 %v1147, 4294901760
      %1307 = vmatmul.mubr.f32.gmra.mrb[0].mxu0 %v1306
      %v1308 = vpop.f32.mrb[0].mxu0
      %v1309 = vadd.f32 %v1227, %v1308
      %v1310 = vpop.f32.mrb[0].mxu0
      %v1311 = vadd.f32 %v1229, %v1310
      %1312 = vdwg.mxu0
      %v1313 = vand.u32 %v1151, 4294901760
      %v1314 = vsub.f32 %v1151, %v1313
      %1315 = vmatprep.subr.mxu0 %v1314
      %v1316 = vand.u32 %v1149, 4294901760
      %v1317 = vsub.f32 %v1149, %v1316
      %1318 = vmatpush1.msra.mxu0 %v1317
      %1319 = vmatprep.subr.mxu0 0.0
      %1320 = vmatpush1.msra.mxu0 0.0
      %1321 = vmatprep.subr.mxu0 0.0
      %1322 = vmatpush1.msra.mxu0 0.0
      %1323 = vmatprep.subr.mxu0 0.0
      %1324 = vmatpush1.msra.mxu0 0.0
      %1325 = vmatprep.subr.mxu0 0.0
      %1326 = vmatpush1.msra.mxu0 0.0
      %1327 = vmatprep.subr.mxu0 0.0
      %1328 = vmatpush1.msra.mxu0 0.0
      %1329 = vmatprep.subr.mxu0 0.0
      %1330 = vmatpush1.msra.mxu0 0.0
      %1331 = vmatprep.subr.mxu0 0.0
      %1332 = vmatpush1.msra.mxu0 0.0
      %1333 = vmatprep.subr.mxu0 0.0
      %1334 = vmatpush1.msra.mxu0 0.0
      %1335 = vmatprep.subr.mxu0 0.0
      %1336 = vmatpush1.msra.mxu0 0.0
      %1337 = vmatprep.subr.mxu0 0.0
      %1338 = vmatpush1.msra.mxu0 0.0
      %1339 = vmatprep.subr.mxu0 0.0
      %1340 = vmatpush1.msra.mxu0 0.0
      %1341 = vmatprep.subr.mxu0 0.0
      %1342 = vmatpush1.msra.mxu0 0.0
      %1343 = vmatprep.subr.mxu0 0.0
      %1344 = vmatpush1.msra.mxu0 0.0
      %1345 = vmatprep.subr.mxu0 0.0
      %1346 = vmatpush1.msra.mxu0 0.0
      %1347 = vmatprep.subr.mxu0 0.0
      %1348 = vmatpush1.msra.mxu0 0.0
      %1349 = vmatprep.subr.mxu0 0.0
      %1350 = vmatpush1.msra.mxu0 0.0
      %1351 = vmatprep.subr.mxu0 0.0
      %1352 = vmatpush1.msra.mxu0 0.0
      %1353 = vmatprep.subr.mxu0 0.0
      %1354 = vmatpush1.msra.mxu0 0.0
      %1355 = vmatprep.subr.mxu0 0.0
      %1356 = vmatpush1.msra.mxu0 0.0
      %1357 = vmatprep.subr.mxu0 0.0
      %1358 = vmatpush1.msra.mxu0 0.0
      %1359 = vmatprep.subr.mxu0 0.0
      %1360 = vmatpush1.msra.mxu0 0.0
      %1361 = vmatprep.subr.mxu0 0.0
      %1362 = vmatpush1.msra.mxu0 0.0
      %1363 = vmatprep.subr.mxu0 0.0
      %1364 = vmatpush1.msra.mxu0 0.0
      %1365 = vmatprep.subr.mxu0 0.0
      %1366 = vmatpush1.msra.mxu0 0.0
      %1367 = vmatprep.subr.mxu0 0.0
      %1368 = vmatpush1.msra.mxu0 0.0
      %1369 = vmatprep.subr.mxu0 0.0
      %1370 = vmatpush1.msra.mxu0 0.0
      %1371 = vmatprep.subr.mxu0 0.0
      %1372 = vmatpush1.msra.mxu0 0.0
      %1373 = vmatprep.subr.mxu0 0.0
      %1374 = vmatpush1.msra.mxu0 0.0
      %1375 = vmatprep.subr.mxu0 0.0
      %1376 = vmatpush1.msra.mxu0 0.0
      %1377 = vmatprep.subr.mxu0 0.0
      %1378 = vmatpush1.msra.mxu0 0.0
      %1379 = vmatprep.subr.mxu0 0.0
      %1380 = vmatpush1.msra.mxu0 0.0
      %1381 = vmatprep.mubr.f32.mxu0 0.0
      %v1382 = vand.u32 %v1147, 4294901760
      %v1383 = vsub.f32 %v1147, %v1382
      %1384 = vmatmul.mubr.f32.gmra.mrb[0].mxu0 %v1383
      %v1385 = vpop.f32.mrb[0].mxu0
      %v1386 = vadd.f32 %v1309, %v1385
      %v1387 = vpop.f32.mrb[0].mxu0
      %v1388 = vadd.f32 %v1311, %v1387
      %1389 = vdwg.mxu0
      %v1390 = vand.u32 %v1151, 4294901760
      %1391 = vmatprep.subr.mxu0 %v1390
      %v1392 = vand.u32 %v1149, 4294901760
      %1393 = vmatpush1.msra.mxu0 %v1392
      %1394 = vmatprep.subr.mxu0 0.0
      %1395 = vmatpush1.msra.mxu0 0.0
      %1396 = vmatprep.subr.mxu0 0.0
      %1397 = vmatpush1.msra.mxu0 0.0
      %1398 = vmatprep.subr.mxu0 0.0
      %1399 = vmatpush1.msra.mxu0 0.0
      %1400 = vmatprep.subr.mxu0 0.0
      %1401 = vmatpush1.msra.mxu0 0.0
      %1402 = vmatprep.subr.mxu0 0.0
      %1403 = vmatpush1.msra.mxu0 0.0
      %1404 = vmatprep.subr.mxu0 0.0
      %1405 = vmatpush1.msra.mxu0 0.0
      %1406 = vmatprep.subr.mxu0 0.0
      %1407 = vmatpush1.msra.mxu0 0.0
      %1408 = vmatprep.subr.mxu0 0.0
      %1409 = vmatpush1.msra.mxu0 0.0
      %1410 = vmatprep.subr.mxu0 0.0
      %1411 = vmatpush1.msra.mxu0 0.0
      %1412 = vmatprep.subr.mxu0 0.0
      %1413 = vmatpush1.msra.mxu0 0.0
      %1414 = vmatprep.subr.mxu0 0.0
      %1415 = vmatpush1.msra.mxu0 0.0
      %1416 = vmatprep.subr.mxu0 0.0
      %1417 = vmatpush1.msra.mxu0 0.0
      %1418 = vmatprep.subr.mxu0 0.0
      %1419 = vmatpush1.msra.mxu0 0.0
      %1420 = vmatprep.subr.mxu0 0.0
      %1421 = vmatpush1.msra.mxu0 0.0
      %1422 = vmatprep.subr.mxu0 0.0
      %1423 = vmatpush1.msra.mxu0 0.0
      %1424 = vmatprep.subr.mxu0 0.0
      %1425 = vmatpush1.msra.mxu0 0.0
      %1426 = vmatprep.subr.mxu0 0.0
      %1427 = vmatpush1.msra.mxu0 0.0
      %1428 = vmatprep.subr.mxu0 0.0
      %1429 = vmatpush1.msra.mxu0 0.0
      %1430 = vmatprep.subr.mxu0 0.0
      %1431 = vmatpush1.msra.mxu0 0.0
      %1432 = vmatprep.subr.mxu0 0.0
      %1433 = vmatpush1.msra.mxu0 0.0
      %1434 = vmatprep.subr.mxu0 0.0
      %1435 = vmatpush1.msra.mxu0 0.0
      %1436 = vmatprep.subr.mxu0 0.0
      %1437 = vmatpush1.msra.mxu0 0.0
      %1438 = vmatprep.subr.mxu0 0.0
      %1439 = vmatpush1.msra.mxu0 0.0
      %1440 = vmatprep.subr.mxu0 0.0
      %1441 = vmatpush1.msra.mxu0 0.0
      %1442 = vmatprep.subr.mxu0 0.0
      %1443 = vmatpush1.msra.mxu0 0.0
      %1444 = vmatprep.subr.mxu0 0.0
      %1445 = vmatpush1.msra.mxu0 0.0
      %1446 = vmatprep.subr.mxu0 0.0
      %1447 = vmatpush1.msra.mxu0 0.0
      %1448 = vmatprep.subr.mxu0 0.0
      %1449 = vmatpush1.msra.mxu0 0.0
      %1450 = vmatprep.subr.mxu0 0.0
      %1451 = vmatpush1.msra.mxu0 0.0
      %1452 = vmatprep.subr.mxu0 0.0
      %1453 = vmatpush1.msra.mxu0 0.0
      %1454 = vmatprep.subr.mxu0 0.0
      %1455 = vmatpush1.msra.mxu0 0.0
      %1456 = vmatprep.mubr.f32.mxu0 0.0
      %v1457 = vand.u32 %v1147, 4294901760
      %v1458 = vsub.f32 %v1147, %v1457
      %v1459 = vand.u32 %v1458, 4294901760
      %1460 = vmatmul.mubr.f32.gmra.mrb[0].mxu0 %v1459
      %v1461 = vpop.f32.mrb[0].mxu0
      %v1462 = vadd.f32 %v1386, %v1461
      %v1463 = vpop.f32.mrb[0].mxu0
      %v1464 = vadd.f32 %v1388, %v1463
      %1465 = vdwg.mxu0
      %v1466 = vand.u32 %v1151, 4294901760
      %v1467 = vsub.f32 %v1151, %v1466
      %v1468 = vand.u32 %v1467, 4294901760
      %1469 = vmatprep.subr.mxu0 %v1468
      %v1470 = vand.u32 %v1149, 4294901760
      %v1471 = vsub.f32 %v1149, %v1470
      %v1472 = vand.u32 %v1471, 4294901760
      %1473 = vmatpush1.msra.mxu0 %v1472
      %1474 = vmatprep.subr.mxu0 0.0
      %1475 = vmatpush1.msra.mxu0 0.0
      %1476 = vmatprep.subr.mxu0 0.0
      %1477 = vmatpush1.msra.mxu0 0.0
      %1478 = vmatprep.subr.mxu0 0.0
      %1479 = vmatpush1.msra.mxu0 0.0
      %1480 = vmatprep.subr.mxu0 0.0
      %1481 = vmatpush1.msra.mxu0 0.0
      %1482 = vmatprep.subr.mxu0 0.0
      %1483 = vmatpush1.msra.mxu0 0.0
      %1484 = vmatprep.subr.mxu0 0.0
      %1485 = vmatpush1.msra.mxu0 0.0
      %1486 = vmatprep.subr.mxu0 0.0
      %1487 = vmatpush1.msra.mxu0 0.0
      %1488 = vmatprep.subr.mxu0 0.0
      %1489 = vmatpush1.msra.mxu0 0.0
      %1490 = vmatprep.subr.mxu0 0.0
      %1491 = vmatpush1.msra.mxu0 0.0
      %1492 = vmatprep.subr.mxu0 0.0
      %1493 = vmatpush1.msra.mxu0 0.0
      %1494 = vmatprep.subr.mxu0 0.0
      %1495 = vmatpush1.msra.mxu0 0.0
      %1496 = vmatprep.subr.mxu0 0.0
      %1497 = vmatpush1.msra.mxu0 0.0
      %1498 = vmatprep.subr.mxu0 0.0
      %1499 = vmatpush1.msra.mxu0 0.0
      %1500 = vmatprep.subr.mxu0 0.0
      %1501 = vmatpush1.msra.mxu0 0.0
      %1502 = vmatprep.subr.mxu0 0.0
      %1503 = vmatpush1.msra.mxu0 0.0
      %1504 = vmatprep.subr.mxu0 0.0
      %1505 = vmatpush1.msra.mxu0 0.0
      %1506 = vmatprep.subr.mxu0 0.0
      %1507 = vmatpush1.msra.mxu0 0.0
      %1508 = vmatprep.subr.mxu0 0.0
      %1509 = vmatpush1.msra.mxu0 0.0
      %1510 = vmatprep.subr.mxu0 0.0
      %1511 = vmatpush1.msra.mxu0 0.0
      %1512 = vmatprep.subr.mxu0 0.0
      %1513 = vmatpush1.msra.mxu0 0.0
      %1514 = vmatprep.subr.mxu0 0.0
      %1515 = vmatpush1.msra.mxu0 0.0
      %1516 = vmatprep.subr.mxu0 0.0
      %1517 = vmatpush1.msra.mxu0 0.0
      %1518 = vmatprep.subr.mxu0 0.0
      %1519 = vmatpush1.msra.mxu0 0.0
      %1520 = vmatprep.subr.mxu0 0.0
      %1521 = vmatpush1.msra.mxu0 0.0
      %1522 = vmatprep.subr.mxu0 0.0
      %1523 = vmatpush1.msra.mxu0 0.0
      %1524 = vmatprep.subr.mxu0 0.0
      %1525 = vmatpush1.msra.mxu0 0.0
      %1526 = vmatprep.subr.mxu0 0.0
      %1527 = vmatpush1.msra.mxu0 0.0
      %1528 = vmatprep.subr.mxu0 0.0
      %1529 = vmatpush1.msra.mxu0 0.0
      %1530 = vmatprep.subr.mxu0 0.0
      %1531 = vmatpush1.msra.mxu0 0.0
      %1532 = vmatprep.subr.mxu0 0.0
      %1533 = vmatpush1.msra.mxu0 0.0
      %1534 = vmatprep.subr.mxu0 0.0
      %1535 = vmatpush1.msra.mxu0 0.0
      %1536 = vmatprep.mubr.f32.mxu0 0.0
      %v1537 = vand.u32 %v1147, 4294901760
      %1538 = vmatmul.mubr.f32.gmra.mrb[0].mxu0 %v1537
      %v1539 = vpop.f32.mrb[0].mxu0
      %v1540 = vadd.f32 %v1462, %v1539
      %v1541 = vpop.f32.mrb[0].mxu0
      %v1542 = vadd.f32 %v1464, %v1541
      %1543 = vdwg.mxu0
      %v1544 = vand.u32 %v1151, 4294901760
      %1545 = vmatprep.subr.mxu0 %v1544
      %v1546 = vand.u32 %v1149, 4294901760
      %1547 = vmatpush1.msra.mxu0 %v1546
      %1548 = vmatprep.subr.mxu0 0.0
      %1549 = vmatpush1.msra.mxu0 0.0
      %1550 = vmatprep.subr.mxu0 0.0
      %1551 = vmatpush1.msra.mxu0 0.0
      %1552 = vmatprep.subr.mxu0 0.0
      %1553 = vmatpush1.msra.mxu0 0.0
      %1554 = vmatprep.subr.mxu0 0.0
      %1555 = vmatpush1.msra.mxu0 0.0
      %1556 = vmatprep.subr.mxu0 0.0
      %1557 = vmatpush1.msra.mxu0 0.0
      %1558 = vmatprep.subr.mxu0 0.0
      %1559 = vmatpush1.msra.mxu0 0.0
      %1560 = vmatprep.subr.mxu0 0.0
      %1561 = vmatpush1.msra.mxu0 0.0
      %1562 = vmatprep.subr.mxu0 0.0
      %1563 = vmatpush1.msra.mxu0 0.0
      %1564 = vmatprep.subr.mxu0 0.0
      %1565 = vmatpush1.msra.mxu0 0.0
      %1566 = vmatprep.subr.mxu0 0.0
      %1567 = vmatpush1.msra.mxu0 0.0
      %1568 = vmatprep.subr.mxu0 0.0
      %1569 = vmatpush1.msra.mxu0 0.0
      %1570 = vmatprep.subr.mxu0 0.0
      %1571 = vmatpush1.msra.mxu0 0.0
      %1572 = vmatprep.subr.mxu0 0.0
      %1573 = vmatpush1.msra.mxu0 0.0
      %1574 = vmatprep.subr.mxu0 0.0
      %1575 = vmatpush1.msra.mxu0 0.0
      %1576 = vmatprep.subr.mxu0 0.0
      %1577 = vmatpush1.msra.mxu0 0.0
      %1578 = vmatprep.subr.mxu0 0.0
      %1579 = vmatpush1.msra.mxu0 0.0
      %1580 = vmatprep.subr.mxu0 0.0
      %1581 = vmatpush1.msra.mxu0 0.0
      %1582 = vmatprep.subr.mxu0 0.0
      %1583 = vmatpush1.msra.mxu0 0.0
      %1584 = vmatprep.subr.mxu0 0.0
      %1585 = vmatpush1.msra.mxu0 0.0
      %1586 = vmatprep.subr.mxu0 0.0
      %1587 = vmatpush1.msra.mxu0 0.0
      %1588 = vmatprep.subr.mxu0 0.0
      %1589 = vmatpush1.msra.mxu0 0.0
      %1590 = vmatprep.subr.mxu0 0.0
      %1591 = vmatpush1.msra.mxu0 0.0
      %1592 = vmatprep.subr.mxu0 0.0
      %1593 = vmatpush1.msra.mxu0 0.0
      %1594 = vmatprep.subr.mxu0 0.0
      %1595 = vmatpush1.msra.mxu0 0.0
      %1596 = vmatprep.subr.mxu0 0.0
      %1597 = vmatpush1.msra.mxu0 0.0
      %1598 = vmatprep.subr.mxu0 0.0
      %1599 = vmatpush1.msra.mxu0 0.0
      %1600 = vmatprep.subr.mxu0 0.0
      %1601 = vmatpush1.msra.mxu0 0.0
      %1602 = vmatprep.subr.mxu0 0.0
      %1603 = vmatpush1.msra.mxu0 0.0
      %1604 = vmatprep.subr.mxu0 0.0
      %1605 = vmatpush1.msra.mxu0 0.0
      %1606 = vmatprep.subr.mxu0 0.0
      %1607 = vmatpush1.msra.mxu0 0.0
      %1608 = vmatprep.subr.mxu0 0.0
      %1609 = vmatpush1.msra.mxu0 0.0
      %1610 = vmatprep.mubr.f32.mxu0 0.0
      %v1611 = vand.u32 %v1147, 4294901760
      %1612 = vmatmul.mubr.f32.gmra.mrb[0].mxu0 %v1611
      %v1613 = vpop.f32.mrb[0].mxu0
      %v1614 = vadd.f32 %v1540, %v1613
      %v1615 = vpop.f32.mrb[0].mxu0
      %v1616 = vadd.f32 %v1542, %v1615
      %1617 = vdwg.mxu0
      %v1618 = vadd.f32 %v1134, %v1614
      %v1619 = vadd.f32 %v1136, %v1616
      %s1620 = scalar_lea.vmem %s1, 24
      %v1621 = vld [vmem:[%s1620] sm:$0xff]
      %1622 = vrot.lane.b32.xlu0 %v180, 112
      %v1623 = vpop.permute.xlu0 %1622
      %1624 = vrot.lane.b32.xlu0 %v185, 112
      %v1625 = vpop.permute.xlu0 %1624
      %vm1626 = vcmask 916480
      %v1627 = vsel %vm1626, %v1623, %v1625
      %v1629 = vsel %vm192, %v1621, 0
      %v1631 = vsel %vm196, %v1627, 0
      %v1633 = vsel %vm196, %v1625, 0
      %v1635 = vand.u32 %v1633, 4294901760
      %1636 = vmatprep.subr.mxu0 %v1635
      %v1637 = vand.u32 %v1631, 4294901760
      %1638 = vmatpush1.msra.mxu0 %v1637
      %1639 = vmatprep.subr.mxu0 0.0
      %1640 = vmatpush1.msra.mxu0 0.0
      %1641 = vmatprep.subr.mxu0 0.0
      %1642 = vmatpush1.msra.mxu0 0.0
      %1643 = vmatprep.subr.mxu0 0.0
      %1644 = vmatpush1.msra.mxu0 0.0
      %1645 = vmatprep.subr.mxu0 0.0
      %1646 = vmatpush1.msra.mxu0 0.0
      %1647 = vmatprep.subr.mxu0 0.0
      %1648 = vmatpush1.msra.mxu0 0.0
      %1649 = vmatprep.subr.mxu0 0.0
      %1650 = vmatpush1.msra.mxu0 0.0
      %1651 = vmatprep.subr.mxu0 0.0
      %1652 = vmatpush1.msra.mxu0 0.0
      %1653 = vmatprep.subr.mxu0 0.0
      %1654 = vmatpush1.msra.mxu0 0.0
      %1655 = vmatprep.subr.mxu0 0.0
      %1656 = vmatpush1.msra.mxu0 0.0
      %1657 = vmatprep.subr.mxu0 0.0
      %1658 = vmatpush1.msra.mxu0 0.0
      %1659 = vmatprep.subr.mxu0 0.0
      %1660 = vmatpush1.msra.mxu0 0.0
      %1661 = vmatprep.subr.mxu0 0.0
      %1662 = vmatpush1.msra.mxu0 0.0
      %1663 = vmatprep.subr.mxu0 0.0
      %1664 = vmatpush1.msra.mxu0 0.0
      %1665 = vmatprep.subr.mxu0 0.0
      %1666 = vmatpush1.msra.mxu0 0.0
      %1667 = vmatprep.subr.mxu0 0.0
      %1668 = vmatpush1.msra.mxu0 0.0
      %1669 = vmatprep.subr.mxu0 0.0
      %1670 = vmatpush1.msra.mxu0 0.0
      %1671 = vmatprep.subr.mxu0 0.0
      %1672 = vmatpush1.msra.mxu0 0.0
      %1673 = vmatprep.subr.mxu0 0.0
      %1674 = vmatpush1.msra.mxu0 0.0
      %1675 = vmatprep.subr.mxu0 0.0
      %1676 = vmatpush1.msra.mxu0 0.0
      %1677 = vmatprep.subr.mxu0 0.0
      %1678 = vmatpush1.msra.mxu0 0.0
      %1679 = vmatprep.subr.mxu0 0.0
      %1680 = vmatpush1.msra.mxu0 0.0
      %1681 = vmatprep.subr.mxu0 0.0
      %1682 = vmatpush1.msra.mxu0 0.0
      %1683 = vmatprep.subr.mxu0 0.0
      %1684 = vmatpush1.msra.mxu0 0.0
      %1685 = vmatprep.subr.mxu0 0.0
      %1686 = vmatpush1.msra.mxu0 0.0
      %1687 = vmatprep.subr.mxu0 0.0
      %1688 = vmatpush1.msra.mxu0 0.0
      %1689 = vmatprep.subr.mxu0 0.0
      %1690 = vmatpush1.msra.mxu0 0.0
      %1691 = vmatprep.subr.mxu0 0.0
      %1692 = vmatpush1.msra.mxu0 0.0
      %1693 = vmatprep.subr.mxu0 0.0
      %1694 = vmatpush1.msra.mxu0 0.0
      %1695 = vmatprep.subr.mxu0 0.0
      %1696 = vmatpush1.msra.mxu0 0.0
      %1697 = vmatprep.subr.mxu0 0.0
      %1698 = vmatpush1.msra.mxu0 0.0
      %1699 = vmatprep.subr.mxu0 0.0
      %1700 = vmatpush1.msra.mxu0 0.0
      %1701 = vmatprep.mubr.f32.mxu0 0.0
      %v1702 = vand.u32 %v1629, 4294901760
      %v1703 = vsub.f32 %v1629, %v1702
      %v1704 = vand.u32 %v1703, 4294901760
      %v1705 = vsub.f32 %v1703, %v1704
      %v1706 = vand.u32 %v1705, 4294901760
      %1707 = vmatmul.mubr.f32.gmra.mrb[0].mxu0 %v1706
      %v1708 = vpop.f32.mrb[0].mxu0
      %v1709 = vadd.f32 0.0, %v1708
      %v1710 = vpop.f32.mrb[0].mxu0
      %v1711 = vadd.f32 0.0, %v1710
      %1712 = vdwg.mxu0
      %v1713 = vand.u32 %v1633, 4294901760
      %v1714 = vsub.f32 %v1633, %v1713
      %v1715 = vand.u32 %v1714, 4294901760
      %v1716 = vsub.f32 %v1714, %v1715
      %v1717 = vand.u32 %v1716, 4294901760
      %1718 = vmatprep.subr.mxu0 %v1717
      %v1719 = vand.u32 %v1631, 4294901760
      %v1720 = vsub.f32 %v1631, %v1719
      %v1721 = vand.u32 %v1720, 4294901760
      %v1722 = vsub.f32 %v1720, %v1721
      %v1723 = vand.u32 %v1722, 4294901760
      %1724 = vmatpush1.msra.mxu0 %v1723
      %1725 = vmatprep.subr.mxu0 0.0
      %1726 = vmatpush1.msra.mxu0 0.0
      %1727 = vmatprep.subr.mxu0 0.0
      %1728 = vmatpush1.msra.mxu0 0.0
      %1729 = vmatprep.subr.mxu0 0.0
      %1730 = vmatpush1.msra.mxu0 0.0
      %1731 = vmatprep.subr.mxu0 0.0
      %1732 = vmatpush1.msra.mxu0 0.0
      %1733 = vmatprep.subr.mxu0 0.0
      %1734 = vmatpush1.msra.mxu0 0.0
      %1735 = vmatprep.subr.mxu0 0.0
      %1736 = vmatpush1.msra.mxu0 0.0
      %1737 = vmatprep.subr.mxu0 0.0
      %1738 = vmatpush1.msra.mxu0 0.0
      %1739 = vmatprep.subr.mxu0 0.0
      %1740 = vmatpush1.msra.mxu0 0.0
      %1741 = vmatprep.subr.mxu0 0.0
      %1742 = vmatpush1.msra.mxu0 0.0
      %1743 = vmatprep.subr.mxu0 0.0
      %1744 = vmatpush1.msra.mxu0 0.0
      %1745 = vmatprep.subr.mxu0 0.0
      %1746 = vmatpush1.msra.mxu0 0.0
      %1747 = vmatprep.subr.mxu0 0.0
      %1748 = vmatpush1.msra.mxu0 0.0
      %1749 = vmatprep.subr.mxu0 0.0
      %1750 = vmatpush1.msra.mxu0 0.0
      %1751 = vmatprep.subr.mxu0 0.0
      %1752 = vmatpush1.msra.mxu0 0.0
      %1753 = vmatprep.subr.mxu0 0.0
      %1754 = vmatpush1.msra.mxu0 0.0
      %1755 = vmatprep.subr.mxu0 0.0
      %1756 = vmatpush1.msra.mxu0 0.0
      %1757 = vmatprep.subr.mxu0 0.0
      %1758 = vmatpush1.msra.mxu0 0.0
      %1759 = vmatprep.subr.mxu0 0.0
      %1760 = vmatpush1.msra.mxu0 0.0
      %1761 = vmatprep.subr.mxu0 0.0
      %1762 = vmatpush1.msra.mxu0 0.0
      %1763 = vmatprep.subr.mxu0 0.0
      %1764 = vmatpush1.msra.mxu0 0.0
      %1765 = vmatprep.subr.mxu0 0.0
      %1766 = vmatpush1.msra.mxu0 0.0
      %1767 = vmatprep.subr.mxu0 0.0
      %1768 = vmatpush1.msra.mxu0 0.0
      %1769 = vmatprep.subr.mxu0 0.0
      %1770 = vmatpush1.msra.mxu0 0.0
      %1771 = vmatprep.subr.mxu0 0.0
      %1772 = vmatpush1.msra.mxu0 0.0
      %1773 = vmatprep.subr.mxu0 0.0
      %1774 = vmatpush1.msra.mxu0 0.0
      %1775 = vmatprep.subr.mxu0 0.0
      %1776 = vmatpush1.msra.mxu0 0.0
      %1777 = vmatprep.subr.mxu0 0.0
      %1778 = vmatpush1.msra.mxu0 0.0
      %1779 = vmatprep.subr.mxu0 0.0
      %1780 = vmatpush1.msra.mxu0 0.0
      %1781 = vmatprep.subr.mxu0 0.0
      %1782 = vmatpush1.msra.mxu0 0.0
      %1783 = vmatprep.subr.mxu0 0.0
      %1784 = vmatpush1.msra.mxu0 0.0
      %1785 = vmatprep.subr.mxu0 0.0
      %1786 = vmatpush1.msra.mxu0 0.0
      %1787 = vmatprep.mubr.f32.mxu0 0.0
      %v1788 = vand.u32 %v1629, 4294901760
      %1789 = vmatmul.mubr.f32.gmra.mrb[0].mxu0 %v1788
      %v1790 = vpop.f32.mrb[0].mxu0
      %v1791 = vadd.f32 %v1709, %v1790
      %v1792 = vpop.f32.mrb[0].mxu0
      %v1793 = vadd.f32 %v1711, %v1792
      %1794 = vdwg.mxu0
      %v1795 = vand.u32 %v1633, 4294901760
      %v1796 = vsub.f32 %v1633, %v1795
      %1797 = vmatprep.subr.mxu0 %v1796
      %v1798 = vand.u32 %v1631, 4294901760
      %v1799 = vsub.f32 %v1631, %v1798
      %1800 = vmatpush1.msra.mxu0 %v1799
      %1801 = vmatprep.subr.mxu0 0.0
      %1802 = vmatpush1.msra.mxu0 0.0
      %1803 = vmatprep.subr.mxu0 0.0
      %1804 = vmatpush1.msra.mxu0 0.0
      %1805 = vmatprep.subr.mxu0 0.0
      %1806 = vmatpush1.msra.mxu0 0.0
      %1807 = vmatprep.subr.mxu0 0.0
      %1808 = vmatpush1.msra.mxu0 0.0
      %1809 = vmatprep.subr.mxu0 0.0
      %1810 = vmatpush1.msra.mxu0 0.0
      %1811 = vmatprep.subr.mxu0 0.0
      %1812 = vmatpush1.msra.mxu0 0.0
      %1813 = vmatprep.subr.mxu0 0.0
      %1814 = vmatpush1.msra.mxu0 0.0
      %1815 = vmatprep.subr.mxu0 0.0
      %1816 = vmatpush1.msra.mxu0 0.0
      %1817 = vmatprep.subr.mxu0 0.0
      %1818 = vmatpush1.msra.mxu0 0.0
      %1819 = vmatprep.subr.mxu0 0.0
      %1820 = vmatpush1.msra.mxu0 0.0
      %1821 = vmatprep.subr.mxu0 0.0
      %1822 = vmatpush1.msra.mxu0 0.0
      %1823 = vmatprep.subr.mxu0 0.0
      %1824 = vmatpush1.msra.mxu0 0.0
      %1825 = vmatprep.subr.mxu0 0.0
      %1826 = vmatpush1.msra.mxu0 0.0
      %1827 = vmatprep.subr.mxu0 0.0
      %1828 = vmatpush1.msra.mxu0 0.0
      %1829 = vmatprep.subr.mxu0 0.0
      %1830 = vmatpush1.msra.mxu0 0.0
      %1831 = vmatprep.subr.mxu0 0.0
      %1832 = vmatpush1.msra.mxu0 0.0
      %1833 = vmatprep.subr.mxu0 0.0
      %1834 = vmatpush1.msra.mxu0 0.0
      %1835 = vmatprep.subr.mxu0 0.0
      %1836 = vmatpush1.msra.mxu0 0.0
      %1837 = vmatprep.subr.mxu0 0.0
      %1838 = vmatpush1.msra.mxu0 0.0
      %1839 = vmatprep.subr.mxu0 0.0
      %1840 = vmatpush1.msra.mxu0 0.0
      %1841 = vmatprep.subr.mxu0 0.0
      %1842 = vmatpush1.msra.mxu0 0.0
      %1843 = vmatprep.subr.mxu0 0.0
      %1844 = vmatpush1.msra.mxu0 0.0
      %1845 = vmatprep.subr.mxu0 0.0
      %1846 = vmatpush1.msra.mxu0 0.0
      %1847 = vmatprep.subr.mxu0 0.0
      %1848 = vmatpush1.msra.mxu0 0.0
      %1849 = vmatprep.subr.mxu0 0.0
      %1850 = vmatpush1.msra.mxu0 0.0
      %1851 = vmatprep.subr.mxu0 0.0
      %1852 = vmatpush1.msra.mxu0 0.0
      %1853 = vmatprep.subr.mxu0 0.0
      %1854 = vmatpush1.msra.mxu0 0.0
      %1855 = vmatprep.subr.mxu0 0.0
      %1856 = vmatpush1.msra.mxu0 0.0
      %1857 = vmatprep.subr.mxu0 0.0
      %1858 = vmatpush1.msra.mxu0 0.0
      %1859 = vmatprep.subr.mxu0 0.0
      %1860 = vmatpush1.msra.mxu0 0.0
      %1861 = vmatprep.subr.mxu0 0.0
      %1862 = vmatpush1.msra.mxu0 0.0
      %1863 = vmatprep.mubr.f32.mxu0 0.0
      %v1864 = vand.u32 %v1629, 4294901760
      %v1865 = vsub.f32 %v1629, %v1864
      %1866 = vmatmul.mubr.f32.gmra.mrb[0].mxu0 %v1865
      %v1867 = vpop.f32.mrb[0].mxu0
      %v1868 = vadd.f32 %v1791, %v1867
      %v1869 = vpop.f32.mrb[0].mxu0
      %v1870 = vadd.f32 %v1793, %v1869
      %1871 = vdwg.mxu0
      %v1872 = vand.u32 %v1633, 4294901760
      %1873 = vmatprep.subr.mxu0 %v1872
      %v1874 = vand.u32 %v1631, 4294901760
      %1875 = vmatpush1.msra.mxu0 %v1874
      %1876 = vmatprep.subr.mxu0 0.0
      %1877 = vmatpush1.msra.mxu0 0.0
      %1878 = vmatprep.subr.mxu0 0.0
      %1879 = vmatpush1.msra.mxu0 0.0
      %1880 = vmatprep.subr.mxu0 0.0
      %1881 = vmatpush1.msra.mxu0 0.0
      %1882 = vmatprep.subr.mxu0 0.0
      %1883 = vmatpush1.msra.mxu0 0.0
      %1884 = vmatprep.subr.mxu0 0.0
      %1885 = vmatpush1.msra.mxu0 0.0
      %1886 = vmatprep.subr.mxu0 0.0
      %1887 = vmatpush1.msra.mxu0 0.0
      %1888 = vmatprep.subr.mxu0 0.0
      %1889 = vmatpush1.msra.mxu0 0.0
      %1890 = vmatprep.subr.mxu0 0.0
      %1891 = vmatpush1.msra.mxu0 0.0
      %1892 = vmatprep.subr.mxu0 0.0
      %1893 = vmatpush1.msra.mxu0 0.0
      %1894 = vmatprep.subr.mxu0 0.0
      %1895 = vmatpush1.msra.mxu0 0.0
      %1896 = vmatprep.subr.mxu0 0.0
      %1897 = vmatpush1.msra.mxu0 0.0
      %1898 = vmatprep.subr.mxu0 0.0
      %1899 = vmatpush1.msra.mxu0 0.0
      %1900 = vmatprep.subr.mxu0 0.0
      %1901 = vmatpush1.msra.mxu0 0.0
      %1902 = vmatprep.subr.mxu0 0.0
      %1903 = vmatpush1.msra.mxu0 0.0
      %1904 = vmatprep.subr.mxu0 0.0
      %1905 = vmatpush1.msra.mxu0 0.0
      %1906 = vmatprep.subr.mxu0 0.0
      %1907 = vmatpush1.msra.mxu0 0.0
      %1908 = vmatprep.subr.mxu0 0.0
      %1909 = vmatpush1.msra.mxu0 0.0
      %1910 = vmatprep.subr.mxu0 0.0
      %1911 = vmatpush1.msra.mxu0 0.0
      %1912 = vmatprep.subr.mxu0 0.0
      %1913 = vmatpush1.msra.mxu0 0.0
      %1914 = vmatprep.subr.mxu0 0.0
      %1915 = vmatpush1.msra.mxu0 0.0
      %1916 = vmatprep.subr.mxu0 0.0
      %1917 = vmatpush1.msra.mxu0 0.0
      %1918 = vmatprep.subr.mxu0 0.0
      %1919 = vmatpush1.msra.mxu0 0.0
      %1920 = vmatprep.subr.mxu0 0.0
      %1921 = vmatpush1.msra.mxu0 0.0
      %1922 = vmatprep.subr.mxu0 0.0
      %1923 = vmatpush1.msra.mxu0 0.0
      %1924 = vmatprep.subr.mxu0 0.0
      %1925 = vmatpush1.msra.mxu0 0.0
      %1926 = vmatprep.subr.mxu0 0.0
      %1927 = vmatpush1.msra.mxu0 0.0
      %1928 = vmatprep.subr.mxu0 0.0
      %1929 = vmatpush1.msra.mxu0 0.0
      %1930 = vmatprep.subr.mxu0 0.0
      %1931 = vmatpush1.msra.mxu0 0.0
      %1932 = vmatprep.subr.mxu0 0.0
      %1933 = vmatpush1.msra.mxu0 0.0
      %1934 = vmatprep.subr.mxu0 0.0
      %1935 = vmatpush1.msra.mxu0 0.0
      %1936 = vmatprep.subr.mxu0 0.0
      %1937 = vmatpush1.msra.mxu0 0.0
      %1938 = vmatprep.mubr.f32.mxu0 0.0
      %v1939 = vand.u32 %v1629, 4294901760
      %v1940 = vsub.f32 %v1629, %v1939
      %v1941 = vand.u32 %v1940, 4294901760
      %1942 = vmatmul.mubr.f32.gmra.mrb[0].mxu0 %v1941
      %v1943 = vpop.f32.mrb[0].mxu0
      %v1944 = vadd.f32 %v1868, %v1943
      %v1945 = vpop.f32.mrb[0].mxu0
      %v1946 = vadd.f32 %v1870, %v1945
      %1947 = vdwg.mxu0
      %v1948 = vand.u32 %v1633, 4294901760
      %v1949 = vsub.f32 %v1633, %v1948
      %v1950 = vand.u32 %v1949, 4294901760
      %1951 = vmatprep.subr.mxu0 %v1950
      %v1952 = vand.u32 %v1631, 4294901760
      %v1953 = vsub.f32 %v1631, %v1952
      %v1954 = vand.u32 %v1953, 4294901760
      %1955 = vmatpush1.msra.mxu0 %v1954
      %1956 = vmatprep.subr.mxu0 0.0
      %1957 = vmatpush1.msra.mxu0 0.0
      %1958 = vmatprep.subr.mxu0 0.0
      %1959 = vmatpush1.msra.mxu0 0.0
      %1960 = vmatprep.subr.mxu0 0.0
      %1961 = vmatpush1.msra.mxu0 0.0
      %1962 = vmatprep.subr.mxu0 0.0
      %1963 = vmatpush1.msra.mxu0 0.0
      %1964 = vmatprep.subr.mxu0 0.0
      %1965 = vmatpush1.msra.mxu0 0.0
      %1966 = vmatprep.subr.mxu0 0.0
      %1967 = vmatpush1.msra.mxu0 0.0
      %1968 = vmatprep.subr.mxu0 0.0
      %1969 = vmatpush1.msra.mxu0 0.0
      %1970 = vmatprep.subr.mxu0 0.0
      %1971 = vmatpush1.msra.mxu0 0.0
      %1972 = vmatprep.subr.mxu0 0.0
      %1973 = vmatpush1.msra.mxu0 0.0
      %1974 = vmatprep.subr.mxu0 0.0
      %1975 = vmatpush1.msra.mxu0 0.0
      %1976 = vmatprep.subr.mxu0 0.0
      %1977 = vmatpush1.msra.mxu0 0.0
      %1978 = vmatprep.subr.mxu0 0.0
      %1979 = vmatpush1.msra.mxu0 0.0
      %1980 = vmatprep.subr.mxu0 0.0
      %1981 = vmatpush1.msra.mxu0 0.0
      %1982 = vmatprep.subr.mxu0 0.0
      %1983 = vmatpush1.msra.mxu0 0.0
      %1984 = vmatprep.subr.mxu0 0.0
      %1985 = vmatpush1.msra.mxu0 0.0
      %1986 = vmatprep.subr.mxu0 0.0
      %1987 = vmatpush1.msra.mxu0 0.0
      %1988 = vmatprep.subr.mxu0 0.0
      %1989 = vmatpush1.msra.mxu0 0.0
      %1990 = vmatprep.subr.mxu0 0.0
      %1991 = vmatpush1.msra.mxu0 0.0
      %1992 = vmatprep.subr.mxu0 0.0
      %1993 = vmatpush1.msra.mxu0 0.0
      %1994 = vmatprep.subr.mxu0 0.0
      %1995 = vmatpush1.msra.mxu0 0.0
      %1996 = vmatprep.subr.mxu0 0.0
      %1997 = vmatpush1.msra.mxu0 0.0
      %1998 = vmatprep.subr.mxu0 0.0
      %1999 = vmatpush1.msra.mxu0 0.0
      %2000 = vmatprep.subr.mxu0 0.0
      %2001 = vmatpush1.msra.mxu0 0.0
      %2002 = vmatprep.subr.mxu0 0.0
      %2003 = vmatpush1.msra.mxu0 0.0
      %2004 = vmatprep.subr.mxu0 0.0
      %2005 = vmatpush1.msra.mxu0 0.0
      %2006 = vmatprep.subr.mxu0 0.0
      %2007 = vmatpush1.msra.mxu0 0.0
      %2008 = vmatprep.subr.mxu0 0.0
      %2009 = vmatpush1.msra.mxu0 0.0
      %2010 = vmatprep.subr.mxu0 0.0
      %2011 = vmatpush1.msra.mxu0 0.0
      %2012 = vmatprep.subr.mxu0 0.0
      %2013 = vmatpush1.msra.mxu0 0.0
      %2014 = vmatprep.subr.mxu0 0.0
      %2015 = vmatpush1.msra.mxu0 0.0
      %2016 = vmatprep.subr.mxu0 0.0
      %2017 = vmatpush1.msra.mxu0 0.0
      %2018 = vmatprep.mubr.f32.mxu0 0.0
      %v2019 = vand.u32 %v1629, 4294901760
      %2020 = vmatmul.mubr.f32.gmra.mrb[0].mxu0 %v2019
      %v2021 = vpop.f32.mrb[0].mxu0
      %v2022 = vadd.f32 %v1944, %v2021
      %v2023 = vpop.f32.mrb[0].mxu0
      %v2024 = vadd.f32 %v1946, %v2023
      %2025 = vdwg.mxu0
      %v2026 = vand.u32 %v1633, 4294901760
      %2027 = vmatprep.subr.mxu0 %v2026
      %v2028 = vand.u32 %v1631, 4294901760
      %2029 = vmatpush1.msra.mxu0 %v2028
      %2030 = vmatprep.subr.mxu0 0.0
      %2031 = vmatpush1.msra.mxu0 0.0
      %2032 = vmatprep.subr.mxu0 0.0
      %2033 = vmatpush1.msra.mxu0 0.0
      %2034 = vmatprep.subr.mxu0 0.0
      %2035 = vmatpush1.msra.mxu0 0.0
      %2036 = vmatprep.subr.mxu0 0.0
      %2037 = vmatpush1.msra.mxu0 0.0
      %2038 = vmatprep.subr.mxu0 0.0
      %2039 = vmatpush1.msra.mxu0 0.0
      %2040 = vmatprep.subr.mxu0 0.0
      %2041 = vmatpush1.msra.mxu0 0.0
      %2042 = vmatprep.subr.mxu0 0.0
      %2043 = vmatpush1.msra.mxu0 0.0
      %2044 = vmatprep.subr.mxu0 0.0
      %2045 = vmatpush1.msra.mxu0 0.0
      %2046 = vmatprep.subr.mxu0 0.0
      %2047 = vmatpush1.msra.mxu0 0.0
      %2048 = vmatprep.subr.mxu0 0.0
      %2049 = vmatpush1.msra.mxu0 0.0
      %2050 = vmatprep.subr.mxu0 0.0
      %2051 = vmatpush1.msra.mxu0 0.0
      %2052 = vmatprep.subr.mxu0 0.0
      %2053 = vmatpush1.msra.mxu0 0.0
      %2054 = vmatprep.subr.mxu0 0.0
      %2055 = vmatpush1.msra.mxu0 0.0
      %2056 = vmatprep.subr.mxu0 0.0
      %2057 = vmatpush1.msra.mxu0 0.0
      %2058 = vmatprep.subr.mxu0 0.0
      %2059 = vmatpush1.msra.mxu0 0.0
      %2060 = vmatprep.subr.mxu0 0.0
      %2061 = vmatpush1.msra.mxu0 0.0
      %2062 = vmatprep.subr.mxu0 0.0
      %2063 = vmatpush1.msra.mxu0 0.0
      %2064 = vmatprep.subr.mxu0 0.0
      %2065 = vmatpush1.msra.mxu0 0.0
      %2066 = vmatprep.subr.mxu0 0.0
      %2067 = vmatpush1.msra.mxu0 0.0
      %2068 = vmatprep.subr.mxu0 0.0
      %2069 = vmatpush1.msra.mxu0 0.0
      %2070 = vmatprep.subr.mxu0 0.0
      %2071 = vmatpush1.msra.mxu0 0.0
      %2072 = vmatprep.subr.mxu0 0.0
      %2073 = vmatpush1.msra.mxu0 0.0
      %2074 = vmatprep.subr.mxu0 0.0
      %2075 = vmatpush1.msra.mxu0 0.0
      %2076 = vmatprep.subr.mxu0 0.0
      %2077 = vmatpush1.msra.mxu0 0.0
      %2078 = vmatprep.subr.mxu0 0.0
      %2079 = vmatpush1.msra.mxu0 0.0
      %2080 = vmatprep.subr.mxu0 0.0
      %2081 = vmatpush1.msra.mxu0 0.0
      %2082 = vmatprep.subr.mxu0 0.0
      %2083 = vmatpush1.msra.mxu0 0.0
      %2084 = vmatprep.subr.mxu0 0.0
      %2085 = vmatpush1.msra.mxu0 0.0
      %2086 = vmatprep.subr.mxu0 0.0
      %2087 = vmatpush1.msra.mxu0 0.0
      %2088 = vmatprep.subr.mxu0 0.0
      %2089 = vmatpush1.msra.mxu0 0.0
      %2090 = vmatprep.subr.mxu0 0.0
      %2091 = vmatpush1.msra.mxu0 0.0
      %2092 = vmatprep.mubr.f32.mxu0 0.0
      %v2093 = vand.u32 %v1629, 4294901760
      %2094 = vmatmul.mubr.f32.gmra.mrb[0].mxu0 %v2093
      %v2095 = vpop.f32.mrb[0].mxu0
      %v2096 = vadd.f32 %v2022, %v2095
      %v2097 = vpop.f32.mrb[0].mxu0
      %v2098 = vadd.f32 %v2024, %v2097
      %2099 = vdwg.mxu0
      %v2100 = vadd.f32 %v1618, %v2096
      %v2101 = vadd.f32 %v1619, %v2098
      %s2102 = scalar_lea.vmem %s1, 32
      %v2103 = vld [vmem:[%s2102] sm:$0xff]
      %2104 = vrot.lane.b32.xlu0 %v180, 111
      %v2105 = vpop.permute.xlu0 %2104
      %2106 = vrot.lane.b32.xlu0 %v185, 111
      %v2107 = vpop.permute.xlu0 %2106
      %vm2108 = vcmask 908288
      %v2109 = vsel %vm2108, %v2105, %v2107
      %v2111 = vsel %vm192, %v2103, 0
      %v2113 = vsel %vm196, %v2109, 0
      %v2115 = vsel %vm196, %v2107, 0
      %v2117 = vand.u32 %v2115, 4294901760
      %2118 = vmatprep.subr.mxu0 %v2117
      %v2119 = vand.u32 %v2113, 4294901760
      %2120 = vmatpush1.msra.mxu0 %v2119
      %2121 = vmatprep.subr.mxu0 0.0
      %2122 = vmatpush1.msra.mxu0 0.0
      %2123 = vmatprep.subr.mxu0 0.0
      %2124 = vmatpush1.msra.mxu0 0.0
      %2125 = vmatprep.subr.mxu0 0.0
      %2126 = vmatpush1.msra.mxu0 0.0
      %2127 = vmatprep.subr.mxu0 0.0
      %2128 = vmatpush1.msra.mxu0 0.0
      %2129 = vmatprep.subr.mxu0 0.0
      %2130 = vmatpush1.msra.mxu0 0.0
      %2131 = vmatprep.subr.mxu0 0.0
      %2132 = vmatpush1.msra.mxu0 0.0
      %2133 = vmatprep.subr.mxu0 0.0
      %2134 = vmatpush1.msra.mxu0 0.0
      %2135 = vmatprep.subr.mxu0 0.0
      %2136 = vmatpush1.msra.mxu0 0.0
      %2137 = vmatprep.subr.mxu0 0.0
      %2138 = vmatpush1.msra.mxu0 0.0
      %2139 = vmatprep.subr.mxu0 0.0
      %2140 = vmatpush1.msra.mxu0 0.0
      %2141 = vmatprep.subr.mxu0 0.0
      %2142 = vmatpush1.msra.mxu0 0.0
      %2143 = vmatprep.subr.mxu0 0.0
      %2144 = vmatpush1.msra.mxu0 0.0
      %2145 = vmatprep.subr.mxu0 0.0
      %2146 = vmatpush1.msra.mxu0 0.0
      %2147 = vmatprep.subr.mxu0 0.0
      %2148 = vmatpush1.msra.mxu0 0.0
      %2149 = vmatprep.subr.mxu0 0.0
      %2150 = vmatpush1.msra.mxu0 0.0
      %2151 = vmatprep.subr.mxu0 0.0
      %2152 = vmatpush1.msra.mxu0 0.0
      %2153 = vmatprep.subr.mxu0 0.0
      %2154 = vmatpush1.msra.mxu0 0.0
      %2155 = vmatprep.subr.mxu0 0.0
      %2156 = vmatpush1.msra.mxu0 0.0
      %2157 = vmatprep.subr.mxu0 0.0
      %2158 = vmatpush1.msra.mxu0 0.0
      %2159 = vmatprep.subr.mxu0 0.0
      %2160 = vmatpush1.msra.mxu0 0.0
      %2161 = vmatprep.subr.mxu0 0.0
      %2162 = vmatpush1.msra.mxu0 0.0
      %2163 = vmatprep.subr.mxu0 0.0
      %2164 = vmatpush1.msra.mxu0 0.0
      %2165 = vmatprep.subr.mxu0 0.0
      %2166 = vmatpush1.msra.mxu0 0.0
      %2167 = vmatprep.subr.mxu0 0.0
      %2168 = vmatpush1.msra.mxu0 0.0
      %2169 = vmatprep.subr.mxu0 0.0
      %2170 = vmatpush1.msra.mxu0 0.0
      %2171 = vmatprep.subr.mxu0 0.0
      %2172 = vmatpush1.msra.mxu0 0.0
      %2173 = vmatprep.subr.mxu0 0.0
      %2174 = vmatpush1.msra.mxu0 0.0
      %2175 = vmatprep.subr.mxu0 0.0
      %2176 = vmatpush1.msra.mxu0 0.0
      %2177 = vmatprep.subr.mxu0 0.0
      %2178 = vmatpush1.msra.mxu0 0.0
      %2179 = vmatprep.subr.mxu0 0.0
      %2180 = vmatpush1.msra.mxu0 0.0
      %2181 = vmatprep.subr.mxu0 0.0
      %2182 = vmatpush1.msra.mxu0 0.0
      %2183 = vmatprep.mubr.f32.mxu0 0.0
      %v2184 = vand.u32 %v2111, 4294901760
      %v2185 = vsub.f32 %v2111, %v2184
      %v2186 = vand.u32 %v2185, 4294901760
      %v2187 = vsub.f32 %v2185, %v2186
      %v2188 = vand.u32 %v2187, 4294901760
      %2189 = vmatmul.mubr.f32.gmra.mrb[0].mxu0 %v2188
      %v2190 = vpop.f32.mrb[0].mxu0
      %v2191 = vadd.f32 0.0, %v2190
      %v2192 = vpop.f32.mrb[0].mxu0
      %v2193 = vadd.f32 0.0, %v2192
      %2194 = vdwg.mxu0
      %v2195 = vand.u32 %v2115, 4294901760
      %v2196 = vsub.f32 %v2115, %v2195
      %v2197 = vand.u32 %v2196, 4294901760
      %v2198 = vsub.f32 %v2196, %v2197
      %v2199 = vand.u32 %v2198, 4294901760
      %2200 = vmatprep.subr.mxu0 %v2199
      %v2201 = vand.u32 %v2113, 4294901760
      %v2202 = vsub.f32 %v2113, %v2201
      %v2203 = vand.u32 %v2202, 4294901760
      %v2204 = vsub.f32 %v2202, %v2203
      %v2205 = vand.u32 %v2204, 4294901760
      %2206 = vmatpush1.msra.mxu0 %v2205
      %2207 = vmatprep.subr.mxu0 0.0
      %2208 = vmatpush1.msra.mxu0 0.0
      %2209 = vmatprep.subr.mxu0 0.0
      %2210 = vmatpush1.msra.mxu0 0.0
      %2211 = vmatprep.subr.mxu0 0.0
      %2212 = vmatpush1.msra.mxu0 0.0
      %2213 = vmatprep.subr.mxu0 0.0
      %2214 = vmatpush1.msra.mxu0 0.0
      %2215 = vmatprep.subr.mxu0 0.0
      %2216 = vmatpush1.msra.mxu0 0.0
      %2217 = vmatprep.subr.mxu0 0.0
      %2218 = vmatpush1.msra.mxu0 0.0
      %2219 = vmatprep.subr.mxu0 0.0
      %2220 = vmatpush1.msra.mxu0 0.0
      %2221 = vmatprep.subr.mxu0 0.0
      %2222 = vmatpush1.msra.mxu0 0.0
      %2223 = vmatprep.subr.mxu0 0.0
      %2224 = vmatpush1.msra.mxu0 0.0
      %2225 = vmatprep.subr.mxu0 0.0
      %2226 = vmatpush1.msra.mxu0 0.0
      %2227 = vmatprep.subr.mxu0 0.0
      %2228 = vmatpush1.msra.mxu0 0.0
      %2229 = vmatprep.subr.mxu0 0.0
      %2230 = vmatpush1.msra.mxu0 0.0
      %2231 = vmatprep.subr.mxu0 0.0
      %2232 = vmatpush1.msra.mxu0 0.0
      %2233 = vmatprep.subr.mxu0 0.0
      %2234 = vmatpush1.msra.mxu0 0.0
      %2235 = vmatprep.subr.mxu0 0.0
      %2236 = vmatpush1.msra.mxu0 0.0
      %2237 = vmatprep.subr.mxu0 0.0
      %2238 = vmatpush1.msra.mxu0 0.0
      %2239 = vmatprep.subr.mxu0 0.0
      %2240 = vmatpush1.msra.mxu0 0.0
      %2241 = vmatprep.subr.mxu0 0.0
      %2242 = vmatpush1.msra.mxu0 0.0
      %2243 = vmatprep.subr.mxu0 0.0
      %2244 = vmatpush1.msra.mxu0 0.0
      %2245 = vmatprep.subr.mxu0 0.0
      %2246 = vmatpush1.msra.mxu0 0.0
      %2247 = vmatprep.subr.mxu0 0.0
      %2248 = vmatpush1.msra.mxu0 0.0
      %2249 = vmatprep.subr.mxu0 0.0
      %2250 = vmatpush1.msra.mxu0 0.0
      %2251 = vmatprep.subr.mxu0 0.0
      %2252 = vmatpush1.msra.mxu0 0.0
      %2253 = vmatprep.subr.mxu0 0.0
      %2254 = vmatpush1.msra.mxu0 0.0
      %2255 = vmatprep.subr.mxu0 0.0
      %2256 = vmatpush1.msra.mxu0 0.0
      %2257 = vmatprep.subr.mxu0 0.0
      %2258 = vmatpush1.msra.mxu0 0.0
      %2259 = vmatprep.subr.mxu0 0.0
      %2260 = vmatpush1.msra.mxu0 0.0
      %2261 = vmatprep.subr.mxu0 0.0
      %2262 = vmatpush1.msra.mxu0 0.0
      %2263 = vmatprep.subr.mxu0 0.0
      %2264 = vmatpush1.msra.mxu0 0.0
      %2265 = vmatprep.subr.mxu0 0.0
      %2266 = vmatpush1.msra.mxu0 0.0
      %2267 = vmatprep.subr.mxu0 0.0
      %2268 = vmatpush1.msra.mxu0 0.0
      %2269 = vmatprep.mubr.f32.mxu0 0.0
      %v2270 = vand.u32 %v2111, 4294901760
      %2271 = vmatmul.mubr.f32.gmra.mrb[0].mxu0 %v2270
      %v2272 = vpop.f32.mrb[0].mxu0
      %v2273 = vadd.f32 %v2191, %v2272
      %v2274 = vpop.f32.mrb[0].mxu0
      %v2275 = vadd.f32 %v2193, %v2274
      %2276 = vdwg.mxu0
      %v2277 = vand.u32 %v2115, 4294901760
      %v2278 = vsub.f32 %v2115, %v2277
      %2279 = vmatprep.subr.mxu0 %v2278
      %v2280 = vand.u32 %v2113, 4294901760
      %v2281 = vsub.f32 %v2113, %v2280
      %2282 = vmatpush1.msra.mxu0 %v2281
      %2283 = vmatprep.subr.mxu0 0.0
      %2284 = vmatpush1.msra.mxu0 0.0
      %2285 = vmatprep.subr.mxu0 0.0
      %2286 = vmatpush1.msra.mxu0 0.0
      %2287 = vmatprep.subr.mxu0 0.0
      %2288 = vmatpush1.msra.mxu0 0.0
      %2289 = vmatprep.subr.mxu0 0.0
      %2290 = vmatpush1.msra.mxu0 0.0
      %2291 = vmatprep.subr.mxu0 0.0
      %2292 = vmatpush1.msra.mxu0 0.0
      %2293 = vmatprep.subr.mxu0 0.0
      %2294 = vmatpush1.msra.mxu0 0.0
      %2295 = vmatprep.subr.mxu0 0.0
      %2296 = vmatpush1.msra.mxu0 0.0
      %2297 = vmatprep.subr.mxu0 0.0
      %2298 = vmatpush1.msra.mxu0 0.0
      %2299 = vmatprep.subr.mxu0 0.0
      %2300 = vmatpush1.msra.mxu0 0.0
      %2301 = vmatprep.subr.mxu0 0.0
      %2302 = vmatpush1.msra.mxu0 0.0
      %2303 = vmatprep.subr.mxu0 0.0
      %2304 = vmatpush1.msra.mxu0 0.0
      %2305 = vmatprep.subr.mxu0 0.0
      %2306 = vmatpush1.msra.mxu0 0.0
      %2307 = vmatprep.subr.mxu0 0.0
      %2308 = vmatpush1.msra.mxu0 0.0
      %2309 = vmatprep.subr.mxu0 0.0
      %2310 = vmatpush1.msra.mxu0 0.0
      %2311 = vmatprep.subr.mxu0 0.0
      %2312 = vmatpush1.msra.mxu0 0.0
      %2313 = vmatprep.subr.mxu0 0.0
      %2314 = vmatpush1.msra.mxu0 0.0
      %2315 = vmatprep.subr.mxu0 0.0
      %2316 = vmatpush1.msra.mxu0 0.0
      %2317 = vmatprep.subr.mxu0 0.0
      %2318 = vmatpush1.msra.mxu0 0.0
      %2319 = vmatprep.subr.mxu0 0.0
      %2320 = vmatpush1.msra.mxu0 0.0
      %2321 = vmatprep.subr.mxu0 0.0
      %2322 = vmatpush1.msra.mxu0 0.0
      %2323 = vmatprep.subr.mxu0 0.0
      %2324 = vmatpush1.msra.mxu0 0.0
      %2325 = vmatprep.subr.mxu0 0.0
      %2326 = vmatpush1.msra.mxu0 0.0
      %2327 = vmatprep.subr.mxu0 0.0
      %2328 = vmatpush1.msra.mxu0 0.0
      %2329 = vmatprep.subr.mxu0 0.0
      %2330 = vmatpush1.msra.mxu0 0.0
      %2331 = vmatprep.subr.mxu0 0.0
      %2332 = vmatpush1.msra.mxu0 0.0
      %2333 = vmatprep.subr.mxu0 0.0
      %2334 = vmatpush1.msra.mxu0 0.0
      %2335 = vmatprep.subr.mxu0 0.0
      %2336 = vmatpush1.msra.mxu0 0.0
      %2337 = vmatprep.subr.mxu0 0.0
      %2338 = vmatpush1.msra.mxu0 0.0
      %2339 = vmatprep.subr.mxu0 0.0
      %2340 = vmatpush1.msra.mxu0 0.0
      %2341 = vmatprep.subr.mxu0 0.0
      %2342 = vmatpush1.msra.mxu0 0.0
      %2343 = vmatprep.subr.mxu0 0.0
      %2344 = vmatpush1.msra.mxu0 0.0
      %2345 = vmatprep.mubr.f32.mxu0 0.0
      %v2346 = vand.u32 %v2111, 4294901760
      %v2347 = vsub.f32 %v2111, %v2346
      %2348 = vmatmul.mubr.f32.gmra.mrb[0].mxu0 %v2347
      %v2349 = vpop.f32.mrb[0].mxu0
      %v2350 = vadd.f32 %v2273, %v2349
      %v2351 = vpop.f32.mrb[0].mxu0
      %v2352 = vadd.f32 %v2275, %v2351
      %2353 = vdwg.mxu0
      %v2354 = vand.u32 %v2115, 4294901760
      %2355 = vmatprep.subr.mxu0 %v2354
      %v2356 = vand.u32 %v2113, 4294901760
      %2357 = vmatpush1.msra.mxu0 %v2356
      %2358 = vmatprep.subr.mxu0 0.0
      %2359 = vmatpush1.msra.mxu0 0.0
      %2360 = vmatprep.subr.mxu0 0.0
      %2361 = vmatpush1.msra.mxu0 0.0
      %2362 = vmatprep.subr.mxu0 0.0
      %2363 = vmatpush1.msra.mxu0 0.0
      %2364 = vmatprep.subr.mxu0 0.0
      %2365 = vmatpush1.msra.mxu0 0.0
      %2366 = vmatprep.subr.mxu0 0.0
      %2367 = vmatpush1.msra.mxu0 0.0
      %2368 = vmatprep.subr.mxu0 0.0
      %2369 = vmatpush1.msra.mxu0 0.0
      %2370 = vmatprep.subr.mxu0 0.0
      %2371 = vmatpush1.msra.mxu0 0.0
      %2372 = vmatprep.subr.mxu0 0.0
      %2373 = vmatpush1.msra.mxu0 0.0
      %2374 = vmatprep.subr.mxu0 0.0
      %2375 = vmatpush1.msra.mxu0 0.0
      %2376 = vmatprep.subr.mxu0 0.0
      %2377 = vmatpush1.msra.mxu0 0.0
      %2378 = vmatprep.subr.mxu0 0.0
      %2379 = vmatpush1.msra.mxu0 0.0
      %2380 = vmatprep.subr.mxu0 0.0
      %2381 = vmatpush1.msra.mxu0 0.0
      %2382 = vmatprep.subr.mxu0 0.0
      %2383 = vmatpush1.msra.mxu0 0.0
      %2384 = vmatprep.subr.mxu0 0.0
      %2385 = vmatpush1.msra.mxu0 0.0
      %2386 = vmatprep.subr.mxu0 0.0
      %2387 = vmatpush1.msra.mxu0 0.0
      %2388 = vmatprep.subr.mxu0 0.0
      %2389 = vmatpush1.msra.mxu0 0.0
      %2390 = vmatprep.subr.mxu0 0.0
      %2391 = vmatpush1.msra.mxu0 0.0
      %2392 = vmatprep.subr.mxu0 0.0
      %2393 = vmatpush1.msra.mxu0 0.0
      %2394 = vmatprep.subr.mxu0 0.0
      %2395 = vmatpush1.msra.mxu0 0.0
      %2396 = vmatprep.subr.mxu0 0.0
      %2397 = vmatpush1.msra.mxu0 0.0
      %2398 = vmatprep.subr.mxu0 0.0
      %2399 = vmatpush1.msra.mxu0 0.0
      %2400 = vmatprep.subr.mxu0 0.0
      %2401 = vmatpush1.msra.mxu0 0.0
      %2402 = vmatprep.subr.mxu0 0.0
      %2403 = vmatpush1.msra.mxu0 0.0
      %2404 = vmatprep.subr.mxu0 0.0
      %2405 = vmatpush1.msra.mxu0 0.0
      %2406 = vmatprep.subr.mxu0 0.0
      %2407 = vmatpush1.msra.mxu0 0.0
      %2408 = vmatprep.subr.mxu0 0.0
      %2409 = vmatpush1.msra.mxu0 0.0
      %2410 = vmatprep.subr.mxu0 0.0
      %2411 = vmatpush1.msra.mxu0 0.0
      %2412 = vmatprep.subr.mxu0 0.0
      %2413 = vmatpush1.msra.mxu0 0.0
      %2414 = vmatprep.subr.mxu0 0.0
      %2415 = vmatpush1.msra.mxu0 0.0
      %2416 = vmatprep.subr.mxu0 0.0
      %2417 = vmatpush1.msra.mxu0 0.0
      %2418 = vmatprep.subr.mxu0 0.0
      %2419 = vmatpush1.msra.mxu0 0.0
      %2420 = vmatprep.mubr.f32.mxu0 0.0
      %v2421 = vand.u32 %v2111, 4294901760
      %v2422 = vsub.f32 %v2111, %v2421
      %v2423 = vand.u32 %v2422, 4294901760
      %2424 = vmatmul.mubr.f32.gmra.mrb[0].mxu0 %v2423
      %v2425 = vpop.f32.mrb[0].mxu0
      %v2426 = vadd.f32 %v2350, %v2425
      %v2427 = vpop.f32.mrb[0].mxu0
      %v2428 = vadd.f32 %v2352, %v2427
      %2429 = vdwg.mxu0
      %v2430 = vand.u32 %v2115, 4294901760
      %v2431 = vsub.f32 %v2115, %v2430
      %v2432 = vand.u32 %v2431, 4294901760
      %2433 = vmatprep.subr.mxu0 %v2432
      %v2434 = vand.u32 %v2113, 4294901760
      %v2435 = vsub.f32 %v2113, %v2434
      %v2436 = vand.u32 %v2435, 4294901760
      %2437 = vmatpush1.msra.mxu0 %v2436
      %2438 = vmatprep.subr.mxu0 0.0
      %2439 = vmatpush1.msra.mxu0 0.0
      %2440 = vmatprep.subr.mxu0 0.0
      %2441 = vmatpush1.msra.mxu0 0.0
      %2442 = vmatprep.subr.mxu0 0.0
      %2443 = vmatpush1.msra.mxu0 0.0
      %2444 = vmatprep.subr.mxu0 0.0
      %2445 = vmatpush1.msra.mxu0 0.0
      %2446 = vmatprep.subr.mxu0 0.0
      %2447 = vmatpush1.msra.mxu0 0.0
      %2448 = vmatprep.subr.mxu0 0.0
      %2449 = vmatpush1.msra.mxu0 0.0
      %2450 = vmatprep.subr.mxu0 0.0
      %2451 = vmatpush1.msra.mxu0 0.0
      %2452 = vmatprep.subr.mxu0 0.0
      %2453 = vmatpush1.msra.mxu0 0.0
      %2454 = vmatprep.subr.mxu0 0.0
      %2455 = vmatpush1.msra.mxu0 0.0
      %2456 = vmatprep.subr.mxu0 0.0
      %2457 = vmatpush1.msra.mxu0 0.0
      %2458 = vmatprep.subr.mxu0 0.0
      %2459 = vmatpush1.msra.mxu0 0.0
      %2460 = vmatprep.subr.mxu0 0.0
      %2461 = vmatpush1.msra.mxu0 0.0
      %2462 = vmatprep.subr.mxu0 0.0
      %2463 = vmatpush1.msra.mxu0 0.0
      %2464 = vmatprep.subr.mxu0 0.0
      %2465 = vmatpush1.msra.mxu0 0.0
      %2466 = vmatprep.subr.mxu0 0.0
      %2467 = vmatpush1.msra.mxu0 0.0
      %2468 = vmatprep.subr.mxu0 0.0
      %2469 = vmatpush1.msra.mxu0 0.0
      %2470 = vmatprep.subr.mxu0 0.0
      %2471 = vmatpush1.msra.mxu0 0.0
      %2472 = vmatprep.subr.mxu0 0.0
      %2473 = vmatpush1.msra.mxu0 0.0
      %2474 = vmatprep.subr.mxu0 0.0
      %2475 = vmatpush1.msra.mxu0 0.0
      %2476 = vmatprep.subr.mxu0 0.0
      %2477 = vmatpush1.msra.mxu0 0.0
      %2478 = vmatprep.subr.mxu0 0.0
      %2479 = vmatpush1.msra.mxu0 0.0
      %2480 = vmatprep.subr.mxu0 0.0
      %2481 = vmatpush1.msra.mxu0 0.0
      %2482 = vmatprep.subr.mxu0 0.0
      %2483 = vmatpush1.msra.mxu0 0.0
      %2484 = vmatprep.subr.mxu0 0.0
      %2485 = vmatpush1.msra.mxu0 0.0
      %2486 = vmatprep.subr.mxu0 0.0
      %2487 = vmatpush1.msra.mxu0 0.0
      %2488 = vmatprep.subr.mxu0 0.0
      %2489 = vmatpush1.msra.mxu0 0.0
      %2490 = vmatprep.subr.mxu0 0.0
      %2491 = vmatpush1.msra.mxu0 0.0
      %2492 = vmatprep.subr.mxu0 0.0
      %2493 = vmatpush1.msra.mxu0 0.0
      %2494 = vmatprep.subr.mxu0 0.0
      %2495 = vmatpush1.msra.mxu0 0.0
      %2496 = vmatprep.subr.mxu0 0.0
      %2497 = vmatpush1.msra.mxu0 0.0
      %2498 = vmatprep.subr.mxu0 0.0
      %2499 = vmatpush1.msra.mxu0 0.0
      %2500 = vmatprep.mubr.f32.mxu0 0.0
      %v2501 = vand.u32 %v2111, 4294901760
      %2502 = vmatmul.mubr.f32.gmra.mrb[0].mxu0 %v2501
      %v2503 = vpop.f32.mrb[0].mxu0
      %v2504 = vadd.f32 %v2426, %v2503
      %v2505 = vpop.f32.mrb[0].mxu0
      %v2506 = vadd.f32 %v2428, %v2505
      %2507 = vdwg.mxu0
      %v2508 = vand.u32 %v2115, 4294901760
      %2509 = vmatprep.subr.mxu0 %v2508
      %v2510 = vand.u32 %v2113, 4294901760
      %2511 = vmatpush1.msra.mxu0 %v2510
      %2512 = vmatprep.subr.mxu0 0.0
      %2513 = vmatpush1.msra.mxu0 0.0
      %2514 = vmatprep.subr.mxu0 0.0
      %2515 = vmatpush1.msra.mxu0 0.0
      %2516 = vmatprep.subr.mxu0 0.0
      %2517 = vmatpush1.msra.mxu0 0.0
      %2518 = vmatprep.subr.mxu0 0.0
      %2519 = vmatpush1.msra.mxu0 0.0
      %2520 = vmatprep.subr.mxu0 0.0
      %2521 = vmatpush1.msra.mxu0 0.0
      %2522 = vmatprep.subr.mxu0 0.0
      %2523 = vmatpush1.msra.mxu0 0.0
      %2524 = vmatprep.subr.mxu0 0.0
      %2525 = vmatpush1.msra.mxu0 0.0
      %2526 = vmatprep.subr.mxu0 0.0
      %2527 = vmatpush1.msra.mxu0 0.0
      %2528 = vmatprep.subr.mxu0 0.0
      %2529 = vmatpush1.msra.mxu0 0.0
      %2530 = vmatprep.subr.mxu0 0.0
      %2531 = vmatpush1.msra.mxu0 0.0
      %2532 = vmatprep.subr.mxu0 0.0
      %2533 = vmatpush1.msra.mxu0 0.0
      %2534 = vmatprep.subr.mxu0 0.0
      %2535 = vmatpush1.msra.mxu0 0.0
      %2536 = vmatprep.subr.mxu0 0.0
      %2537 = vmatpush1.msra.mxu0 0.0
      %2538 = vmatprep.subr.mxu0 0.0
      %2539 = vmatpush1.msra.mxu0 0.0
      %2540 = vmatprep.subr.mxu0 0.0
      %2541 = vmatpush1.msra.mxu0 0.0
      %2542 = vmatprep.subr.mxu0 0.0
      %2543 = vmatpush1.msra.mxu0 0.0
      %2544 = vmatprep.subr.mxu0 0.0
      %2545 = vmatpush1.msra.mxu0 0.0
      %2546 = vmatprep.subr.mxu0 0.0
      %2547 = vmatpush1.msra.mxu0 0.0
      %2548 = vmatprep.subr.mxu0 0.0
      %2549 = vmatpush1.msra.mxu0 0.0
      %2550 = vmatprep.subr.mxu0 0.0
      %2551 = vmatpush1.msra.mxu0 0.0
      %2552 = vmatprep.subr.mxu0 0.0
      %2553 = vmatpush1.msra.mxu0 0.0
      %2554 = vmatprep.subr.mxu0 0.0
      %2555 = vmatpush1.msra.mxu0 0.0
      %2556 = vmatprep.subr.mxu0 0.0
      %2557 = vmatpush1.msra.mxu0 0.0
      %2558 = vmatprep.subr.mxu0 0.0
      %2559 = vmatpush1.msra.mxu0 0.0
      %2560 = vmatprep.subr.mxu0 0.0
      %2561 = vmatpush1.msra.mxu0 0.0
      %2562 = vmatprep.subr.mxu0 0.0
      %2563 = vmatpush1.msra.mxu0 0.0
      %2564 = vmatprep.subr.mxu0 0.0
      %2565 = vmatpush1.msra.mxu0 0.0
      %2566 = vmatprep.subr.mxu0 0.0
      %2567 = vmatpush1.msra.mxu0 0.0
      %2568 = vmatprep.subr.mxu0 0.0
      %2569 = vmatpush1.msra.mxu0 0.0
      %2570 = vmatprep.subr.mxu0 0.0
      %2571 = vmatpush1.msra.mxu0 0.0
      %2572 = vmatprep.subr.mxu0 0.0
      %2573 = vmatpush1.msra.mxu0 0.0
      %2574 = vmatprep.mubr.f32.mxu0 0.0
      %v2575 = vand.u32 %v2111, 4294901760
      %2576 = vmatmul.mubr.f32.gmra.mrb[0].mxu0 %v2575
      %v2577 = vpop.f32.mrb[0].mxu0
      %v2578 = vadd.f32 %v2504, %v2577
      %v2579 = vpop.f32.mrb[0].mxu0
      %v2580 = vadd.f32 %v2506, %v2579
      %2581 = vdwg.mxu0
      %v2582 = vadd.f32 %v2100, %v2578
      %v2583 = vadd.f32 %v2101, %v2580
      %s2584 = scalar_lea.vmem %s1, 40
      %v2585 = vld [vmem:[%s2584] sm:$0xff]
      %2586 = vrot.lane.b32.xlu0 %v180, 110
      %v2587 = vpop.permute.xlu0 %2586
      %2588 = vrot.lane.b32.xlu0 %v185, 110
      %v2589 = vpop.permute.xlu0 %2588
      %vm2590 = vcmask 900096
      %v2591 = vsel %vm2590, %v2587, %v2589
      %v2593 = vsel %vm192, %v2585, 0
      %v2595 = vsel %vm196, %v2591, 0
      %v2597 = vsel %vm196, %v2589, 0
      %v2599 = vand.u32 %v2597, 4294901760
      %2600 = vmatprep.subr.mxu0 %v2599
      %v2601 = vand.u32 %v2595, 4294901760
      %2602 = vmatpush1.msra.mxu0 %v2601
      %2603 = vmatprep.subr.mxu0 0.0
      %2604 = vmatpush1.msra.mxu0 0.0
      %2605 = vmatprep.subr.mxu0 0.0
      %2606 = vmatpush1.msra.mxu0 0.0
      %2607 = vmatprep.subr.mxu0 0.0
      %2608 = vmatpush1.msra.mxu0 0.0
      %2609 = vmatprep.subr.mxu0 0.0
      %2610 = vmatpush1.msra.mxu0 0.0
      %2611 = vmatprep.subr.mxu0 0.0
      %2612 = vmatpush1.msra.mxu0 0.0
      %2613 = vmatprep.subr.mxu0 0.0
      %2614 = vmatpush1.msra.mxu0 0.0
      %2615 = vmatprep.subr.mxu0 0.0
      %2616 = vmatpush1.msra.mxu0 0.0
      %2617 = vmatprep.subr.mxu0 0.0
      %2618 = vmatpush1.msra.mxu0 0.0
      %2619 = vmatprep.subr.mxu0 0.0
      %2620 = vmatpush1.msra.mxu0 0.0
      %2621 = vmatprep.subr.mxu0 0.0
      %2622 = vmatpush1.msra.mxu0 0.0
      %2623 = vmatprep.subr.mxu0 0.0
      %2624 = vmatpush1.msra.mxu0 0.0
      %2625 = vmatprep.subr.mxu0 0.0
      %2626 = vmatpush1.msra.mxu0 0.0
      %2627 = vmatprep.subr.mxu0 0.0
      %2628 = vmatpush1.msra.mxu0 0.0
      %2629 = vmatprep.subr.mxu0 0.0
      %2630 = vmatpush1.msra.mxu0 0.0
      %2631 = vmatprep.subr.mxu0 0.0
      %2632 = vmatpush1.msra.mxu0 0.0
      %2633 = vmatprep.subr.mxu0 0.0
      %2634 = vmatpush1.msra.mxu0 0.0
      %2635 = vmatprep.subr.mxu0 0.0
      %2636 = vmatpush1.msra.mxu0 0.0
      %2637 = vmatprep.subr.mxu0 0.0
      %2638 = vmatpush1.msra.mxu0 0.0
      %2639 = vmatprep.subr.mxu0 0.0
      %2640 = vmatpush1.msra.mxu0 0.0
      %2641 = vmatprep.subr.mxu0 0.0
      %2642 = vmatpush1.msra.mxu0 0.0
      %2643 = vmatprep.subr.mxu0 0.0
      %2644 = vmatpush1.msra.mxu0 0.0
      %2645 = vmatprep.subr.mxu0 0.0
      %2646 = vmatpush1.msra.mxu0 0.0
      %2647 = vmatprep.subr.mxu0 0.0
      %2648 = vmatpush1.msra.mxu0 0.0
      %2649 = vmatprep.subr.mxu0 0.0
      %2650 = vmatpush1.msra.mxu0 0.0
      %2651 = vmatprep.subr.mxu0 0.0
      %2652 = vmatpush1.msra.mxu0 0.0
      %2653 = vmatprep.subr.mxu0 0.0
      %2654 = vmatpush1.msra.mxu0 0.0
      %2655 = vmatprep.subr.mxu0 0.0
      %2656 = vmatpush1.msra.mxu0 0.0
      %2657 = vmatprep.subr.mxu0 0.0
      %2658 = vmatpush1.msra.mxu0 0.0
      %2659 = vmatprep.subr.mxu0 0.0
      %2660 = vmatpush1.msra.mxu0 0.0
      %2661 = vmatprep.subr.mxu0 0.0
      %2662 = vmatpush1.msra.mxu0 0.0
      %2663 = vmatprep.subr.mxu0 0.0
      %2664 = vmatpush1.msra.mxu0 0.0
      %2665 = vmatprep.mubr.f32.mxu0 0.0
      %v2666 = vand.u32 %v2593, 4294901760
      %v2667 = vsub.f32 %v2593, %v2666
      %v2668 = vand.u32 %v2667, 4294901760
      %v2669 = vsub.f32 %v2667, %v2668
      %v2670 = vand.u32 %v2669, 4294901760
      %2671 = vmatmul.mubr.f32.gmra.mrb[0].mxu0 %v2670
      %v2672 = vpop.f32.mrb[0].mxu0
      %v2673 = vadd.f32 0.0, %v2672
      %v2674 = vpop.f32.mrb[0].mxu0
      %v2675 = vadd.f32 0.0, %v2674
      %2676 = vdwg.mxu0
      %v2677 = vand.u32 %v2597, 4294901760
      %v2678 = vsub.f32 %v2597, %v2677
      %v2679 = vand.u32 %v2678, 4294901760
      %v2680 = vsub.f32 %v2678, %v2679
      %v2681 = vand.u32 %v2680, 4294901760
      %2682 = vmatprep.subr.mxu0 %v2681
      %v2683 = vand.u32 %v2595, 4294901760
      %v2684 = vsub.f32 %v2595, %v2683
      %v2685 = vand.u32 %v2684, 4294901760
      %v2686 = vsub.f32 %v2684, %v2685
      %v2687 = vand.u32 %v2686, 4294901760
      %2688 = vmatpush1.msra.mxu0 %v2687
      %2689 = vmatprep.subr.mxu0 0.0
      %2690 = vmatpush1.msra.mxu0 0.0
      %2691 = vmatprep.subr.mxu0 0.0
      %2692 = vmatpush1.msra.mxu0 0.0
      %2693 = vmatprep.subr.mxu0 0.0
      %2694 = vmatpush1.msra.mxu0 0.0
      %2695 = vmatprep.subr.mxu0 0.0
      %2696 = vmatpush1.msra.mxu0 0.0
      %2697 = vmatprep.subr.mxu0 0.0
      %2698 = vmatpush1.msra.mxu0 0.0
      %2699 = vmatprep.subr.mxu0 0.0
      %2700 = vmatpush1.msra.mxu0 0.0
      %2701 = vmatprep.subr.mxu0 0.0
      %2702 = vmatpush1.msra.mxu0 0.0
      %2703 = vmatprep.subr.mxu0 0.0
      %2704 = vmatpush1.msra.mxu0 0.0
      %2705 = vmatprep.subr.mxu0 0.0
      %2706 = vmatpush1.msra.mxu0 0.0
      %2707 = vmatprep.subr.mxu0 0.0
      %2708 = vmatpush1.msra.mxu0 0.0
      %2709 = vmatprep.subr.mxu0 0.0
      %2710 = vmatpush1.msra.mxu0 0.0
      %2711 = vmatprep.subr.mxu0 0.0
      %2712 = vmatpush1.msra.mxu0 0.0
      %2713 = vmatprep.subr.mxu0 0.0
      %2714 = vmatpush1.msra.mxu0 0.0
      %2715 = vmatprep.subr.mxu0 0.0
      %2716 = vmatpush1.msra.mxu0 0.0
      %2717 = vmatprep.subr.mxu0 0.0
      %2718 = vmatpush1.msra.mxu0 0.0
      %2719 = vmatprep.subr.mxu0 0.0
      %2720 = vmatpush1.msra.mxu0 0.0
      %2721 = vmatprep.subr.mxu0 0.0
      %2722 = vmatpush1.msra.mxu0 0.0
      %2723 = vmatprep.subr.mxu0 0.0
      %2724 = vmatpush1.msra.mxu0 0.0
      %2725 = vmatprep.subr.mxu0 0.0
      %2726 = vmatpush1.msra.mxu0 0.0
      %2727 = vmatprep.subr.mxu0 0.0
      %2728 = vmatpush1.msra.mxu0 0.0
      %2729 = vmatprep.subr.mxu0 0.0
      %2730 = vmatpush1.msra.mxu0 0.0
      %2731 = vmatprep.subr.mxu0 0.0
      %2732 = vmatpush1.msra.mxu0 0.0
      %2733 = vmatprep.subr.mxu0 0.0
      %2734 = vmatpush1.msra.mxu0 0.0
      %2735 = vmatprep.subr.mxu0 0.0
      %2736 = vmatpush1.msra.mxu0 0.0
      %2737 = vmatprep.subr.mxu0 0.0
      %2738 = vmatpush1.msra.mxu0 0.0
      %2739 = vmatprep.subr.mxu0 0.0
      %2740 = vmatpush1.msra.mxu0 0.0
      %2741 = vmatprep.subr.mxu0 0.0
      %2742 = vmatpush1.msra.mxu0 0.0
      %2743 = vmatprep.subr.mxu0 0.0
      %2744 = vmatpush1.msra.mxu0 0.0
      %2745 = vmatprep.subr.mxu0 0.0
      %2746 = vmatpush1.msra.mxu0 0.0
      %2747 = vmatprep.subr.mxu0 0.0
      %2748 = vmatpush1.msra.mxu0 0.0
      %2749 = vmatprep.subr.mxu0 0.0
      %2750 = vmatpush1.msra.mxu0 0.0
      %2751 = vmatprep.mubr.f32.mxu0 0.0
      %v2752 = vand.u32 %v2593, 4294901760
      %2753 = vmatmul.mubr.f32.gmra.mrb[0].mxu0 %v2752
      %v2754 = vpop.f32.mrb[0].mxu0
      %v2755 = vadd.f32 %v2673, %v2754
      %v2756 = vpop.f32.mrb[0].mxu0
      %v2757 = vadd.f32 %v2675, %v2756
      %2758 = vdwg.mxu0
      %v2759 = vand.u32 %v2597, 4294901760
      %v2760 = vsub.f32 %v2597, %v2759
      %2761 = vmatprep.subr.mxu0 %v2760
      %v2762 = vand.u32 %v2595, 4294901760
      %v2763 = vsub.f32 %v2595, %v2762
      %2764 = vmatpush1.msra.mxu0 %v2763
      %2765 = vmatprep.subr.mxu0 0.0
      %2766 = vmatpush1.msra.mxu0 0.0
      %2767 = vmatprep.subr.mxu0 0.0
      %2768 = vmatpush1.msra.mxu0 0.0
      %2769 = vmatprep.subr.mxu0 0.0
      %2770 = vmatpush1.msra.mxu0 0.0
      %2771 = vmatprep.subr.mxu0 0.0
      %2772 = vmatpush1.msra.mxu0 0.0
      %2773 = vmatprep.subr.mxu0 0.0
      %2774 = vmatpush1.msra.mxu0 0.0
      %2775 = vmatprep.subr.mxu0 0.0
      %2776 = vmatpush1.msra.mxu0 0.0
      %2777 = vmatprep.subr.mxu0 0.0
      %2778 = vmatpush1.msra.mxu0 0.0
      %2779 = vmatprep.subr.mxu0 0.0
      %2780 = vmatpush1.msra.mxu0 0.0
      %2781 = vmatprep.subr.mxu0 0.0
      %2782 = vmatpush1.msra.mxu0 0.0
      %2783 = vmatprep.subr.mxu0 0.0
      %2784 = vmatpush1.msra.mxu0 0.0
      %2785 = vmatprep.subr.mxu0 0.0
      %2786 = vmatpush1.msra.mxu0 0.0
      %2787 = vmatprep.subr.mxu0 0.0
      %2788 = vmatpush1.msra.mxu0 0.0
      %2789 = vmatprep.subr.mxu0 0.0
      %2790 = vmatpush1.msra.mxu0 0.0
      %2791 = vmatprep.subr.mxu0 0.0
      %2792 = vmatpush1.msra.mxu0 0.0
      %2793 = vmatprep.subr.mxu0 0.0
      %2794 = vmatpush1.msra.mxu0 0.0
      %2795 = vmatprep.subr.mxu0 0.0
      %2796 = vmatpush1.msra.mxu0 0.0
      %2797 = vmatprep.subr.mxu0 0.0
      %2798 = vmatpush1.msra.mxu0 0.0
      %2799 = vmatprep.subr.mxu0 0.0
      %2800 = vmatpush1.msra.mxu0 0.0
      %2801 = vmatprep.subr.mxu0 0.0
      %2802 = vmatpush1.msra.mxu0 0.0
      %2803 = vmatprep.subr.mxu0 0.0
      %2804 = vmatpush1.msra.mxu0 0.0
      %2805 = vmatprep.subr.mxu0 0.0
      %2806 = vmatpush1.msra.mxu0 0.0
      %2807 = vmatprep.subr.mxu0 0.0
      %2808 = vmatpush1.msra.mxu0 0.0
      %2809 = vmatprep.subr.mxu0 0.0
      %2810 = vmatpush1.msra.mxu0 0.0
      %2811 = vmatprep.subr.mxu0 0.0
      %2812 = vmatpush1.msra.mxu0 0.0
      %2813 = vmatprep.subr.mxu0 0.0
      %2814 = vmatpush1.msra.mxu0 0.0
      %2815 = vmatprep.subr.mxu0 0.0
      %2816 = vmatpush1.msra.mxu0 0.0
      %2817 = vmatprep.subr.mxu0 0.0
      %2818 = vmatpush1.msra.mxu0 0.0
      %2819 = vmatprep.subr.mxu0 0.0
      %2820 = vmatpush1.msra.mxu0 0.0
      %2821 = vmatprep.subr.mxu0 0.0
      %2822 = vmatpush1.msra.mxu0 0.0
      %2823 = vmatprep.subr.mxu0 0.0
      %2824 = vmatpush1.msra.mxu0 0.0
      %2825 = vmatprep.subr.mxu0 0.0
      %2826 = vmatpush1.msra.mxu0 0.0
      %2827 = vmatprep.mubr.f32.mxu0 0.0
      %v2828 = vand.u32 %v2593, 4294901760
      %v2829 = vsub.f32 %v2593, %v2828
      %2830 = vmatmul.mubr.f32.gmra.mrb[0].mxu0 %v2829
      %v2831 = vpop.f32.mrb[0].mxu0
      %v2832 = vadd.f32 %v2755, %v2831
      %v2833 = vpop.f32.mrb[0].mxu0
      %v2834 = vadd.f32 %v2757, %v2833
      %2835 = vdwg.mxu0
      %v2836 = vand.u32 %v2597, 4294901760
      %2837 = vmatprep.subr.mxu0 %v2836
      %v2838 = vand.u32 %v2595, 4294901760
      %2839 = vmatpush1.msra.mxu0 %v2838
      %2840 = vmatprep.subr.mxu0 0.0
      %2841 = vmatpush1.msra.mxu0 0.0
      %2842 = vmatprep.subr.mxu0 0.0
      %2843 = vmatpush1.msra.mxu0 0.0
      %2844 = vmatprep.subr.mxu0 0.0
      %2845 = vmatpush1.msra.mxu0 0.0
      %2846 = vmatprep.subr.mxu0 0.0
      %2847 = vmatpush1.msra.mxu0 0.0
      %2848 = vmatprep.subr.mxu0 0.0
      %2849 = vmatpush1.msra.mxu0 0.0
      %2850 = vmatprep.subr.mxu0 0.0
      %2851 = vmatpush1.msra.mxu0 0.0
      %2852 = vmatprep.subr.mxu0 0.0
      %2853 = vmatpush1.msra.mxu0 0.0
      %2854 = vmatprep.subr.mxu0 0.0
      %2855 = vmatpush1.msra.mxu0 0.0
      %2856 = vmatprep.subr.mxu0 0.0
      %2857 = vmatpush1.msra.mxu0 0.0
      %2858 = vmatprep.subr.mxu0 0.0
      %2859 = vmatpush1.msra.mxu0 0.0
      %2860 = vmatprep.subr.mxu0 0.0
      %2861 = vmatpush1.msra.mxu0 0.0
      %2862 = vmatprep.subr.mxu0 0.0
      %2863 = vmatpush1.msra.mxu0 0.0
      %2864 = vmatprep.subr.mxu0 0.0
      %2865 = vmatpush1.msra.mxu0 0.0
      %2866 = vmatprep.subr.mxu0 0.0
      %2867 = vmatpush1.msra.mxu0 0.0
      %2868 = vmatprep.subr.mxu0 0.0
      %2869 = vmatpush1.msra.mxu0 0.0
      %2870 = vmatprep.subr.mxu0 0.0
      %2871 = vmatpush1.msra.mxu0 0.0
      %2872 = vmatprep.subr.mxu0 0.0
      %2873 = vmatpush1.msra.mxu0 0.0
      %2874 = vmatprep.subr.mxu0 0.0
      %2875 = vmatpush1.msra.mxu0 0.0
      %2876 = vmatprep.subr.mxu0 0.0
      %2877 = vmatpush1.msra.mxu0 0.0
      %2878 = vmatprep.subr.mxu0 0.0
      %2879 = vmatpush1.msra.mxu0 0.0
      %2880 = vmatprep.subr.mxu0 0.0
      %2881 = vmatpush1.msra.mxu0 0.0
      %2882 = vmatprep.subr.mxu0 0.0
      %2883 = vmatpush1.msra.mxu0 0.0
      %2884 = vmatprep.subr.mxu0 0.0
      %2885 = vmatpush1.msra.mxu0 0.0
      %2886 = vmatprep.subr.mxu0 0.0
      %2887 = vmatpush1.msra.mxu0 0.0
      %2888 = vmatprep.subr.mxu0 0.0
      %2889 = vmatpush1.msra.mxu0 0.0
      %2890 = vmatprep.subr.mxu0 0.0
      %2891 = vmatpush1.msra.mxu0 0.0
      %2892 = vmatprep.subr.mxu0 0.0
      %2893 = vmatpush1.msra.mxu0 0.0
      %2894 = vmatprep.subr.mxu0 0.0
      %2895 = vmatpush1.msra.mxu0 0.0
      %2896 = vmatprep.subr.mxu0 0.0
      %2897 = vmatpush1.msra.mxu0 0.0
      %2898 = vmatprep.subr.mxu0 0.0
      %2899 = vmatpush1.msra.mxu0 0.0
      %2900 = vmatprep.subr.mxu0 0.0
      %2901 = vmatpush1.msra.mxu0 0.0
      %2902 = vmatprep.mubr.f32.mxu0 0.0
      %v2903 = vand.u32 %v2593, 4294901760
      %v2904 = vsub.f32 %v2593, %v2903
      %v2905 = vand.u32 %v2904, 4294901760
      %2906 = vmatmul.mubr.f32.gmra.mrb[0].mxu0 %v2905
      %v2907 = vpop.f32.mrb[0].mxu0
      %v2908 = vadd.f32 %v2832, %v2907
      %v2909 = vpop.f32.mrb[0].mxu0
      %v2910 = vadd.f32 %v2834, %v2909
      %2911 = vdwg.mxu0
      %v2912 = vand.u32 %v2597, 4294901760
      %v2913 = vsub.f32 %v2597, %v2912
      %v2914 = vand.u32 %v2913, 4294901760
      %2915 = vmatprep.subr.mxu0 %v2914
      %v2916 = vand.u32 %v2595, 4294901760
      %v2917 = vsub.f32 %v2595, %v2916
      %v2918 = vand.u32 %v2917, 4294901760
      %2919 = vmatpush1.msra.mxu0 %v2918
      %2920 = vmatprep.subr.mxu0 0.0
      %2921 = vmatpush1.msra.mxu0 0.0
      %2922 = vmatprep.subr.mxu0 0.0
      %2923 = vmatpush1.msra.mxu0 0.0
      %2924 = vmatprep.subr.mxu0 0.0
      %2925 = vmatpush1.msra.mxu0 0.0
      %2926 = vmatprep.subr.mxu0 0.0
      %2927 = vmatpush1.msra.mxu0 0.0
      %2928 = vmatprep.subr.mxu0 0.0
      %2929 = vmatpush1.msra.mxu0 0.0
      %2930 = vmatprep.subr.mxu0 0.0
      %2931 = vmatpush1.msra.mxu0 0.0
      %2932 = vmatprep.subr.mxu0 0.0
      %2933 = vmatpush1.msra.mxu0 0.0
      %2934 = vmatprep.subr.mxu0 0.0
      %2935 = vmatpush1.msra.mxu0 0.0
      %2936 = vmatprep.subr.mxu0 0.0
      %2937 = vmatpush1.msra.mxu0 0.0
      %2938 = vmatprep.subr.mxu0 0.0
      %2939 = vmatpush1.msra.mxu0 0.0
      %2940 = vmatprep.subr.mxu0 0.0
      %2941 = vmatpush1.msra.mxu0 0.0
      %2942 = vmatprep.subr.mxu0 0.0
      %2943 = vmatpush1.msra.mxu0 0.0
      %2944 = vmatprep.subr.mxu0 0.0
      %2945 = vmatpush1.msra.mxu0 0.0
      %2946 = vmatprep.subr.mxu0 0.0
      %2947 = vmatpush1.msra.mxu0 0.0
      %2948 = vmatprep.subr.mxu0 0.0
      %2949 = vmatpush1.msra.mxu0 0.0
      %2950 = vmatprep.subr.mxu0 0.0
      %2951 = vmatpush1.msra.mxu0 0.0
      %2952 = vmatprep.subr.mxu0 0.0
      %2953 = vmatpush1.msra.mxu0 0.0
      %2954 = vmatprep.subr.mxu0 0.0
      %2955 = vmatpush1.msra.mxu0 0.0
      %2956 = vmatprep.subr.mxu0 0.0
      %2957 = vmatpush1.msra.mxu0 0.0
      %2958 = vmatprep.subr.mxu0 0.0
      %2959 = vmatpush1.msra.mxu0 0.0
      %2960 = vmatprep.subr.mxu0 0.0
      %2961 = vmatpush1.msra.mxu0 0.0
      %2962 = vmatprep.subr.mxu0 0.0
      %2963 = vmatpush1.msra.mxu0 0.0
      %2964 = vmatprep.subr.mxu0 0.0
      %2965 = vmatpush1.msra.mxu0 0.0
      %2966 = vmatprep.subr.mxu0 0.0
      %2967 = vmatpush1.msra.mxu0 0.0
      %2968 = vmatprep.subr.mxu0 0.0
      %2969 = vmatpush1.msra.mxu0 0.0
      %2970 = vmatprep.subr.mxu0 0.0
      %2971 = vmatpush1.msra.mxu0 0.0
      %2972 = vmatprep.subr.mxu0 0.0
      %2973 = vmatpush1.msra.mxu0 0.0
      %2974 = vmatprep.subr.mxu0 0.0
      %2975 = vmatpush1.msra.mxu0 0.0
      %2976 = vmatprep.subr.mxu0 0.0
      %2977 = vmatpush1.msra.mxu0 0.0
      %2978 = vmatprep.subr.mxu0 0.0
      %2979 = vmatpush1.msra.mxu0 0.0
      %2980 = vmatprep.subr.mxu0 0.0
      %2981 = vmatpush1.msra.mxu0 0.0
      %2982 = vmatprep.mubr.f32.mxu0 0.0
      %v2983 = vand.u32 %v2593, 4294901760
      %2984 = vmatmul.mubr.f32.gmra.mrb[0].mxu0 %v2983
      %v2985 = vpop.f32.mrb[0].mxu0
      %v2986 = vadd.f32 %v2908, %v2985
      %v2987 = vpop.f32.mrb[0].mxu0
      %v2988 = vadd.f32 %v2910, %v2987
      %2989 = vdwg.mxu0
      %v2990 = vand.u32 %v2597, 4294901760
      %2991 = vmatprep.subr.mxu0 %v2990
      %v2992 = vand.u32 %v2595, 4294901760
      %2993 = vmatpush1.msra.mxu0 %v2992
      %2994 = vmatprep.subr.mxu0 0.0
      %2995 = vmatpush1.msra.mxu0 0.0
      %2996 = vmatprep.subr.mxu0 0.0
      %2997 = vmatpush1.msra.mxu0 0.0
      %2998 = vmatprep.subr.mxu0 0.0
      %2999 = vmatpush1.msra.mxu0 0.0
      %3000 = vmatprep.subr.mxu0 0.0
      %3001 = vmatpush1.msra.mxu0 0.0
      %3002 = vmatprep.subr.mxu0 0.0
      %3003 = vmatpush1.msra.mxu0 0.0
      %3004 = vmatprep.subr.mxu0 0.0
      %3005 = vmatpush1.msra.mxu0 0.0
      %3006 = vmatprep.subr.mxu0 0.0
      %3007 = vmatpush1.msra.mxu0 0.0
      %3008 = vmatprep.subr.mxu0 0.0
      %3009 = vmatpush1.msra.mxu0 0.0
      %3010 = vmatprep.subr.mxu0 0.0
      %3011 = vmatpush1.msra.mxu0 0.0
      %3012 = vmatprep.subr.mxu0 0.0
      %3013 = vmatpush1.msra.mxu0 0.0
      %3014 = vmatprep.subr.mxu0 0.0
      %3015 = vmatpush1.msra.mxu0 0.0
      %3016 = vmatprep.subr.mxu0 0.0
      %3017 = vmatpush1.msra.mxu0 0.0
      %3018 = vmatprep.subr.mxu0 0.0
      %3019 = vmatpush1.msra.mxu0 0.0
      %3020 = vmatprep.subr.mxu0 0.0
      %3021 = vmatpush1.msra.mxu0 0.0
      %3022 = vmatprep.subr.mxu0 0.0
      %3023 = vmatpush1.msra.mxu0 0.0
      %3024 = vmatprep.subr.mxu0 0.0
      %3025 = vmatpush1.msra.mxu0 0.0
      %3026 = vmatprep.subr.mxu0 0.0
      %3027 = vmatpush1.msra.mxu0 0.0
      %3028 = vmatprep.subr.mxu0 0.0
      %3029 = vmatpush1.msra.mxu0 0.0
      %3030 = vmatprep.subr.mxu0 0.0
      %3031 = vmatpush1.msra.mxu0 0.0
      %3032 = vmatprep.subr.mxu0 0.0
      %3033 = vmatpush1.msra.mxu0 0.0
      %3034 = vmatprep.subr.mxu0 0.0
      %3035 = vmatpush1.msra.mxu0 0.0
      %3036 = vmatprep.subr.mxu0 0.0
      %3037 = vmatpush1.msra.mxu0 0.0
      %3038 = vmatprep.subr.mxu0 0.0
      %3039 = vmatpush1.msra.mxu0 0.0
      %3040 = vmatprep.subr.mxu0 0.0
      %3041 = vmatpush1.msra.mxu0 0.0
      %3042 = vmatprep.subr.mxu0 0.0
      %3043 = vmatpush1.msra.mxu0 0.0
      %3044 = vmatprep.subr.mxu0 0.0
      %3045 = vmatpush1.msra.mxu0 0.0
      %3046 = vmatprep.subr.mxu0 0.0
      %3047 = vmatpush1.msra.mxu0 0.0
      %3048 = vmatprep.subr.mxu0 0.0
      %3049 = vmatpush1.msra.mxu0 0.0
      %3050 = vmatprep.subr.mxu0 0.0
      %3051 = vmatpush1.msra.mxu0 0.0
      %3052 = vmatprep.subr.mxu0 0.0
      %3053 = vmatpush1.msra.mxu0 0.0
      %3054 = vmatprep.subr.mxu0 0.0
      %3055 = vmatpush1.msra.mxu0 0.0
      %3056 = vmatprep.mubr.f32.mxu0 0.0
      %v3057 = vand.u32 %v2593, 4294901760
      %3058 = vmatmul.mubr.f32.gmra.mrb[0].mxu0 %v3057
      %v3059 = vpop.f32.mrb[0].mxu0
      %v3060 = vadd.f32 %v2986, %v3059
      %v3061 = vpop.f32.mrb[0].mxu0
      %v3062 = vadd.f32 %v2988, %v3061
      %3063 = vdwg.mxu0
      %v3064 = vadd.f32 %v2582, %v3060
      %v3065 = vadd.f32 %v2583, %v3062
      %s3066 = scalar_lea.vmem %s1, 48
      %v3067 = vld [vmem:[%s3066] sm:$0xff]
      %3068 = vrot.lane.b32.xlu0 %v180, 96
      %v3069 = vpop.permute.xlu0 %3068
      %3070 = vrot.lane.b32.xlu0 %v185, 96
      %v3071 = vpop.permute.xlu0 %3070
      %vm3072 = vcmask 785408
      %v3073 = vsel %vm3072, %v3069, %v3071
      %v3075 = vsel %vm192, %v3067, 0
      %v3077 = vsel %vm196, %v3073, 0
      %v3079 = vsel %vm196, %v3071, 0
      %v3081 = vand.u32 %v3079, 4294901760
      %3082 = vmatprep.subr.mxu0 %v3081
      %v3083 = vand.u32 %v3077, 4294901760
      %3084 = vmatpush1.msra.mxu0 %v3083
      %3085 = vmatprep.subr.mxu0 0.0
      %3086 = vmatpush1.msra.mxu0 0.0
      %3087 = vmatprep.subr.mxu0 0.0
      %3088 = vmatpush1.msra.mxu0 0.0
      %3089 = vmatprep.subr.mxu0 0.0
      %3090 = vmatpush1.msra.mxu0 0.0
      %3091 = vmatprep.subr.mxu0 0.0
      %3092 = vmatpush1.msra.mxu0 0.0
      %3093 = vmatprep.subr.mxu0 0.0
      %3094 = vmatpush1.msra.mxu0 0.0
      %3095 = vmatprep.subr.mxu0 0.0
      %3096 = vmatpush1.msra.mxu0 0.0
      %3097 = vmatprep.subr.mxu0 0.0
      %3098 = vmatpush1.msra.mxu0 0.0
      %3099 = vmatprep.subr.mxu0 0.0
      %3100 = vmatpush1.msra.mxu0 0.0
      %3101 = vmatprep.subr.mxu0 0.0
      %3102 = vmatpush1.msra.mxu0 0.0
      %3103 = vmatprep.subr.mxu0 0.0
      %3104 = vmatpush1.msra.mxu0 0.0
      %3105 = vmatprep.subr.mxu0 0.0
      %3106 = vmatpush1.msra.mxu0 0.0
      %3107 = vmatprep.subr.mxu0 0.0
      %3108 = vmatpush1.msra.mxu0 0.0
      %3109 = vmatprep.subr.mxu0 0.0
      %3110 = vmatpush1.msra.mxu0 0.0
      %3111 = vmatprep.subr.mxu0 0.0
      %3112 = vmatpush1.msra.mxu0 0.0
      %3113 = vmatprep.subr.mxu0 0.0
      %3114 = vmatpush1.msra.mxu0 0.0
      %3115 = vmatprep.subr.mxu0 0.0
      %3116 = vmatpush1.msra.mxu0 0.0
      %3117 = vmatprep.subr.mxu0 0.0
      %3118 = vmatpush1.msra.mxu0 0.0
      %3119 = vmatprep.subr.mxu0 0.0
      %3120 = vmatpush1.msra.mxu0 0.0
      %3121 = vmatprep.subr.mxu0 0.0
      %3122 = vmatpush1.msra.mxu0 0.0
      %3123 = vmatprep.subr.mxu0 0.0
      %3124 = vmatpush1.msra.mxu0 0.0
      %3125 = vmatprep.subr.mxu0 0.0
      %3126 = vmatpush1.msra.mxu0 0.0
      %3127 = vmatprep.subr.mxu0 0.0
      %3128 = vmatpush1.msra.mxu0 0.0
      %3129 = vmatprep.subr.mxu0 0.0
      %3130 = vmatpush1.msra.mxu0 0.0
      %3131 = vmatprep.subr.mxu0 0.0
      %3132 = vmatpush1.msra.mxu0 0.0
      %3133 = vmatprep.subr.mxu0 0.0
      %3134 = vmatpush1.msra.mxu0 0.0
      %3135 = vmatprep.subr.mxu0 0.0
      %3136 = vmatpush1.msra.mxu0 0.0
      %3137 = vmatprep.subr.mxu0 0.0
      %3138 = vmatpush1.msra.mxu0 0.0
      %3139 = vmatprep.subr.mxu0 0.0
      %3140 = vmatpush1.msra.mxu0 0.0
      %3141 = vmatprep.subr.mxu0 0.0
      %3142 = vmatpush1.msra.mxu0 0.0
      %3143 = vmatprep.subr.mxu0 0.0
      %3144 = vmatpush1.msra.mxu0 0.0
      %3145 = vmatprep.subr.mxu0 0.0
      %3146 = vmatpush1.msra.mxu0 0.0
      %3147 = vmatprep.mubr.f32.mxu0 0.0
      %v3148 = vand.u32 %v3075, 4294901760
      %v3149 = vsub.f32 %v3075, %v3148
      %v3150 = vand.u32 %v3149, 4294901760
      %v3151 = vsub.f32 %v3149, %v3150
      %v3152 = vand.u32 %v3151, 4294901760
      %3153 = vmatmul.mubr.f32.gmra.mrb[0].mxu0 %v3152
      %v3154 = vpop.f32.mrb[0].mxu0
      %v3155 = vadd.f32 0.0, %v3154
      %v3156 = vpop.f32.mrb[0].mxu0
      %v3157 = vadd.f32 0.0, %v3156
      %3158 = vdwg.mxu0
      %v3159 = vand.u32 %v3079, 4294901760
      %v3160 = vsub.f32 %v3079, %v3159
      %v3161 = vand.u32 %v3160, 4294901760
      %v3162 = vsub.f32 %v3160, %v3161
      %v3163 = vand.u32 %v3162, 4294901760
      %3164 = vmatprep.subr.mxu0 %v3163
      %v3165 = vand.u32 %v3077, 4294901760
      %v3166 = vsub.f32 %v3077, %v3165
      %v3167 = vand.u32 %v3166, 4294901760
      %v3168 = vsub.f32 %v3166, %v3167
      %v3169 = vand.u32 %v3168, 4294901760
      %3170 = vmatpush1.msra.mxu0 %v3169
      %3171 = vmatprep.subr.mxu0 0.0
      %3172 = vmatpush1.msra.mxu0 0.0
      %3173 = vmatprep.subr.mxu0 0.0
      %3174 = vmatpush1.msra.mxu0 0.0
      %3175 = vmatprep.subr.mxu0 0.0
      %3176 = vmatpush1.msra.mxu0 0.0
      %3177 = vmatprep.subr.mxu0 0.0
      %3178 = vmatpush1.msra.mxu0 0.0
      %3179 = vmatprep.subr.mxu0 0.0
      %3180 = vmatpush1.msra.mxu0 0.0
      %3181 = vmatprep.subr.mxu0 0.0
      %3182 = vmatpush1.msra.mxu0 0.0
      %3183 = vmatprep.subr.mxu0 0.0
      %3184 = vmatpush1.msra.mxu0 0.0
      %3185 = vmatprep.subr.mxu0 0.0
      %3186 = vmatpush1.msra.mxu0 0.0
      %3187 = vmatprep.subr.mxu0 0.0
      %3188 = vmatpush1.msra.mxu0 0.0
      %3189 = vmatprep.subr.mxu0 0.0
      %3190 = vmatpush1.msra.mxu0 0.0
      %3191 = vmatprep.subr.mxu0 0.0
      %3192 = vmatpush1.msra.mxu0 0.0
      %3193 = vmatprep.subr.mxu0 0.0
      %3194 = vmatpush1.msra.mxu0 0.0
      %3195 = vmatprep.subr.mxu0 0.0
      %3196 = vmatpush1.msra.mxu0 0.0
      %3197 = vmatprep.subr.mxu0 0.0
      %3198 = vmatpush1.msra.mxu0 0.0
      %3199 = vmatprep.subr.mxu0 0.0
      %3200 = vmatpush1.msra.mxu0 0.0
      %3201 = vmatprep.subr.mxu0 0.0
      %3202 = vmatpush1.msra.mxu0 0.0
      %3203 = vmatprep.subr.mxu0 0.0
      %3204 = vmatpush1.msra.mxu0 0.0
      %3205 = vmatprep.subr.mxu0 0.0
      %3206 = vmatpush1.msra.mxu0 0.0
      %3207 = vmatprep.subr.mxu0 0.0
      %3208 = vmatpush1.msra.mxu0 0.0
      %3209 = vmatprep.subr.mxu0 0.0
      %3210 = vmatpush1.msra.mxu0 0.0
      %3211 = vmatprep.subr.mxu0 0.0
      %3212 = vmatpush1.msra.mxu0 0.0
      %3213 = vmatprep.subr.mxu0 0.0
      %3214 = vmatpush1.msra.mxu0 0.0
      %3215 = vmatprep.subr.mxu0 0.0
      %3216 = vmatpush1.msra.mxu0 0.0
      %3217 = vmatprep.subr.mxu0 0.0
      %3218 = vmatpush1.msra.mxu0 0.0
      %3219 = vmatprep.subr.mxu0 0.0
      %3220 = vmatpush1.msra.mxu0 0.0
      %3221 = vmatprep.subr.mxu0 0.0
      %3222 = vmatpush1.msra.mxu0 0.0
      %3223 = vmatprep.subr.mxu0 0.0
      %3224 = vmatpush1.msra.mxu0 0.0
      %3225 = vmatprep.subr.mxu0 0.0
      %3226 = vmatpush1.msra.mxu0 0.0
      %3227 = vmatprep.subr.mxu0 0.0
      %3228 = vmatpush1.msra.mxu0 0.0
      %3229 = vmatprep.subr.mxu0 0.0
      %3230 = vmatpush1.msra.mxu0 0.0
      %3231 = vmatprep.subr.mxu0 0.0
      %3232 = vmatpush1.msra.mxu0 0.0
      %3233 = vmatprep.mubr.f32.mxu0 0.0
      %v3234 = vand.u32 %v3075, 4294901760
      %3235 = vmatmul.mubr.f32.gmra.mrb[0].mxu0 %v3234
      %v3236 = vpop.f32.mrb[0].mxu0
      %v3237 = vadd.f32 %v3155, %v3236
      %v3238 = vpop.f32.mrb[0].mxu0
      %v3239 = vadd.f32 %v3157, %v3238
      %3240 = vdwg.mxu0
      %v3241 = vand.u32 %v3079, 4294901760
      %v3242 = vsub.f32 %v3079, %v3241
      %3243 = vmatprep.subr.mxu0 %v3242
      %v3244 = vand.u32 %v3077, 4294901760
      %v3245 = vsub.f32 %v3077, %v3244
      %3246 = vmatpush1.msra.mxu0 %v3245
      %3247 = vmatprep.subr.mxu0 0.0
      %3248 = vmatpush1.msra.mxu0 0.0
      %3249 = vmatprep.subr.mxu0 0.0
      %3250 = vmatpush1.msra.mxu0 0.0
      %3251 = vmatprep.subr.mxu0 0.0
      %3252 = vmatpush1.msra.mxu0 0.0
      %3253 = vmatprep.subr.mxu0 0.0
      %3254 = vmatpush1.msra.mxu0 0.0
      %3255 = vmatprep.subr.mxu0 0.0
      %3256 = vmatpush1.msra.mxu0 0.0
      %3257 = vmatprep.subr.mxu0 0.0
      %3258 = vmatpush1.msra.mxu0 0.0
      %3259 = vmatprep.subr.mxu0 0.0
      %3260 = vmatpush1.msra.mxu0 0.0
      %3261 = vmatprep.subr.mxu0 0.0
      %3262 = vmatpush1.msra.mxu0 0.0
      %3263 = vmatprep.subr.mxu0 0.0
      %3264 = vmatpush1.msra.mxu0 0.0
      %3265 = vmatprep.subr.mxu0 0.0
      %3266 = vmatpush1.msra.mxu0 0.0
      %3267 = vmatprep.subr.mxu0 0.0
      %3268 = vmatpush1.msra.mxu0 0.0
      %3269 = vmatprep.subr.mxu0 0.0
      %3270 = vmatpush1.msra.mxu0 0.0
      %3271 = vmatprep.subr.mxu0 0.0
      %3272 = vmatpush1.msra.mxu0 0.0
      %3273 = vmatprep.subr.mxu0 0.0
      %3274 = vmatpush1.msra.mxu0 0.0
      %3275 = vmatprep.subr.mxu0 0.0
      %3276 = vmatpush1.msra.mxu0 0.0
      %3277 = vmatprep.subr.mxu0 0.0
      %3278 = vmatpush1.msra.mxu0 0.0
      %3279 = vmatprep.subr.mxu0 0.0
      %3280 = vmatpush1.msra.mxu0 0.0
      %3281 = vmatprep.subr.mxu0 0.0
      %3282 = vmatpush1.msra.mxu0 0.0
      %3283 = vmatprep.subr.mxu0 0.0
      %3284 = vmatpush1.msra.mxu0 0.0
      %3285 = vmatprep.subr.mxu0 0.0
      %3286 = vmatpush1.msra.mxu0 0.0
      %3287 = vmatprep.subr.mxu0 0.0
      %3288 = vmatpush1.msra.mxu0 0.0
      %3289 = vmatprep.subr.mxu0 0.0
      %3290 = vmatpush1.msra.mxu0 0.0
      %3291 = vmatprep.subr.mxu0 0.0
      %3292 = vmatpush1.msra.mxu0 0.0
      %3293 = vmatprep.subr.mxu0 0.0
      %3294 = vmatpush1.msra.mxu0 0.0
      %3295 = vmatprep.subr.mxu0 0.0
      %3296 = vmatpush1.msra.mxu0 0.0
      %3297 = vmatprep.subr.mxu0 0.0
      %3298 = vmatpush1.msra.mxu0 0.0
      %3299 = vmatprep.subr.mxu0 0.0
      %3300 = vmatpush1.msra.mxu0 0.0
      %3301 = vmatprep.subr.mxu0 0.0
      %3302 = vmatpush1.msra.mxu0 0.0
      %3303 = vmatprep.subr.mxu0 0.0
      %3304 = vmatpush1.msra.mxu0 0.0
      %3305 = vmatprep.subr.mxu0 0.0
      %3306 = vmatpush1.msra.mxu0 0.0
      %3307 = vmatprep.subr.mxu0 0.0
      %3308 = vmatpush1.msra.mxu0 0.0
      %3309 = vmatprep.mubr.f32.mxu0 0.0
      %v3310 = vand.u32 %v3075, 4294901760
      %v3311 = vsub.f32 %v3075, %v3310
      %3312 = vmatmul.mubr.f32.gmra.mrb[0].mxu0 %v3311
      %v3313 = vpop.f32.mrb[0].mxu0
      %v3314 = vadd.f32 %v3237, %v3313
      %v3315 = vpop.f32.mrb[0].mxu0
      %v3316 = vadd.f32 %v3239, %v3315
      %3317 = vdwg.mxu0
      %v3318 = vand.u32 %v3079, 4294901760
      %3319 = vmatprep.subr.mxu0 %v3318
      %v3320 = vand.u32 %v3077, 4294901760
      %3321 = vmatpush1.msra.mxu0 %v3320
      %3322 = vmatprep.subr.mxu0 0.0
      %3323 = vmatpush1.msra.mxu0 0.0
      %3324 = vmatprep.subr.mxu0 0.0
      %3325 = vmatpush1.msra.mxu0 0.0
      %3326 = vmatprep.subr.mxu0 0.0
      %3327 = vmatpush1.msra.mxu0 0.0
      %3328 = vmatprep.subr.mxu0 0.0
      %3329 = vmatpush1.msra.mxu0 0.0
      %3330 = vmatprep.subr.mxu0 0.0
      %3331 = vmatpush1.msra.mxu0 0.0
      %3332 = vmatprep.subr.mxu0 0.0
      %3333 = vmatpush1.msra.mxu0 0.0
      %3334 = vmatprep.subr.mxu0 0.0
      %3335 = vmatpush1.msra.mxu0 0.0
      %3336 = vmatprep.subr.mxu0 0.0
      %3337 = vmatpush1.msra.mxu0 0.0
      %3338 = vmatprep.subr.mxu0 0.0
      %3339 = vmatpush1.msra.mxu0 0.0
      %3340 = vmatprep.subr.mxu0 0.0
      %3341 = vmatpush1.msra.mxu0 0.0
      %3342 = vmatprep.subr.mxu0 0.0
      %3343 = vmatpush1.msra.mxu0 0.0
      %3344 = vmatprep.subr.mxu0 0.0
      %3345 = vmatpush1.msra.mxu0 0.0
      %3346 = vmatprep.subr.mxu0 0.0
      %3347 = vmatpush1.msra.mxu0 0.0
      %3348 = vmatprep.subr.mxu0 0.0
      %3349 = vmatpush1.msra.mxu0 0.0
      %3350 = vmatprep.subr.mxu0 0.0
      %3351 = vmatpush1.msra.mxu0 0.0
      %3352 = vmatprep.subr.mxu0 0.0
      %3353 = vmatpush1.msra.mxu0 0.0
      %3354 = vmatprep.subr.mxu0 0.0
      %3355 = vmatpush1.msra.mxu0 0.0
      %3356 = vmatprep.subr.mxu0 0.0
      %3357 = vmatpush1.msra.mxu0 0.0
      %3358 = vmatprep.subr.mxu0 0.0
      %3359 = vmatpush1.msra.mxu0 0.0
      %3360 = vmatprep.subr.mxu0 0.0
      %3361 = vmatpush1.msra.mxu0 0.0
      %3362 = vmatprep.subr.mxu0 0.0
      %3363 = vmatpush1.msra.mxu0 0.0
      %3364 = vmatprep.subr.mxu0 0.0
      %3365 = vmatpush1.msra.mxu0 0.0
      %3366 = vmatprep.subr.mxu0 0.0
      %3367 = vmatpush1.msra.mxu0 0.0
      %3368 = vmatprep.subr.mxu0 0.0
      %3369 = vmatpush1.msra.mxu0 0.0
      %3370 = vmatprep.subr.mxu0 0.0
      %3371 = vmatpush1.msra.mxu0 0.0
      %3372 = vmatprep.subr.mxu0 0.0
      %3373 = vmatpush1.msra.mxu0 0.0
      %3374 = vmatprep.subr.mxu0 0.0
      %3375 = vmatpush1.msra.mxu0 0.0
      %3376 = vmatprep.subr.mxu0 0.0
      %3377 = vmatpush1.msra.mxu0 0.0
      %3378 = vmatprep.subr.mxu0 0.0
      %3379 = vmatpush1.msra.mxu0 0.0
      %3380 = vmatprep.subr.mxu0 0.0
      %3381 = vmatpush1.msra.mxu0 0.0
      %3382 = vmatprep.subr.mxu0 0.0
      %3383 = vmatpush1.msra.mxu0 0.0
      %3384 = vmatprep.mubr.f32.mxu0 0.0
      %v3385 = vand.u32 %v3075, 4294901760
      %v3386 = vsub.f32 %v3075, %v3385
      %v3387 = vand.u32 %v3386, 4294901760
      %3388 = vmatmul.mubr.f32.gmra.mrb[0].mxu0 %v3387
      %v3389 = vpop.f32.mrb[0].mxu0
      %v3390 = vadd.f32 %v3314, %v3389
      %v3391 = vpop.f32.mrb[0].mxu0
      %v3392 = vadd.f32 %v3316, %v3391
      %3393 = vdwg.mxu0
      %v3394 = vand.u32 %v3079, 4294901760
      %v3395 = vsub.f32 %v3079, %v3394
      %v3396 = vand.u32 %v3395, 4294901760
      %3397 = vmatprep.subr.mxu0 %v3396
      %v3398 = vand.u32 %v3077, 4294901760
      %v3399 = vsub.f32 %v3077, %v3398
      %v3400 = vand.u32 %v3399, 4294901760
      %3401 = vmatpush1.msra.mxu0 %v3400
      %3402 = vmatprep.subr.mxu0 0.0
      %3403 = vmatpush1.msra.mxu0 0.0
      %3404 = vmatprep.subr.mxu0 0.0
      %3405 = vmatpush1.msra.mxu0 0.0
      %3406 = vmatprep.subr.mxu0 0.0
      %3407 = vmatpush1.msra.mxu0 0.0
      %3408 = vmatprep.subr.mxu0 0.0
      %3409 = vmatpush1.msra.mxu0 0.0
      %3410 = vmatprep.subr.mxu0 0.0
      %3411 = vmatpush1.msra.mxu0 0.0
      %3412 = vmatprep.subr.mxu0 0.0
      %3413 = vmatpush1.msra.mxu0 0.0
      %3414 = vmatprep.subr.mxu0 0.0
      %3415 = vmatpush1.msra.mxu0 0.0
      %3416 = vmatprep.subr.mxu0 0.0
      %3417 = vmatpush1.msra.mxu0 0.0
      %3418 = vmatprep.subr.mxu0 0.0
      %3419 = vmatpush1.msra.mxu0 0.0
      %3420 = vmatprep.subr.mxu0 0.0
      %3421 = vmatpush1.msra.mxu0 0.0
      %3422 = vmatprep.subr.mxu0 0.0
      %3423 = vmatpush1.msra.mxu0 0.0
      %3424 = vmatprep.subr.mxu0 0.0
      %3425 = vmatpush1.msra.mxu0 0.0
      %3426 = vmatprep.subr.mxu0 0.0
      %3427 = vmatpush1.msra.mxu0 0.0
      %3428 = vmatprep.subr.mxu0 0.0
      %3429 = vmatpush1.msra.mxu0 0.0
      %3430 = vmatprep.subr.mxu0 0.0
      %3431 = vmatpush1.msra.mxu0 0.0
      %3432 = vmatprep.subr.mxu0 0.0
      %3433 = vmatpush1.msra.mxu0 0.0
      %3434 = vmatprep.subr.mxu0 0.0
      %3435 = vmatpush1.msra.mxu0 0.0
      %3436 = vmatprep.subr.mxu0 0.0
      %3437 = vmatpush1.msra.mxu0 0.0
      %3438 = vmatprep.subr.mxu0 0.0
      %3439 = vmatpush1.msra.mxu0 0.0
      %3440 = vmatprep.subr.mxu0 0.0
      %3441 = vmatpush1.msra.mxu0 0.0
      %3442 = vmatprep.subr.mxu0 0.0
      %3443 = vmatpush1.msra.mxu0 0.0
      %3444 = vmatprep.subr.mxu0 0.0
      %3445 = vmatpush1.msra.mxu0 0.0
      %3446 = vmatprep.subr.mxu0 0.0
      %3447 = vmatpush1.msra.mxu0 0.0
      %3448 = vmatprep.subr.mxu0 0.0
      %3449 = vmatpush1.msra.mxu0 0.0
      %3450 = vmatprep.subr.mxu0 0.0
      %3451 = vmatpush1.msra.mxu0 0.0
      %3452 = vmatprep.subr.mxu0 0.0
      %3453 = vmatpush1.msra.mxu0 0.0
      %3454 = vmatprep.subr.mxu0 0.0
      %3455 = vmatpush1.msra.mxu0 0.0
      %3456 = vmatprep.subr.mxu0 0.0
      %3457 = vmatpush1.msra.mxu0 0.0
      %3458 = vmatprep.subr.mxu0 0.0
      %3459 = vmatpush1.msra.mxu0 0.0
      %3460 = vmatprep.subr.mxu0 0.0
      %3461 = vmatpush1.msra.mxu0 0.0
      %3462 = vmatprep.subr.mxu0 0.0
      %3463 = vmatpush1.msra.mxu0 0.0
      %3464 = vmatprep.mubr.f32.mxu0 0.0
      %v3465 = vand.u32 %v3075, 4294901760
      %3466 = vmatmul.mubr.f32.gmra.mrb[0].mxu0 %v3465
      %v3467 = vpop.f32.mrb[0].mxu0
      %v3468 = vadd.f32 %v3390, %v3467
      %v3469 = vpop.f32.mrb[0].mxu0
      %v3470 = vadd.f32 %v3392, %v3469
      %3471 = vdwg.mxu0
      %v3472 = vand.u32 %v3079, 4294901760
      %3473 = vmatprep.subr.mxu0 %v3472
      %v3474 = vand.u32 %v3077, 4294901760
      %3475 = vmatpush1.msra.mxu0 %v3474
      %3476 = vmatprep.subr.mxu0 0.0
      %3477 = vmatpush1.msra.mxu0 0.0
      %3478 = vmatprep.subr.mxu0 0.0
      %3479 = vmatpush1.msra.mxu0 0.0
      %3480 = vmatprep.subr.mxu0 0.0
      %3481 = vmatpush1.msra.mxu0 0.0
      %3482 = vmatprep.subr.mxu0 0.0
      %3483 = vmatpush1.msra.mxu0 0.0
      %3484 = vmatprep.subr.mxu0 0.0
      %3485 = vmatpush1.msra.mxu0 0.0
      %3486 = vmatprep.subr.mxu0 0.0
      %3487 = vmatpush1.msra.mxu0 0.0
      %3488 = vmatprep.subr.mxu0 0.0
      %3489 = vmatpush1.msra.mxu0 0.0
      %3490 = vmatprep.subr.mxu0 0.0
      %3491 = vmatpush1.msra.mxu0 0.0
      %3492 = vmatprep.subr.mxu0 0.0
      %3493 = vmatpush1.msra.mxu0 0.0
      %3494 = vmatprep.subr.mxu0 0.0
      %3495 = vmatpush1.msra.mxu0 0.0
      %3496 = vmatprep.subr.mxu0 0.0
      %3497 = vmatpush1.msra.mxu0 0.0
      %3498 = vmatprep.subr.mxu0 0.0
      %3499 = vmatpush1.msra.mxu0 0.0
      %3500 = vmatprep.subr.mxu0 0.0
      %3501 = vmatpush1.msra.mxu0 0.0
      %3502 = vmatprep.subr.mxu0 0.0
      %3503 = vmatpush1.msra.mxu0 0.0
      %3504 = vmatprep.subr.mxu0 0.0
      %3505 = vmatpush1.msra.mxu0 0.0
      %3506 = vmatprep.subr.mxu0 0.0
      %3507 = vmatpush1.msra.mxu0 0.0
      %3508 = vmatprep.subr.mxu0 0.0
      %3509 = vmatpush1.msra.mxu0 0.0
      %3510 = vmatprep.subr.mxu0 0.0
      %3511 = vmatpush1.msra.mxu0 0.0
      %3512 = vmatprep.subr.mxu0 0.0
      %3513 = vmatpush1.msra.mxu0 0.0
      %3514 = vmatprep.subr.mxu0 0.0
      %3515 = vmatpush1.msra.mxu0 0.0
      %3516 = vmatprep.subr.mxu0 0.0
      %3517 = vmatpush1.msra.mxu0 0.0
      %3518 = vmatprep.subr.mxu0 0.0
      %3519 = vmatpush1.msra.mxu0 0.0
      %3520 = vmatprep.subr.mxu0 0.0
      %3521 = vmatpush1.msra.mxu0 0.0
      %3522 = vmatprep.subr.mxu0 0.0
      %3523 = vmatpush1.msra.mxu0 0.0
      %3524 = vmatprep.subr.mxu0 0.0
      %3525 = vmatpush1.msra.mxu0 0.0
      %3526 = vmatprep.subr.mxu0 0.0
      %3527 = vmatpush1.msra.mxu0 0.0
      %3528 = vmatprep.subr.mxu0 0.0
      %3529 = vmatpush1.msra.mxu0 0.0
      %3530 = vmatprep.subr.mxu0 0.0
      %3531 = vmatpush1.msra.mxu0 0.0
      %3532 = vmatprep.subr.mxu0 0.0
      %3533 = vmatpush1.msra.mxu0 0.0
      %3534 = vmatprep.subr.mxu0 0.0
      %3535 = vmatpush1.msra.mxu0 0.0
      %3536 = vmatprep.subr.mxu0 0.0
      %3537 = vmatpush1.msra.mxu0 0.0
      %3538 = vmatprep.mubr.f32.mxu0 0.0
      %v3539 = vand.u32 %v3075, 4294901760
      %3540 = vmatmul.mubr.f32.gmra.mrb[0].mxu0 %v3539
      %v3541 = vpop.f32.mrb[0].mxu0
      %v3542 = vadd.f32 %v3468, %v3541
      %v3543 = vpop.f32.mrb[0].mxu0
      %v3544 = vadd.f32 %v3470, %v3543
      %3545 = vdwg.mxu0
      %v3546 = vadd.f32 %v3064, %v3542
      %v3547 = vadd.f32 %v3065, %v3544
      %s3548 = scalar_lea.vmem %s1, 56
      %v3549 = vld [vmem:[%s3548] sm:$0xff]
      %3550 = vrot.lane.b32.xlu0 %v180, 95
      %v3551 = vpop.permute.xlu0 %3550
      %3552 = vrot.lane.b32.xlu0 %v185, 95
      %v3553 = vpop.permute.xlu0 %3552
      %vm3554 = vcmask 777216
      %v3555 = vsel %vm3554, %v3551, %v3553
      %v3557 = vsel %vm192, %v3549, 0
      %v3559 = vsel %vm196, %v3555, 0
      %v3561 = vsel %vm196, %v3553, 0
      %v3563 = vand.u32 %v3561, 4294901760
      %3564 = vmatprep.subr.mxu0 %v3563
      %v3565 = vand.u32 %v3559, 4294901760
      %3566 = vmatpush1.msra.mxu0 %v3565
      %3567 = vmatprep.subr.mxu0 0.0
      %3568 = vmatpush1.msra.mxu0 0.0
      %3569 = vmatprep.subr.mxu0 0.0
      %3570 = vmatpush1.msra.mxu0 0.0
      %3571 = vmatprep.subr.mxu0 0.0
      %3572 = vmatpush1.msra.mxu0 0.0
      %3573 = vmatprep.subr.mxu0 0.0
      %3574 = vmatpush1.msra.mxu0 0.0
      %3575 = vmatprep.subr.mxu0 0.0
      %3576 = vmatpush1.msra.mxu0 0.0
      %3577 = vmatprep.subr.mxu0 0.0
      %3578 = vmatpush1.msra.mxu0 0.0
      %3579 = vmatprep.subr.mxu0 0.0
      %3580 = vmatpush1.msra.mxu0 0.0
      %3581 = vmatprep.subr.mxu0 0.0
      %3582 = vmatpush1.msra.mxu0 0.0
      %3583 = vmatprep.subr.mxu0 0.0
      %3584 = vmatpush1.msra.mxu0 0.0
      %3585 = vmatprep.subr.mxu0 0.0
      %3586 = vmatpush1.msra.mxu0 0.0
      %3587 = vmatprep.subr.mxu0 0.0
      %3588 = vmatpush1.msra.mxu0 0.0
      %3589 = vmatprep.subr.mxu0 0.0
      %3590 = vmatpush1.msra.mxu0 0.0
      %3591 = vmatprep.subr.mxu0 0.0
      %3592 = vmatpush1.msra.mxu0 0.0
      %3593 = vmatprep.subr.mxu0 0.0
      %3594 = vmatpush1.msra.mxu0 0.0
      %3595 = vmatprep.subr.mxu0 0.0
      %3596 = vmatpush1.msra.mxu0 0.0
      %3597 = vmatprep.subr.mxu0 0.0
      %3598 = vmatpush1.msra.mxu0 0.0
      %3599 = vmatprep.subr.mxu0 0.0
      %3600 = vmatpush1.msra.mxu0 0.0
      %3601 = vmatprep.subr.mxu0 0.0
      %3602 = vmatpush1.msra.mxu0 0.0
      %3603 = vmatprep.subr.mxu0 0.0
      %3604 = vmatpush1.msra.mxu0 0.0
      %3605 = vmatprep.subr.mxu0 0.0
      %3606 = vmatpush1.msra.mxu0 0.0
      %3607 = vmatprep.subr.mxu0 0.0
      %3608 = vmatpush1.msra.mxu0 0.0
      %3609 = vmatprep.subr.mxu0 0.0
      %3610 = vmatpush1.msra.mxu0 0.0
      %3611 = vmatprep.subr.mxu0 0.0
      %3612 = vmatpush1.msra.mxu0 0.0
      %3613 = vmatprep.subr.mxu0 0.0
      %3614 = vmatpush1.msra.mxu0 0.0
      %3615 = vmatprep.subr.mxu0 0.0
      %3616 = vmatpush1.msra.mxu0 0.0
      %3617 = vmatprep.subr.mxu0 0.0
      %3618 = vmatpush1.msra.mxu0 0.0
      %3619 = vmatprep.subr.mxu0 0.0
      %3620 = vmatpush1.msra.mxu0 0.0
      %3621 = vmatprep.subr.mxu0 0.0
      %3622 = vmatpush1.msra.mxu0 0.0
      %3623 = vmatprep.subr.mxu0 0.0
      %3624 = vmatpush1.msra.mxu0 0.0
      %3625 = vmatprep.subr.mxu0 0.0
      %3626 = vmatpush1.msra.mxu0 0.0
      %3627 = vmatprep.subr.mxu0 0.0
      %3628 = vmatpush1.msra.mxu0 0.0
      %3629 = vmatprep.mubr.f32.mxu0 0.0
      %v3630 = vand.u32 %v3557, 4294901760
      %v3631 = vsub.f32 %v3557, %v3630
      %v3632 = vand.u32 %v3631, 4294901760
      %v3633 = vsub.f32 %v3631, %v3632
      %v3634 = vand.u32 %v3633, 4294901760
      %3635 = vmatmul.mubr.f32.gmra.mrb[0].mxu0 %v3634
      %v3636 = vpop.f32.mrb[0].mxu0
      %v3637 = vadd.f32 0.0, %v3636
      %v3638 = vpop.f32.mrb[0].mxu0
      %v3639 = vadd.f32 0.0, %v3638
      %3640 = vdwg.mxu0
      %v3641 = vand.u32 %v3561, 4294901760
      %v3642 = vsub.f32 %v3561, %v3641
      %v3643 = vand.u32 %v3642, 4294901760
      %v3644 = vsub.f32 %v3642, %v3643
      %v3645 = vand.u32 %v3644, 4294901760
      %3646 = vmatprep.subr.mxu0 %v3645
      %v3647 = vand.u32 %v3559, 4294901760
      %v3648 = vsub.f32 %v3559, %v3647
      %v3649 = vand.u32 %v3648, 4294901760
      %v3650 = vsub.f32 %v3648, %v3649
      %v3651 = vand.u32 %v3650, 4294901760
      %3652 = vmatpush1.msra.mxu0 %v3651
      %3653 = vmatprep.subr.mxu0 0.0
      %3654 = vmatpush1.msra.mxu0 0.0
      %3655 = vmatprep.subr.mxu0 0.0
      %3656 = vmatpush1.msra.mxu0 0.0
      %3657 = vmatprep.subr.mxu0 0.0
      %3658 = vmatpush1.msra.mxu0 0.0
      %3659 = vmatprep.subr.mxu0 0.0
      %3660 = vmatpush1.msra.mxu0 0.0
      %3661 = vmatprep.subr.mxu0 0.0
      %3662 = vmatpush1.msra.mxu0 0.0
      %3663 = vmatprep.subr.mxu0 0.0
      %3664 = vmatpush1.msra.mxu0 0.0
      %3665 = vmatprep.subr.mxu0 0.0
      %3666 = vmatpush1.msra.mxu0 0.0
      %3667 = vmatprep.subr.mxu0 0.0
      %3668 = vmatpush1.msra.mxu0 0.0
      %3669 = vmatprep.subr.mxu0 0.0
      %3670 = vmatpush1.msra.mxu0 0.0
      %3671 = vmatprep.subr.mxu0 0.0
      %3672 = vmatpush1.msra.mxu0 0.0
      %3673 = vmatprep.subr.mxu0 0.0
      %3674 = vmatpush1.msra.mxu0 0.0
      %3675 = vmatprep.subr.mxu0 0.0
      %3676 = vmatpush1.msra.mxu0 0.0
      %3677 = vmatprep.subr.mxu0 0.0
      %3678 = vmatpush1.msra.mxu0 0.0
      %3679 = vmatprep.subr.mxu0 0.0
      %3680 = vmatpush1.msra.mxu0 0.0
      %3681 = vmatprep.subr.mxu0 0.0
      %3682 = vmatpush1.msra.mxu0 0.0
      %3683 = vmatprep.subr.mxu0 0.0
      %3684 = vmatpush1.msra.mxu0 0.0
      %3685 = vmatprep.subr.mxu0 0.0
      %3686 = vmatpush1.msra.mxu0 0.0
      %3687 = vmatprep.subr.mxu0 0.0
      %3688 = vmatpush1.msra.mxu0 0.0
      %3689 = vmatprep.subr.mxu0 0.0
      %3690 = vmatpush1.msra.mxu0 0.0
      %3691 = vmatprep.subr.mxu0 0.0
      %3692 = vmatpush1.msra.mxu0 0.0
      %3693 = vmatprep.subr.mxu0 0.0
      %3694 = vmatpush1.msra.mxu0 0.0
      %3695 = vmatprep.subr.mxu0 0.0
      %3696 = vmatpush1.msra.mxu0 0.0
      %3697 = vmatprep.subr.mxu0 0.0
      %3698 = vmatpush1.msra.mxu0 0.0
      %3699 = vmatprep.subr.mxu0 0.0
      %3700 = vmatpush1.msra.mxu0 0.0
      %3701 = vmatprep.subr.mxu0 0.0
      %3702 = vmatpush1.msra.mxu0 0.0
      %3703 = vmatprep.subr.mxu0 0.0
      %3704 = vmatpush1.msra.mxu0 0.0
      %3705 = vmatprep.subr.mxu0 0.0
      %3706 = vmatpush1.msra.mxu0 0.0
      %3707 = vmatprep.subr.mxu0 0.0
      %3708 = vmatpush1.msra.mxu0 0.0
      %3709 = vmatprep.subr.mxu0 0.0
      %3710 = vmatpush1.msra.mxu0 0.0
      %3711 = vmatprep.subr.mxu0 0.0
      %3712 = vmatpush1.msra.mxu0 0.0
      %3713 = vmatprep.subr.mxu0 0.0
      %3714 = vmatpush1.msra.mxu0 0.0
      %3715 = vmatprep.mubr.f32.mxu0 0.0
      %v3716 = vand.u32 %v3557, 4294901760
      %3717 = vmatmul.mubr.f32.gmra.mrb[0].mxu0 %v3716
      %v3718 = vpop.f32.mrb[0].mxu0
      %v3719 = vadd.f32 %v3637, %v3718
      %v3720 = vpop.f32.mrb[0].mxu0
      %v3721 = vadd.f32 %v3639, %v3720
      %3722 = vdwg.mxu0
      %v3723 = vand.u32 %v3561, 4294901760
      %v3724 = vsub.f32 %v3561, %v3723
      %3725 = vmatprep.subr.mxu0 %v3724
      %v3726 = vand.u32 %v3559, 4294901760
      %v3727 = vsub.f32 %v3559, %v3726
      %3728 = vmatpush1.msra.mxu0 %v3727
      %3729 = vmatprep.subr.mxu0 0.0
      %3730 = vmatpush1.msra.mxu0 0.0
      %3731 = vmatprep.subr.mxu0 0.0
      %3732 = vmatpush1.msra.mxu0 0.0
      %3733 = vmatprep.subr.mxu0 0.0
      %3734 = vmatpush1.msra.mxu0 0.0
      %3735 = vmatprep.subr.mxu0 0.0
      %3736 = vmatpush1.msra.mxu0 0.0
      %3737 = vmatprep.subr.mxu0 0.0
      %3738 = vmatpush1.msra.mxu0 0.0
      %3739 = vmatprep.subr.mxu0 0.0
      %3740 = vmatpush1.msra.mxu0 0.0
      %3741 = vmatprep.subr.mxu0 0.0
      %3742 = vmatpush1.msra.mxu0 0.0
      %3743 = vmatprep.subr.mxu0 0.0
      %3744 = vmatpush1.msra.mxu0 0.0
      %3745 = vmatprep.subr.mxu0 0.0
      %3746 = vmatpush1.msra.mxu0 0.0
      %3747 = vmatprep.subr.mxu0 0.0
      %3748 = vmatpush1.msra.mxu0 0.0
      %3749 = vmatprep.subr.mxu0 0.0
      %3750 = vmatpush1.msra.mxu0 0.0
      %3751 = vmatprep.subr.mxu0 0.0
      %3752 = vmatpush1.msra.mxu0 0.0
      %3753 = vmatprep.subr.mxu0 0.0
      %3754 = vmatpush1.msra.mxu0 0.0
      %3755 = vmatprep.subr.mxu0 0.0
      %3756 = vmatpush1.msra.mxu0 0.0
      %3757 = vmatprep.subr.mxu0 0.0
      %3758 = vmatpush1.msra.mxu0 0.0
      %3759 = vmatprep.subr.mxu0 0.0
      %3760 = vmatpush1.msra.mxu0 0.0
      %3761 = vmatprep.subr.mxu0 0.0
      %3762 = vmatpush1.msra.mxu0 0.0
      %3763 = vmatprep.subr.mxu0 0.0
      %3764 = vmatpush1.msra.mxu0 0.0
      %3765 = vmatprep.subr.mxu0 0.0
      %3766 = vmatpush1.msra.mxu0 0.0
      %3767 = vmatprep.subr.mxu0 0.0
      %3768 = vmatpush1.msra.mxu0 0.0
      %3769 = vmatprep.subr.mxu0 0.0
      %3770 = vmatpush1.msra.mxu0 0.0
      %3771 = vmatprep.subr.mxu0 0.0
      %3772 = vmatpush1.msra.mxu0 0.0
      %3773 = vmatprep.subr.mxu0 0.0
      %3774 = vmatpush1.msra.mxu0 0.0
      %3775 = vmatprep.subr.mxu0 0.0
      %3776 = vmatpush1.msra.mxu0 0.0
      %3777 = vmatprep.subr.mxu0 0.0
      %3778 = vmatpush1.msra.mxu0 0.0
      %3779 = vmatprep.subr.mxu0 0.0
      %3780 = vmatpush1.msra.mxu0 0.0
      %3781 = vmatprep.subr.mxu0 0.0
      %3782 = vmatpush1.msra.mxu0 0.0
      %3783 = vmatprep.subr.mxu0 0.0
      %3784 = vmatpush1.msra.mxu0 0.0
      %3785 = vmatprep.subr.mxu0 0.0
      %3786 = vmatpush1.msra.mxu0 0.0
      %3787 = vmatprep.subr.mxu0 0.0
      %3788 = vmatpush1.msra.mxu0 0.0
      %3789 = vmatprep.subr.mxu0 0.0
      %3790 = vmatpush1.msra.mxu0 0.0
      %3791 = vmatprep.mubr.f32.mxu0 0.0
      %v3792 = vand.u32 %v3557, 4294901760
      %v3793 = vsub.f32 %v3557, %v3792
      %3794 = vmatmul.mubr.f32.gmra.mrb[0].mxu0 %v3793
      %v3795 = vpop.f32.mrb[0].mxu0
      %v3796 = vadd.f32 %v3719, %v3795
      %v3797 = vpop.f32.mrb[0].mxu0
      %v3798 = vadd.f32 %v3721, %v3797
      %3799 = vdwg.mxu0
      %v3800 = vand.u32 %v3561, 4294901760
      %3801 = vmatprep.subr.mxu0 %v3800
      %v3802 = vand.u32 %v3559, 4294901760
      %3803 = vmatpush1.msra.mxu0 %v3802
      %3804 = vmatprep.subr.mxu0 0.0
      %3805 = vmatpush1.msra.mxu0 0.0
      %3806 = vmatprep.subr.mxu0 0.0
      %3807 = vmatpush1.msra.mxu0 0.0
      %3808 = vmatprep.subr.mxu0 0.0
      %3809 = vmatpush1.msra.mxu0 0.0
      %3810 = vmatprep.subr.mxu0 0.0
      %3811 = vmatpush1.msra.mxu0 0.0
      %3812 = vmatprep.subr.mxu0 0.0
      %3813 = vmatpush1.msra.mxu0 0.0
      %3814 = vmatprep.subr.mxu0 0.0
      %3815 = vmatpush1.msra.mxu0 0.0
      %3816 = vmatprep.subr.mxu0 0.0
      %3817 = vmatpush1.msra.mxu0 0.0
      %3818 = vmatprep.subr.mxu0 0.0
      %3819 = vmatpush1.msra.mxu0 0.0
      %3820 = vmatprep.subr.mxu0 0.0
      %3821 = vmatpush1.msra.mxu0 0.0
      %3822 = vmatprep.subr.mxu0 0.0
      %3823 = vmatpush1.msra.mxu0 0.0
      %3824 = vmatprep.subr.mxu0 0.0
      %3825 = vmatpush1.msra.mxu0 0.0
      %3826 = vmatprep.subr.mxu0 0.0
      %3827 = vmatpush1.msra.mxu0 0.0
      %3828 = vmatprep.subr.mxu0 0.0
      %3829 = vmatpush1.msra.mxu0 0.0
      %3830 = vmatprep.subr.mxu0 0.0
      %3831 = vmatpush1.msra.mxu0 0.0
      %3832 = vmatprep.subr.mxu0 0.0
      %3833 = vmatpush1.msra.mxu0 0.0
      %3834 = vmatprep.subr.mxu0 0.0
      %3835 = vmatpush1.msra.mxu0 0.0
      %3836 = vmatprep.subr.mxu0 0.0
      %3837 = vmatpush1.msra.mxu0 0.0
      %3838 = vmatprep.subr.mxu0 0.0
      %3839 = vmatpush1.msra.mxu0 0.0
      %3840 = vmatprep.subr.mxu0 0.0
      %3841 = vmatpush1.msra.mxu0 0.0
      %3842 = vmatprep.subr.mxu0 0.0
      %3843 = vmatpush1.msra.mxu0 0.0
      %3844 = vmatprep.subr.mxu0 0.0
      %3845 = vmatpush1.msra.mxu0 0.0
      %3846 = vmatprep.subr.mxu0 0.0
      %3847 = vmatpush1.msra.mxu0 0.0
      %3848 = vmatprep.subr.mxu0 0.0
      %3849 = vmatpush1.msra.mxu0 0.0
      %3850 = vmatprep.subr.mxu0 0.0
      %3851 = vmatpush1.msra.mxu0 0.0
      %3852 = vmatprep.subr.mxu0 0.0
      %3853 = vmatpush1.msra.mxu0 0.0
      %3854 = vmatprep.subr.mxu0 0.0
      %3855 = vmatpush1.msra.mxu0 0.0
      %3856 = vmatprep.subr.mxu0 0.0
      %3857 = vmatpush1.msra.mxu0 0.0
      %3858 = vmatprep.subr.mxu0 0.0
      %3859 = vmatpush1.msra.mxu0 0.0
      %3860 = vmatprep.subr.mxu0 0.0
      %3861 = vmatpush1.msra.mxu0 0.0
      %3862 = vmatprep.subr.mxu0 0.0
      %3863 = vmatpush1.msra.mxu0 0.0
      %3864 = vmatprep.subr.mxu0 0.0
      %3865 = vmatpush1.msra.mxu0 0.0
      %3866 = vmatprep.mubr.f32.mxu0 0.0
      %v3867 = vand.u32 %v3557, 4294901760
      %v3868 = vsub.f32 %v3557, %v3867
      %v3869 = vand.u32 %v3868, 4294901760
      %3870 = vmatmul.mubr.f32.gmra.mrb[0].mxu0 %v3869
      %v3871 = vpop.f32.mrb[0].mxu0
      %v3872 = vadd.f32 %v3796, %v3871
      %v3873 = vpop.f32.mrb[0].mxu0
      %v3874 = vadd.f32 %v3798, %v3873
      %3875 = vdwg.mxu0
      %v3876 = vand.u32 %v3561, 4294901760
      %v3877 = vsub.f32 %v3561, %v3876
      %v3878 = vand.u32 %v3877, 4294901760
      %3879 = vmatprep.subr.mxu0 %v3878
      %v3880 = vand.u32 %v3559, 4294901760
      %v3881 = vsub.f32 %v3559, %v3880
      %v3882 = vand.u32 %v3881, 4294901760
      %3883 = vmatpush1.msra.mxu0 %v3882
      %3884 = vmatprep.subr.mxu0 0.0
      %3885 = vmatpush1.msra.mxu0 0.0
      %3886 = vmatprep.subr.mxu0 0.0
      %3887 = vmatpush1.msra.mxu0 0.0
      %3888 = vmatprep.subr.mxu0 0.0
      %3889 = vmatpush1.msra.mxu0 0.0
      %3890 = vmatprep.subr.mxu0 0.0
      %3891 = vmatpush1.msra.mxu0 0.0
      %3892 = vmatprep.subr.mxu0 0.0
      %3893 = vmatpush1.msra.mxu0 0.0
      %3894 = vmatprep.subr.mxu0 0.0
      %3895 = vmatpush1.msra.mxu0 0.0
      %3896 = vmatprep.subr.mxu0 0.0
      %3897 = vmatpush1.msra.mxu0 0.0
      %3898 = vmatprep.subr.mxu0 0.0
      %3899 = vmatpush1.msra.mxu0 0.0
      %3900 = vmatprep.subr.mxu0 0.0
      %3901 = vmatpush1.msra.mxu0 0.0
      %3902 = vmatprep.subr.mxu0 0.0
      %3903 = vmatpush1.msra.mxu0 0.0
      %3904 = vmatprep.subr.mxu0 0.0
      %3905 = vmatpush1.msra.mxu0 0.0
      %3906 = vmatprep.subr.mxu0 0.0
      %3907 = vmatpush1.msra.mxu0 0.0
      %3908 = vmatprep.subr.mxu0 0.0
      %3909 = vmatpush1.msra.mxu0 0.0
      %3910 = vmatprep.subr.mxu0 0.0
      %3911 = vmatpush1.msra.mxu0 0.0
      %3912 = vmatprep.subr.mxu0 0.0
      %3913 = vmatpush1.msra.mxu0 0.0
      %3914 = vmatprep.subr.mxu0 0.0
      %3915 = vmatpush1.msra.mxu0 0.0
      %3916 = vmatprep.subr.mxu0 0.0
      %3917 = vmatpush1.msra.mxu0 0.0
      %3918 = vmatprep.subr.mxu0 0.0
      %3919 = vmatpush1.msra.mxu0 0.0
      %3920 = vmatprep.subr.mxu0 0.0
      %3921 = vmatpush1.msra.mxu0 0.0
      %3922 = vmatprep.subr.mxu0 0.0
      %3923 = vmatpush1.msra.mxu0 0.0
      %3924 = vmatprep.subr.mxu0 0.0
      %3925 = vmatpush1.msra.mxu0 0.0
      %3926 = vmatprep.subr.mxu0 0.0
      %3927 = vmatpush1.msra.mxu0 0.0
      %3928 = vmatprep.subr.mxu0 0.0
      %3929 = vmatpush1.msra.mxu0 0.0
      %3930 = vmatprep.subr.mxu0 0.0
      %3931 = vmatpush1.msra.mxu0 0.0
      %3932 = vmatprep.subr.mxu0 0.0
      %3933 = vmatpush1.msra.mxu0 0.0
      %3934 = vmatprep.subr.mxu0 0.0
      %3935 = vmatpush1.msra.mxu0 0.0
      %3936 = vmatprep.subr.mxu0 0.0
      %3937 = vmatpush1.msra.mxu0 0.0
      %3938 = vmatprep.subr.mxu0 0.0
      %3939 = vmatpush1.msra.mxu0 0.0
      %3940 = vmatprep.subr.mxu0 0.0
      %3941 = vmatpush1.msra.mxu0 0.0
      %3942 = vmatprep.subr.mxu0 0.0
      %3943 = vmatpush1.msra.mxu0 0.0
      %3944 = vmatprep.subr.mxu0 0.0
      %3945 = vmatpush1.msra.mxu0 0.0
      %3946 = vmatprep.mubr.f32.mxu0 0.0
      %v3947 = vand.u32 %v3557, 4294901760
      %3948 = vmatmul.mubr.f32.gmra.mrb[0].mxu0 %v3947
      %v3949 = vpop.f32.mrb[0].mxu0
      %v3950 = vadd.f32 %v3872, %v3949
      %v3951 = vpop.f32.mrb[0].mxu0
      %v3952 = vadd.f32 %v3874, %v3951
      %3953 = vdwg.mxu0
      %v3954 = vand.u32 %v3561, 4294901760
      %3955 = vmatprep.subr.mxu0 %v3954
      %v3956 = vand.u32 %v3559, 4294901760
      %3957 = vmatpush1.msra.mxu0 %v3956
      %3958 = vmatprep.subr.mxu0 0.0
      %3959 = vmatpush1.msra.mxu0 0.0
      %3960 = vmatprep.subr.mxu0 0.0
      %3961 = vmatpush1.msra.mxu0 0.0
      %3962 = vmatprep.subr.mxu0 0.0
      %3963 = vmatpush1.msra.mxu0 0.0
      %3964 = vmatprep.subr.mxu0 0.0
      %3965 = vmatpush1.msra.mxu0 0.0
      %3966 = vmatprep.subr.mxu0 0.0
      %3967 = vmatpush1.msra.mxu0 0.0
      %3968 = vmatprep.subr.mxu0 0.0
      %3969 = vmatpush1.msra.mxu0 0.0
      %3970 = vmatprep.subr.mxu0 0.0
      %3971 = vmatpush1.msra.mxu0 0.0
      %3972 = vmatprep.subr.mxu0 0.0
      %3973 = vmatpush1.msra.mxu0 0.0
      %3974 = vmatprep.subr.mxu0 0.0
      %3975 = vmatpush1.msra.mxu0 0.0
      %3976 = vmatprep.subr.mxu0 0.0
      %3977 = vmatpush1.msra.mxu0 0.0
      %3978 = vmatprep.subr.mxu0 0.0
      %3979 = vmatpush1.msra.mxu0 0.0
      %3980 = vmatprep.subr.mxu0 0.0
      %3981 = vmatpush1.msra.mxu0 0.0
      %3982 = vmatprep.subr.mxu0 0.0
      %3983 = vmatpush1.msra.mxu0 0.0
      %3984 = vmatprep.subr.mxu0 0.0
      %3985 = vmatpush1.msra.mxu0 0.0
      %3986 = vmatprep.subr.mxu0 0.0
      %3987 = vmatpush1.msra.mxu0 0.0
      %3988 = vmatprep.subr.mxu0 0.0
      %3989 = vmatpush1.msra.mxu0 0.0
      %3990 = vmatprep.subr.mxu0 0.0
      %3991 = vmatpush1.msra.mxu0 0.0
      %3992 = vmatprep.subr.mxu0 0.0
      %3993 = vmatpush1.msra.mxu0 0.0
      %3994 = vmatprep.subr.mxu0 0.0
      %3995 = vmatpush1.msra.mxu0 0.0
      %3996 = vmatprep.subr.mxu0 0.0
      %3997 = vmatpush1.msra.mxu0 0.0
      %3998 = vmatprep.subr.mxu0 0.0
      %3999 = vmatpush1.msra.mxu0 0.0
      %4000 = vmatprep.subr.mxu0 0.0
      %4001 = vmatpush1.msra.mxu0 0.0
      %4002 = vmatprep.subr.mxu0 0.0
      %4003 = vmatpush1.msra.mxu0 0.0
      %4004 = vmatprep.subr.mxu0 0.0
      %4005 = vmatpush1.msra.mxu0 0.0
      %4006 = vmatprep.subr.mxu0 0.0
      %4007 = vmatpush1.msra.mxu0 0.0
      %4008 = vmatprep.subr.mxu0 0.0
      %4009 = vmatpush1.msra.mxu0 0.0
      %4010 = vmatprep.subr.mxu0 0.0
      %4011 = vmatpush1.msra.mxu0 0.0
      %4012 = vmatprep.subr.mxu0 0.0
      %4013 = vmatpush1.msra.mxu0 0.0
      %4014 = vmatprep.subr.mxu0 0.0
      %4015 = vmatpush1.msra.mxu0 0.0
      %4016 = vmatprep.subr.mxu0 0.0
      %4017 = vmatpush1.msra.mxu0 0.0
      %4018 = vmatprep.subr.mxu0 0.0
      %4019 = vmatpush1.msra.mxu0 0.0
      %4020 = vmatprep.mubr.f32.mxu0 0.0
      %v4021 = vand.u32 %v3557, 4294901760
      %4022 = vmatmul.mubr.f32.gmra.mrb[0].mxu0 %v4021
      %v4023 = vpop.f32.mrb[0].mxu0
      %v4024 = vadd.f32 %v3950, %v4023
      %v4025 = vpop.f32.mrb[0].mxu0
      %v4026 = vadd.f32 %v3952, %v4025
      %4027 = vdwg.mxu0
      %v4028 = vadd.f32 %v3546, %v4024
      %v4029 = vadd.f32 %v3547, %v4026
      %s4030 = scalar_lea.vmem %s1, 64
      %v4031 = vld [vmem:[%s4030] sm:$0xff]
      %4032 = vrot.lane.b32.xlu0 %v180, 94
      %v4033 = vpop.permute.xlu0 %4032
      %4034 = vrot.lane.b32.xlu0 %v185, 94
      %v4035 = vpop.permute.xlu0 %4034
      %vm4036 = vcmask 769024
      %v4037 = vsel %vm4036, %v4033, %v4035
      %v4039 = vsel %vm192, %v4031, 0
      %v4041 = vsel %vm196, %v4037, 0
      %v4043 = vsel %vm196, %v4035, 0
      %v4045 = vand.u32 %v4043, 4294901760
      %4046 = vmatprep.subr.mxu0 %v4045
      %v4047 = vand.u32 %v4041, 4294901760
      %4048 = vmatpush1.msra.mxu0 %v4047
      %4049 = vmatprep.subr.mxu0 0.0
      %4050 = vmatpush1.msra.mxu0 0.0
      %4051 = vmatprep.subr.mxu0 0.0
      %4052 = vmatpush1.msra.mxu0 0.0
      %4053 = vmatprep.subr.mxu0 0.0
      %4054 = vmatpush1.msra.mxu0 0.0
      %4055 = vmatprep.subr.mxu0 0.0
      %4056 = vmatpush1.msra.mxu0 0.0
      %4057 = vmatprep.subr.mxu0 0.0
      %4058 = vmatpush1.msra.mxu0 0.0
      %4059 = vmatprep.subr.mxu0 0.0
      %4060 = vmatpush1.msra.mxu0 0.0
      %4061 = vmatprep.subr.mxu0 0.0
      %4062 = vmatpush1.msra.mxu0 0.0
      %4063 = vmatprep.subr.mxu0 0.0
      %4064 = vmatpush1.msra.mxu0 0.0
      %4065 = vmatprep.subr.mxu0 0.0
      %4066 = vmatpush1.msra.mxu0 0.0
      %4067 = vmatprep.subr.mxu0 0.0
      %4068 = vmatpush1.msra.mxu0 0.0
      %4069 = vmatprep.subr.mxu0 0.0
      %4070 = vmatpush1.msra.mxu0 0.0
      %4071 = vmatprep.subr.mxu0 0.0
      %4072 = vmatpush1.msra.mxu0 0.0
      %4073 = vmatprep.subr.mxu0 0.0
      %4074 = vmatpush1.msra.mxu0 0.0
      %4075 = vmatprep.subr.mxu0 0.0
      %4076 = vmatpush1.msra.mxu0 0.0
      %4077 = vmatprep.subr.mxu0 0.0
      %4078 = vmatpush1.msra.mxu0 0.0
      %4079 = vmatprep.subr.mxu0 0.0
      %4080 = vmatpush1.msra.mxu0 0.0
      %4081 = vmatprep.subr.mxu0 0.0
      %4082 = vmatpush1.msra.mxu0 0.0
      %4083 = vmatprep.subr.mxu0 0.0
      %4084 = vmatpush1.msra.mxu0 0.0
      %4085 = vmatprep.subr.mxu0 0.0
      %4086 = vmatpush1.msra.mxu0 0.0
      %4087 = vmatprep.subr.mxu0 0.0
      %4088 = vmatpush1.msra.mxu0 0.0
      %4089 = vmatprep.subr.mxu0 0.0
      %4090 = vmatpush1.msra.mxu0 0.0
      %4091 = vmatprep.subr.mxu0 0.0
      %4092 = vmatpush1.msra.mxu0 0.0
      %4093 = vmatprep.subr.mxu0 0.0
      %4094 = vmatpush1.msra.mxu0 0.0
      %4095 = vmatprep.subr.mxu0 0.0
      %4096 = vmatpush1.msra.mxu0 0.0
      %4097 = vmatprep.subr.mxu0 0.0
      %4098 = vmatpush1.msra.mxu0 0.0
      %4099 = vmatprep.subr.mxu0 0.0
      %4100 = vmatpush1.msra.mxu0 0.0
      %4101 = vmatprep.subr.mxu0 0.0
      %4102 = vmatpush1.msra.mxu0 0.0
      %4103 = vmatprep.subr.mxu0 0.0
      %4104 = vmatpush1.msra.mxu0 0.0
      %4105 = vmatprep.subr.mxu0 0.0
      %4106 = vmatpush1.msra.mxu0 0.0
      %4107 = vmatprep.subr.mxu0 0.0
      %4108 = vmatpush1.msra.mxu0 0.0
      %4109 = vmatprep.subr.mxu0 0.0
      %4110 = vmatpush1.msra.mxu0 0.0
      %4111 = vmatprep.mubr.f32.mxu0 0.0
      %v4112 = vand.u32 %v4039, 4294901760
      %v4113 = vsub.f32 %v4039, %v4112
      %v4114 = vand.u32 %v4113, 4294901760
      %v4115 = vsub.f32 %v4113, %v4114
      %v4116 = vand.u32 %v4115, 4294901760
      %4117 = vmatmul.mubr.f32.gmra.mrb[0].mxu0 %v4116
      %v4118 = vpop.f32.mrb[0].mxu0
      %v4119 = vadd.f32 0.0, %v4118
      %v4120 = vpop.f32.mrb[0].mxu0
      %v4121 = vadd.f32 0.0, %v4120
      %4122 = vdwg.mxu0
      %v4123 = vand.u32 %v4043, 4294901760
      %v4124 = vsub.f32 %v4043, %v4123
      %v4125 = vand.u32 %v4124, 4294901760
      %v4126 = vsub.f32 %v4124, %v4125
      %v4127 = vand.u32 %v4126, 4294901760
      %4128 = vmatprep.subr.mxu0 %v4127
      %v4129 = vand.u32 %v4041, 4294901760
      %v4130 = vsub.f32 %v4041, %v4129
      %v4131 = vand.u32 %v4130, 4294901760
      %v4132 = vsub.f32 %v4130, %v4131
      %v4133 = vand.u32 %v4132, 4294901760
      %4134 = vmatpush1.msra.mxu0 %v4133
      %4135 = vmatprep.subr.mxu0 0.0
      %4136 = vmatpush1.msra.mxu0 0.0
      %4137 = vmatprep.subr.mxu0 0.0
      %4138 = vmatpush1.msra.mxu0 0.0
      %4139 = vmatprep.subr.mxu0 0.0
      %4140 = vmatpush1.msra.mxu0 0.0
      %4141 = vmatprep.subr.mxu0 0.0
      %4142 = vmatpush1.msra.mxu0 0.0
      %4143 = vmatprep.subr.mxu0 0.0
      %4144 = vmatpush1.msra.mxu0 0.0
      %4145 = vmatprep.subr.mxu0 0.0
      %4146 = vmatpush1.msra.mxu0 0.0
      %4147 = vmatprep.subr.mxu0 0.0
      %4148 = vmatpush1.msra.mxu0 0.0
      %4149 = vmatprep.subr.mxu0 0.0
      %4150 = vmatpush1.msra.mxu0 0.0
      %4151 = vmatprep.subr.mxu0 0.0
      %4152 = vmatpush1.msra.mxu0 0.0
      %4153 = vmatprep.subr.mxu0 0.0
      %4154 = vmatpush1.msra.mxu0 0.0
      %4155 = vmatprep.subr.mxu0 0.0
      %4156 = vmatpush1.msra.mxu0 0.0
      %4157 = vmatprep.subr.mxu0 0.0
      %4158 = vmatpush1.msra.mxu0 0.0
      %4159 = vmatprep.subr.mxu0 0.0
      %4160 = vmatpush1.msra.mxu0 0.0
      %4161 = vmatprep.subr.mxu0 0.0
      %4162 = vmatpush1.msra.mxu0 0.0
      %4163 = vmatprep.subr.mxu0 0.0
      %4164 = vmatpush1.msra.mxu0 0.0
      %4165 = vmatprep.subr.mxu0 0.0
      %4166 = vmatpush1.msra.mxu0 0.0
      %4167 = vmatprep.subr.mxu0 0.0
      %4168 = vmatpush1.msra.mxu0 0.0
      %4169 = vmatprep.subr.mxu0 0.0
      %4170 = vmatpush1.msra.mxu0 0.0
      %4171 = vmatprep.subr.mxu0 0.0
      %4172 = vmatpush1.msra.mxu0 0.0
      %4173 = vmatprep.subr.mxu0 0.0
      %4174 = vmatpush1.msra.mxu0 0.0
      %4175 = vmatprep.subr.mxu0 0.0
      %4176 = vmatpush1.msra.mxu0 0.0
      %4177 = vmatprep.subr.mxu0 0.0
      %4178 = vmatpush1.msra.mxu0 0.0
      %4179 = vmatprep.subr.mxu0 0.0
      %4180 = vmatpush1.msra.mxu0 0.0
      %4181 = vmatprep.subr.mxu0 0.0
      %4182 = vmatpush1.msra.mxu0 0.0
      %4183 = vmatprep.subr.mxu0 0.0
      %4184 = vmatpush1.msra.mxu0 0.0
      %4185 = vmatprep.subr.mxu0 0.0
      %4186 = vmatpush1.msra.mxu0 0.0
      %4187 = vmatprep.subr.mxu0 0.0
      %4188 = vmatpush1.msra.mxu0 0.0
      %4189 = vmatprep.subr.mxu0 0.0
      %4190 = vmatpush1.msra.mxu0 0.0
      %4191 = vmatprep.subr.mxu0 0.0
      %4192 = vmatpush1.msra.mxu0 0.0
      %4193 = vmatprep.subr.mxu0 0.0
      %4194 = vmatpush1.msra.mxu0 0.0
      %4195 = vmatprep.subr.mxu0 0.0
      %4196 = vmatpush1.msra.mxu0 0.0
      %4197 = vmatprep.mubr.f32.mxu0 0.0
      %v4198 = vand.u32 %v4039, 4294901760
      %4199 = vmatmul.mubr.f32.gmra.mrb[0].mxu0 %v4198
      %v4200 = vpop.f32.mrb[0].mxu0
      %v4201 = vadd.f32 %v4119, %v4200
      %v4202 = vpop.f32.mrb[0].mxu0
      %v4203 = vadd.f32 %v4121, %v4202
      %4204 = vdwg.mxu0
      %v4205 = vand.u32 %v4043, 4294901760
      %v4206 = vsub.f32 %v4043, %v4205
      %4207 = vmatprep.subr.mxu0 %v4206
      %v4208 = vand.u32 %v4041, 4294901760
      %v4209 = vsub.f32 %v4041, %v4208
      %4210 = vmatpush1.msra.mxu0 %v4209
      %4211 = vmatprep.subr.mxu0 0.0
      %4212 = vmatpush1.msra.mxu0 0.0
      %4213 = vmatprep.subr.mxu0 0.0
      %4214 = vmatpush1.msra.mxu0 0.0
      %4215 = vmatprep.subr.mxu0 0.0
      %4216 = vmatpush1.msra.mxu0 0.0
      %4217 = vmatprep.subr.mxu0 0.0
      %4218 = vmatpush1.msra.mxu0 0.0
      %4219 = vmatprep.subr.mxu0 0.0
      %4220 = vmatpush1.msra.mxu0 0.0
      %4221 = vmatprep.subr.mxu0 0.0
      %4222 = vmatpush1.msra.mxu0 0.0
      %4223 = vmatprep.subr.mxu0 0.0
      %4224 = vmatpush1.msra.mxu0 0.0
      %4225 = vmatprep.subr.mxu0 0.0
      %4226 = vmatpush1.msra.mxu0 0.0
      %4227 = vmatprep.subr.mxu0 0.0
      %4228 = vmatpush1.msra.mxu0 0.0
      %4229 = vmatprep.subr.mxu0 0.0
      %4230 = vmatpush1.msra.mxu0 0.0
      %4231 = vmatprep.subr.mxu0 0.0
      %4232 = vmatpush1.msra.mxu0 0.0
      %4233 = vmatprep.subr.mxu0 0.0
      %4234 = vmatpush1.msra.mxu0 0.0
      %4235 = vmatprep.subr.mxu0 0.0
      %4236 = vmatpush1.msra.mxu0 0.0
      %4237 = vmatprep.subr.mxu0 0.0
      %4238 = vmatpush1.msra.mxu0 0.0
      %4239 = vmatprep.subr.mxu0 0.0
      %4240 = vmatpush1.msra.mxu0 0.0
      %4241 = vmatprep.subr.mxu0 0.0
      %4242 = vmatpush1.msra.mxu0 0.0
      %4243 = vmatprep.subr.mxu0 0.0
      %4244 = vmatpush1.msra.mxu0 0.0
      %4245 = vmatprep.subr.mxu0 0.0
      %4246 = vmatpush1.msra.mxu0 0.0
      %4247 = vmatprep.subr.mxu0 0.0
      %4248 = vmatpush1.msra.mxu0 0.0
      %4249 = vmatprep.subr.mxu0 0.0
      %4250 = vmatpush1.msra.mxu0 0.0
      %4251 = vmatprep.subr.mxu0 0.0
      %4252 = vmatpush1.msra.mxu0 0.0
      %4253 = vmatprep.subr.mxu0 0.0
      %4254 = vmatpush1.msra.mxu0 0.0
      %4255 = vmatprep.subr.mxu0 0.0
      %4256 = vmatpush1.msra.mxu0 0.0
      %4257 = vmatprep.subr.mxu0 0.0
      %4258 = vmatpush1.msra.mxu0 0.0
      %4259 = vmatprep.subr.mxu0 0.0
      %4260 = vmatpush1.msra.mxu0 0.0
      %4261 = vmatprep.subr.mxu0 0.0
      %4262 = vmatpush1.msra.mxu0 0.0
      %4263 = vmatprep.subr.mxu0 0.0
      %4264 = vmatpush1.msra.mxu0 0.0
      %4265 = vmatprep.subr.mxu0 0.0
      %4266 = vmatpush1.msra.mxu0 0.0
      %4267 = vmatprep.subr.mxu0 0.0
      %4268 = vmatpush1.msra.mxu0 0.0
      %4269 = vmatprep.subr.mxu0 0.0
      %4270 = vmatpush1.msra.mxu0 0.0
      %4271 = vmatprep.subr.mxu0 0.0
      %4272 = vmatpush1.msra.mxu0 0.0
      %4273 = vmatprep.mubr.f32.mxu0 0.0
      %v4274 = vand.u32 %v4039, 4294901760
      %v4275 = vsub.f32 %v4039, %v4274
      %4276 = vmatmul.mubr.f32.gmra.mrb[0].mxu0 %v4275
      %v4277 = vpop.f32.mrb[0].mxu0
      %v4278 = vadd.f32 %v4201, %v4277
      %v4279 = vpop.f32.mrb[0].mxu0
      %v4280 = vadd.f32 %v4203, %v4279
      %4281 = vdwg.mxu0
      %v4282 = vand.u32 %v4043, 4294901760
      %4283 = vmatprep.subr.mxu0 %v4282
      %v4284 = vand.u32 %v4041, 4294901760
      %4285 = vmatpush1.msra.mxu0 %v4284
      %4286 = vmatprep.subr.mxu0 0.0
      %4287 = vmatpush1.msra.mxu0 0.0
      %4288 = vmatprep.subr.mxu0 0.0
      %4289 = vmatpush1.msra.mxu0 0.0
      %4290 = vmatprep.subr.mxu0 0.0
      %4291 = vmatpush1.msra.mxu0 0.0
      %4292 = vmatprep.subr.mxu0 0.0
      %4293 = vmatpush1.msra.mxu0 0.0
      %4294 = vmatprep.subr.mxu0 0.0
      %4295 = vmatpush1.msra.mxu0 0.0
      %4296 = vmatprep.subr.mxu0 0.0
      %4297 = vmatpush1.msra.mxu0 0.0
      %4298 = vmatprep.subr.mxu0 0.0
      %4299 = vmatpush1.msra.mxu0 0.0
      %4300 = vmatprep.subr.mxu0 0.0
      %4301 = vmatpush1.msra.mxu0 0.0
      %4302 = vmatprep.subr.mxu0 0.0
      %4303 = vmatpush1.msra.mxu0 0.0
      %4304 = vmatprep.subr.mxu0 0.0
      %4305 = vmatpush1.msra.mxu0 0.0
      %4306 = vmatprep.subr.mxu0 0.0
      %4307 = vmatpush1.msra.mxu0 0.0
      %4308 = vmatprep.subr.mxu0 0.0
      %4309 = vmatpush1.msra.mxu0 0.0
      %4310 = vmatprep.subr.mxu0 0.0
      %4311 = vmatpush1.msra.mxu0 0.0
      %4312 = vmatprep.subr.mxu0 0.0
      %4313 = vmatpush1.msra.mxu0 0.0
      %4314 = vmatprep.subr.mxu0 0.0
      %4315 = vmatpush1.msra.mxu0 0.0
      %4316 = vmatprep.subr.mxu0 0.0
      %4317 = vmatpush1.msra.mxu0 0.0
      %4318 = vmatprep.subr.mxu0 0.0
      %4319 = vmatpush1.msra.mxu0 0.0
      %4320 = vmatprep.subr.mxu0 0.0
      %4321 = vmatpush1.msra.mxu0 0.0
      %4322 = vmatprep.subr.mxu0 0.0
      %4323 = vmatpush1.msra.mxu0 0.0
      %4324 = vmatprep.subr.mxu0 0.0
      %4325 = vmatpush1.msra.mxu0 0.0
      %4326 = vmatprep.subr.mxu0 0.0
      %4327 = vmatpush1.msra.mxu0 0.0
      %4328 = vmatprep.subr.mxu0 0.0
      %4329 = vmatpush1.msra.mxu0 0.0
      %4330 = vmatprep.subr.mxu0 0.0
      %4331 = vmatpush1.msra.mxu0 0.0
      %4332 = vmatprep.subr.mxu0 0.0
      %4333 = vmatpush1.msra.mxu0 0.0
      %4334 = vmatprep.subr.mxu0 0.0
      %4335 = vmatpush1.msra.mxu0 0.0
      %4336 = vmatprep.subr.mxu0 0.0
      %4337 = vmatpush1.msra.mxu0 0.0
      %4338 = vmatprep.subr.mxu0 0.0
      %4339 = vmatpush1.msra.mxu0 0.0
      %4340 = vmatprep.subr.mxu0 0.0
      %4341 = vmatpush1.msra.mxu0 0.0
      %4342 = vmatprep.subr.mxu0 0.0
      %4343 = vmatpush1.msra.mxu0 0.0
      %4344 = vmatprep.subr.mxu0 0.0
      %4345 = vmatpush1.msra.mxu0 0.0
      %4346 = vmatprep.subr.mxu0 0.0
      %4347 = vmatpush1.msra.mxu0 0.0
      %4348 = vmatprep.mubr.f32.mxu0 0.0
      %v4349 = vand.u32 %v4039, 4294901760
      %v4350 = vsub.f32 %v4039, %v4349
      %v4351 = vand.u32 %v4350, 4294901760
      %4352 = vmatmul.mubr.f32.gmra.mrb[0].mxu0 %v4351
      %v4353 = vpop.f32.mrb[0].mxu0
      %v4354 = vadd.f32 %v4278, %v4353
      %v4355 = vpop.f32.mrb[0].mxu0
      %v4356 = vadd.f32 %v4280, %v4355
      %4357 = vdwg.mxu0
      %v4358 = vand.u32 %v4043, 4294901760
      %v4359 = vsub.f32 %v4043, %v4358
      %v4360 = vand.u32 %v4359, 4294901760
      %4361 = vmatprep.subr.mxu0 %v4360
      %v4362 = vand.u32 %v4041, 4294901760
      %v4363 = vsub.f32 %v4041, %v4362
      %v4364 = vand.u32 %v4363, 4294901760
      %4365 = vmatpush1.msra.mxu0 %v4364
      %4366 = vmatprep.subr.mxu0 0.0
      %4367 = vmatpush1.msra.mxu0 0.0
      %4368 = vmatprep.subr.mxu0 0.0
      %4369 = vmatpush1.msra.mxu0 0.0
      %4370 = vmatprep.subr.mxu0 0.0
      %4371 = vmatpush1.msra.mxu0 0.0
      %4372 = vmatprep.subr.mxu0 0.0
      %4373 = vmatpush1.msra.mxu0 0.0
      %4374 = vmatprep.subr.mxu0 0.0
      %4375 = vmatpush1.msra.mxu0 0.0
      %4376 = vmatprep.subr.mxu0 0.0
      %4377 = vmatpush1.msra.mxu0 0.0
      %4378 = vmatprep.subr.mxu0 0.0
      %4379 = vmatpush1.msra.mxu0 0.0
      %4380 = vmatprep.subr.mxu0 0.0
      %4381 = vmatpush1.msra.mxu0 0.0
      %4382 = vmatprep.subr.mxu0 0.0
      %4383 = vmatpush1.msra.mxu0 0.0
      %4384 = vmatprep.subr.mxu0 0.0
      %4385 = vmatpush1.msra.mxu0 0.0
      %4386 = vmatprep.subr.mxu0 0.0
      %4387 = vmatpush1.msra.mxu0 0.0
      %4388 = vmatprep.subr.mxu0 0.0
      %4389 = vmatpush1.msra.mxu0 0.0
      %4390 = vmatprep.subr.mxu0 0.0
      %4391 = vmatpush1.msra.mxu0 0.0
      %4392 = vmatprep.subr.mxu0 0.0
      %4393 = vmatpush1.msra.mxu0 0.0
      %4394 = vmatprep.subr.mxu0 0.0
      %4395 = vmatpush1.msra.mxu0 0.0
      %4396 = vmatprep.subr.mxu0 0.0
      %4397 = vmatpush1.msra.mxu0 0.0
      %4398 = vmatprep.subr.mxu0 0.0
      %4399 = vmatpush1.msra.mxu0 0.0
      %4400 = vmatprep.subr.mxu0 0.0
      %4401 = vmatpush1.msra.mxu0 0.0
      %4402 = vmatprep.subr.mxu0 0.0
      %4403 = vmatpush1.msra.mxu0 0.0
      %4404 = vmatprep.subr.mxu0 0.0
      %4405 = vmatpush1.msra.mxu0 0.0
      %4406 = vmatprep.subr.mxu0 0.0
      %4407 = vmatpush1.msra.mxu0 0.0
      %4408 = vmatprep.subr.mxu0 0.0
      %4409 = vmatpush1.msra.mxu0 0.0
      %4410 = vmatprep.subr.mxu0 0.0
      %4411 = vmatpush1.msra.mxu0 0.0
      %4412 = vmatprep.subr.mxu0 0.0
      %4413 = vmatpush1.msra.mxu0 0.0
      %4414 = vmatprep.subr.mxu0 0.0
      %4415 = vmatpush1.msra.mxu0 0.0
      %4416 = vmatprep.subr.mxu0 0.0
      %4417 = vmatpush1.msra.mxu0 0.0
      %4418 = vmatprep.subr.mxu0 0.0
      %4419 = vmatpush1.msra.mxu0 0.0
      %4420 = vmatprep.subr.mxu0 0.0
      %4421 = vmatpush1.msra.mxu0 0.0
      %4422 = vmatprep.subr.mxu0 0.0
      %4423 = vmatpush1.msra.mxu0 0.0
      %4424 = vmatprep.subr.mxu0 0.0
      %4425 = vmatpush1.msra.mxu0 0.0
      %4426 = vmatprep.subr.mxu0 0.0
      %4427 = vmatpush1.msra.mxu0 0.0
      %4428 = vmatprep.mubr.f32.mxu0 0.0
      %v4429 = vand.u32 %v4039, 4294901760
      %4430 = vmatmul.mubr.f32.gmra.mrb[0].mxu0 %v4429
      %v4431 = vpop.f32.mrb[0].mxu0
      %v4432 = vadd.f32 %v4354, %v4431
      %v4433 = vpop.f32.mrb[0].mxu0
      %v4434 = vadd.f32 %v4356, %v4433
      %4435 = vdwg.mxu0
      %v4436 = vand.u32 %v4043, 4294901760
      %4437 = vmatprep.subr.mxu0 %v4436
      %v4438 = vand.u32 %v4041, 4294901760
      %4439 = vmatpush1.msra.mxu0 %v4438
      %4440 = vmatprep.subr.mxu0 0.0
      %4441 = vmatpush1.msra.mxu0 0.0
      %4442 = vmatprep.subr.mxu0 0.0
      %4443 = vmatpush1.msra.mxu0 0.0
      %4444 = vmatprep.subr.mxu0 0.0
      %4445 = vmatpush1.msra.mxu0 0.0
      %4446 = vmatprep.subr.mxu0 0.0
      %4447 = vmatpush1.msra.mxu0 0.0
      %4448 = vmatprep.subr.mxu0 0.0
      %4449 = vmatpush1.msra.mxu0 0.0
      %4450 = vmatprep.subr.mxu0 0.0
      %4451 = vmatpush1.msra.mxu0 0.0
      %4452 = vmatprep.subr.mxu0 0.0
      %4453 = vmatpush1.msra.mxu0 0.0
      %4454 = vmatprep.subr.mxu0 0.0
      %4455 = vmatpush1.msra.mxu0 0.0
      %4456 = vmatprep.subr.mxu0 0.0
      %4457 = vmatpush1.msra.mxu0 0.0
      %4458 = vmatprep.subr.mxu0 0.0
      %4459 = vmatpush1.msra.mxu0 0.0
      %4460 = vmatprep.subr.mxu0 0.0
      %4461 = vmatpush1.msra.mxu0 0.0
      %4462 = vmatprep.subr.mxu0 0.0
      %4463 = vmatpush1.msra.mxu0 0.0
      %4464 = vmatprep.subr.mxu0 0.0
      %4465 = vmatpush1.msra.mxu0 0.0
      %4466 = vmatprep.subr.mxu0 0.0
      %4467 = vmatpush1.msra.mxu0 0.0
      %4468 = vmatprep.subr.mxu0 0.0
      %4469 = vmatpush1.msra.mxu0 0.0
      %4470 = vmatprep.subr.mxu0 0.0
      %4471 = vmatpush1.msra.mxu0 0.0
      %4472 = vmatprep.subr.mxu0 0.0
      %4473 = vmatpush1.msra.mxu0 0.0
      %4474 = vmatprep.subr.mxu0 0.0
      %4475 = vmatpush1.msra.mxu0 0.0
      %4476 = vmatprep.subr.mxu0 0.0
      %4477 = vmatpush1.msra.mxu0 0.0
      %4478 = vmatprep.subr.mxu0 0.0
      %4479 = vmatpush1.msra.mxu0 0.0
      %4480 = vmatprep.subr.mxu0 0.0
      %4481 = vmatpush1.msra.mxu0 0.0
      %4482 = vmatprep.subr.mxu0 0.0
      %4483 = vmatpush1.msra.mxu0 0.0
      %4484 = vmatprep.subr.mxu0 0.0
      %4485 = vmatpush1.msra.mxu0 0.0
      %4486 = vmatprep.subr.mxu0 0.0
      %4487 = vmatpush1.msra.mxu0 0.0
      %4488 = vmatprep.subr.mxu0 0.0
      %4489 = vmatpush1.msra.mxu0 0.0
      %4490 = vmatprep.subr.mxu0 0.0
      %4491 = vmatpush1.msra.mxu0 0.0
      %4492 = vmatprep.subr.mxu0 0.0
      %4493 = vmatpush1.msra.mxu0 0.0
      %4494 = vmatprep.subr.mxu0 0.0
      %4495 = vmatpush1.msra.mxu0 0.0
      %4496 = vmatprep.subr.mxu0 0.0
      %4497 = vmatpush1.msra.mxu0 0.0
      %4498 = vmatprep.subr.mxu0 0.0
      %4499 = vmatpush1.msra.mxu0 0.0
      %4500 = vmatprep.subr.mxu0 0.0
      %4501 = vmatpush1.msra.mxu0 0.0
      %4502 = vmatprep.mubr.f32.mxu0 0.0
      %v4503 = vand.u32 %v4039, 4294901760
      %4504 = vmatmul.mubr.f32.gmra.mrb[0].mxu0 %v4503
      %v4505 = vpop.f32.mrb[0].mxu0
      %v4506 = vadd.f32 %v4432, %v4505
      %v4507 = vpop.f32.mrb[0].mxu0
      %v4508 = vadd.f32 %v4434, %v4507
      %4509 = vdwg.mxu0
      %v4510 = vadd.f32 %v4028, %v4506
      %v4511 = vadd.f32 %v4029, %v4508
      %4512 = vst [vmem:[%s179] sm:$0xff] %v4510
      %4513 = vst.msk [vmem:[%s179 + $0x8] sm:$0xff] %vm4036, %v4511
      %p4514 = scmp.lt.s32.totalorder %s17, 1
      %s4515 = scalar_select %p4514, %s17, 1
      %p4516 = scmp.lt.s32.totalorder %s18, 0
      %s4517 = scalar_select %p4516, %s18, 0
      %s4518 = smul.addr %s4517, 2
      %s4519 = smul.addr %s4515, 2
      %s4520 = sadd.s32 %s4518, %s4519
      %s4521 = smul.addr %s4520, 8
      %s4522 = scalar_lea.vmem %s2, %s4521
      // Predicated region
      $region29: #{random_filter_convolution.1} parent=27 // pred_check
        %p4523 = pneg %p94
      $region30: #{random_filter_convolution.1} parent=27 // pred_check_branch
        %4525 = sbr.rel (%p4523) target = $region32
      $region31: #{random_filter_convolution.1} parent=27 // pred_region
        _
      $region32: #{random_filter_convolution.1} parent=27 // pred_fallthru
        _
    $region28: #{random_filter_convolution.1} parent=5 // pred_fallthru
      _
    %p4526 = scmp.le.s32.totalorder 2, %s8
    // Predicated region
    $region33: #{random_filter_convolution.1} parent=5 // pred_check
      %p4527 = pneg %p4526
    $region34: #{random_filter_convolution.1} parent=5 // pred_check_branch
      %4529 = sbr.rel (%p4527) target = $region36
    $region35: #{random_filter_convolution.1} parent=5 // pred_region
      %s4530 = ssub.s32 %s8, 2
      // Predicated region
      $region37: #{random_filter_convolution.1} parent=35 // pred_check
        %p4531 = pneg %p100
      $region38: #{random_filter_convolution.1} parent=35 // pred_check_branch
        %4533 = sbr.rel (%p4531) target = $region40
      $region39: #{random_filter_convolution.1} parent=35 // pred_region
        %p4534 = scmp.lt.s32.totalorder %s19, 1
        %s4535 = scalar_select %p4534, %s19, 1
        %p4536 = scmp.lt.s32.totalorder %s20, 0
        %s4537 = scalar_select %p4536, %s20, 0
        %s4538 = smul.addr %s4537, 2
        %s4539 = smul.addr %s4535, 2
        %s4540 = sadd.s32 %s4538, %s4539
        %s4541 = smul.addr %s4540, 8
        %s4542 = scalar_lea.vmem %s2, %s4541
      $region40: #{random_filter_convolution.1} parent=35 // pred_fallthru
        _
    $region36: #{random_filter_convolution.1} parent=5 // pred_fallthru
      _
  $region6: #{random_filter_convolution.1} parent=0 // loop_footer
    %s12 = sadd.s32 1, %s8
  $region7: #{random_filter_convolution.1} parent=0 // loop_footer_branch
    %7 = sbr.rel target = $region3
  $region8: #{random_filter_convolution.1} parent=0 // loop_exit
    _

</llo_original>
